<compile_context>
chip_gen: v5e
topology: v5e:2x2
jax: 0.10.0
libtpu: 0.0.40
codegen_flags: <defaults>
</compile_context>

<pallas_src>
import functools

import numpy as np
import jax
import jax.numpy as jnp
from jax import lax
from jax.experimental import pallas as pl
from jax.experimental.pallas import tpu as pltpu

LANE = 128


def _round_up(x, m):
    return (x + m - 1) // m * m


def edaunit_kernel(x_ref, xlo_ref, xhi_ref, w1_ref, wv1_ref, wh1_ref, wv2_ref,
                   wh2_ref, vec_ref, mask_ref, out_ref,
                   y1_ref, zp_ref, y2_ref, *,
                   W, tile_s, s_b, hw, dw, ph, dil):
    """One (batch, row-tile) step.

    x_ref   : (tile_s, Cp_in) bf16  main tile rows (flattened h*W+w, channel padded)
    xlo/xhi : (hw, Cp_in)     bf16  halo rows above / below the tile
    out_ref : (tile_s, Cp_mid) bf16 EDA branch only (post final ReLU)
    """
    f32 = jnp.float32
    bf16 = jnp.bfloat16
    C = out_ref.shape[-1]                      # padded mid channels (lane multiple)
    t = pl.program_id(1)
    last_t = pl.num_programs(1) - 1

    def vec(i):                                # (1, C) per-channel bias row
        return vec_ref[i:i + 1, :]

    def w3(ref, k):                            # k-th tap of a stacked (3C, C) weight
        return ref[k * C:(k + 1) * C, :]

    # Pad strips of the shared shift buffer: only read at mask==0 positions,
    # but must hold finite values (0 * NaN = NaN) -> zero the two ph-row strips.
    zp_ref[0:ph, :] = jnp.zeros((ph, C), bf16)
    zp_ref[ph + s_b:, :] = jnp.zeros((ph, C), bf16)

    # ---- stage A: 1x1 conv (BN scale folded) + folded bias -> ReLU --------
    def conv1x1(xv):
        y = jnp.dot(xv, w1_ref[...], preferred_element_type=f32) + vec(0)
        return jnp.maximum(y, 0.0).astype(bf16)

    y1_ref[hw:hw + tile_s, :] = conv1x1(x_ref[...])
    y1_ref[0:hw, :] = conv1x1(xlo_ref[...])
    y1_ref[hw + tile_s:, :] = conv1x1(xhi_ref[...])

    # The 3x1 convs zero-pad their *input feature map*: rows outside the image
    # must hold 0 in y1 (not conv1x1(0)).  (Halo rows are computed then zeroed
    # at the image edges; wasted work on 2 tiles only, keeps control flow flat.)
    @pl.when(t == 0)
    def _():
        y1_ref[0:hw, :] = jnp.zeros((hw, C), bf16)

    @pl.when(t == last_t)
    def _():
        y1_ref[hw + tile_s:, :] = jnp.zeros((hw, C), bf16)

    # precomputed width-edge masks (0/1 bf16 columns, resident)
    m1_lo = mask_ref[:, 0:1]                   # w >= 1
    m1_hi = mask_ref[:, 1:2]                   # w <  W-1
    m2_lo = mask_ref[dw:dw + tile_s, 2:3]      # w >= dil
    m2_hi = mask_ref[dw:dw + tile_s, 3:4]      # w <  W-dil

    # ---- stage B: EDABlock.conv1  (3x1 d=1 -> 1x3 d=1 -> BN -> ReLU) -------
    # vertical 3x1: three accumulating K=C matmuls on row-shifted y1 views
    zb = (jnp.dot(y1_ref[0:s_b, :], w3(wv1_ref, 0), preferred_element_type=f32)
          + jnp.dot(y1_ref[W:W + s_b, :], w3(wv1_ref, 1), preferred_element_type=f32)
          + jnp.dot(y1_ref[2 * W:2 * W + s_b, :], w3(wv1_ref, 2),
                    preferred_element_type=f32)
          + vec(1))
    zp_ref[ph:ph + s_b, :] = zb.astype(bf16)

    # horizontal 1x3 (+ folded BN) -> ReLU; width edges masked per tap
    y2 = (jnp.dot(zp_ref[ph - 1:ph - 1 + s_b, :] * m1_lo, w3(wh1_ref, 0),
                  preferred_element_type=f32)
          + jnp.dot(zp_ref[ph:ph + s_b, :], w3(wh1_ref, 1),
                    preferred_element_type=f32)
          + jnp.dot(zp_ref[ph + 1:ph + 1 + s_b, :] * m1_hi, w3(wh1_ref, 2),
                    preferred_element_type=f32)
          + vec(2))
    y2_ref[...] = jnp.maximum(y2, 0.0).astype(bf16)

    # zero rows of y2 that lie outside the image (input of the dilated 3x1)
    @pl.when(t == 0)
    def _():
        y2_ref[0:dw, :] = jnp.zeros((dw, C), bf16)

    @pl.when(t == last_t)
    def _():
        y2_ref[s_b - dw:, :] = jnp.zeros((dw, C), bf16)

    # ---- stage C: EDABlock.conv2  (3x1 dil -> ReLU -> 1x3 dil -> BN) -------
    zc = jnp.maximum(
        jnp.dot(y2_ref[0:tile_s, :], w3(wv2_ref, 0), preferred_element_type=f32)
        + jnp.dot(y2_ref[dw:dw + tile_s, :], w3(wv2_ref, 1),
                  preferred_element_type=f32)
        + jnp.dot(y2_ref[2 * dw:2 * dw + tile_s, :], w3(wv2_ref, 2),
                  preferred_element_type=f32)
        + vec(3), 0.0)
    # reuse the shared padded buffer (zb is dead now); rows beyond tile_s keep
    # stale-but-finite zb values and are only read at masked (w-edge) positions.
    zp_ref[ph:ph + tile_s, :] = zc.astype(bf16)

    y = (jnp.dot(zp_ref[ph - dil:ph - dil + tile_s, :] * m2_lo, w3(wh2_ref, 0),
                 preferred_element_type=f32)
         + jnp.dot(zp_ref[ph:ph + tile_s, :], w3(wh2_ref, 1),
                   preferred_element_type=f32)
         + jnp.dot(zp_ref[ph + dil:ph + dil + tile_s, :] * m2_hi, w3(wh2_ref, 2),
                   preferred_element_type=f32)
         + vec(4))

    # TODO(synk): nn.Dropout implemented as identity (eval/inference mode).
    # Final EDAUnit ReLU on the EDA branch; identity branch handled in wrapper.
    out_ref[...] = jnp.maximum(y, 0.0).astype(out_ref.dtype)


def _pick_tile_h(H, W, halo, vmem_bytes_fn, budget, max_rows=4096):
    divs = [d for d in range(1, H + 1) if H % d == 0]
    cands = [d for d in divs if (d >= halo or d == H) and ((d * W) % 8 == 0 or d == H)]
    if not cands:
        cands = [H]
    fitting = [d for d in cands if vmem_bytes_fn(d) <= budget and d * W <= max_rows]
    if fitting:
        return max(fitting)
    small = [d for d in cands if vmem_bytes_fn(d) <= budget]
    return min(small) if small else min(cands)


def eda_unit_forward(x_nchw, p, dilation, bn_eps, bn1_eps=1e-5, tile_h=None):
    N, C_in, H, W = x_nchw.shape
    C_mid = p['w1'].shape[0]
    Cp_in = _round_up(C_in, LANE)
    Cp_mid = _round_up(C_mid, LANE)
    assert dilation < W

    halo = dilation + 1                        # image rows of vertical halo / side
    hw = halo * W
    dw = dilation * W
    ph = max(8, _round_up(dilation, 8))        # pad rows for horizontal shifts

    # Device-aware VMEM budget (fallback: v7x's 64 MiB per TensorCore).
    try:
        cap = int(getattr(pltpu.get_tpu_info(), "vmem_capacity_bytes"))
    except Exception:
        cap = 64 << 20
    usable = max(cap - (16 << 20), 24 << 20)   # leave headroom for the compiler

    def vmem_bytes(th):
        ts = th * W
        se = ts + 2 * hw
        sb = ts + 2 * dw
        x_io = 2 * (ts * Cp_in * 2) + 2 * 2 * (hw * Cp_in * 2)   # dbl-buffered in
        o_io = 2 * (ts * Cp_mid * 2)                             # dbl-buffered bf16 out
        wts = 2 * ((Cp_in * Cp_mid + 4 * 3 * Cp_mid * Cp_mid) * 2
                   + 8 * Cp_mid * 4 + sb * 8 * 2)                # consts (dbl-buffered)
        scr = (se + (sb + 2 * ph) + sb) * Cp_mid * 2             # y1 + zp + y2
        return x_io + o_io + wts + scr

    if tile_h is None:
        tile_h = _pick_tile_h(H, W, halo, vmem_bytes, usable)
    T = H // tile_h
    assert H % tile_h == 0 and (tile_h >= halo or T == 1), \
        "tile_h must divide H and cover the halo (unless a single tile)"
    tile_s = tile_h * W
    assert T == 1 or tile_s % 8 == 0
    s_ext = tile_s + 2 * hw                    # rows seen by stage A
    s_b = tile_s + 2 * dw                      # rows produced by stage B

    # ---- input: NCHW -> NHWC, pad channels to lanes, cast bf16 -------------
    x_nhwc = jnp.transpose(x_nchw, (0, 2, 3, 1))
    x_pad = jnp.pad(x_nhwc, ((0, 0), (0, 0), (0, 0), (0, Cp_in - C_in))
                    ).astype(jnp.bfloat16)
    x_main = x_pad.reshape(N, H * W, Cp_in)    # no overlap: read 1x by BlockSpec

    # small halo side-inputs only (2*halo rows per tile), gathered host-side
    xp = jnp.pad(x_pad, ((0, 0), (halo, halo), (0, 0), (0, 0)))
    lo_rows = (jnp.arange(T) * tile_h)[:, None] + jnp.arange(halo)[None, :]
    hi_rows = lo_rows + tile_h + halo
    halo_lo = xp[:, lo_rows].reshape(N, T, hw, Cp_in)
    halo_hi = xp[:, hi_rows].reshape(N, T, hw, Cp_in)

    # ---- fold BN scale into conv weights, BN shift into biases (host side) --
    def bn_fold(g, b, m, v, eps):
        s = g / jnp.sqrt(v + eps)
        return s, b - m * s

    s1, t1 = bn_fold(p['bn1_g'], p['bn1_b'], p['bn1_m'], p['bn1_v'], bn1_eps)
    sh1, th1 = bn_fold(p['bnh1_g'], p['bnh1_b'], p['bnh1_m'], p['bnh1_v'], bn_eps)
    sh2, th2 = bn_fold(p['bnh2_g'], p['bnh2_b'], p['bnh2_m'], p['bnh2_v'], bn_eps)

    def pad2(w, r, c):
        return jnp.pad(w, ((0, r - w.shape[0]), (0, c - w.shape[1])))

    w1 = pad2((p['w1'][:, :, 0, 0] * s1[:, None]).T, Cp_in, Cp_mid).astype(jnp.bfloat16)

    def stack3(taps):                          # 3 x (Ci, Co) -> (3*Cp_mid, Cp_mid)
        return jnp.concatenate([pad2(tk, Cp_mid, Cp_mid) for tk in taps],
                               axis=0).astype(jnp.bfloat16)

    wv1 = stack3([p['wv1'][:, :, k, 0].T for k in range(3)])
    wh1 = stack3([(p['wh1'][:, :, 0, k] * sh1[:, None]).T for k in range(3)])
    wv2 = stack3([p['wv2'][:, :, k, 0].T for k in range(3)])
    wh2 = stack3([(p['wh2'][:, :, 0, k] * sh2[:, None]).T for k in range(3)])

    def padv(v):
        return jnp.pad(v, (0, Cp_mid - v.shape[0]))

    z = jnp.zeros((Cp_mid,), jnp.float32)
    vecs = jnp.stack([
        padv(p['b1'] * s1 + t1),               # 0: conv1x1 bias + BN fold
        padv(p['bv1']),                        # 1: 3x1 #1 bias (no BN)
        padv(p['bh1'] * sh1 + th1),            # 2: 1x3 #1 bias + BN fold
        padv(p['bv2']),                        # 3: 3x1 #2 bias (no BN)
        padv(p['bh2'] * sh2 + th2),            # 4: 1x3 #2 bias + BN fold
        z, z, z,
    ], axis=0).astype(jnp.float32)             # (8, Cp_mid)

    # precomputed width-edge masks for horizontal taps, (s_b, 8) bf16 0/1
    w_col = jnp.tile(jnp.arange(W, dtype=jnp.int32), tile_h + 2 * dilation)
    fcol = jnp.zeros_like(w_col, dtype=bool)
    masks = jnp.stack([
        w_col >= 1, w_col <= W - 2,
        w_col >= dilation, w_col <= W - 1 - dilation,
        fcol, fcol, fcol, fcol,
    ], axis=1).astype(jnp.bfloat16)            # (s_b, 8)

    kernel = functools.partial(
        edaunit_kernel, W=W, tile_s=tile_s, s_b=s_b, hw=hw, dw=dw, ph=ph,
        dil=dilation)

    est = vmem_bytes(tile_h)
    vmem_limit = int(min(usable, max(int(1.25 * est) + (2 << 20), 32 << 20)))

    flops = 2 * N * T * (s_ext * Cp_in * Cp_mid
                         + 3 * Cp_mid * Cp_mid * (2 * s_b + 2 * tile_s))
    bytes_accessed = int(N * H * W * (Cp_in + Cp_mid) * 2
                         + N * T * 2 * hw * Cp_in * 2
                         + (Cp_in * Cp_mid + 12 * Cp_mid * Cp_mid) * 2)

    out = pl.pallas_call(
        kernel,
        out_shape=jax.ShapeDtypeStruct((N, H * W, Cp_mid), jnp.bfloat16),
        grid=(N, T),
        in_specs=[
            pl.BlockSpec((None, tile_s, Cp_in), lambda n, t: (n, t, 0)),
            pl.BlockSpec((None, None, hw, Cp_in), lambda n, t: (n, t, 0, 0)),
            pl.BlockSpec((None, None, hw, Cp_in), lambda n, t: (n, t, 0, 0)),
            pl.BlockSpec((Cp_in, Cp_mid), lambda n, t: (0, 0)),
            pl.BlockSpec((3 * Cp_mid, Cp_mid), lambda n, t: (0, 0)),
            pl.BlockSpec((3 * Cp_mid, Cp_mid), lambda n, t: (0, 0)),
            pl.BlockSpec((3 * Cp_mid, Cp_mid), lambda n, t: (0, 0)),
            pl.BlockSpec((3 * Cp_mid, Cp_mid), lambda n, t: (0, 0)),
            pl.BlockSpec((8, Cp_mid), lambda n, t: (0, 0)),
            pl.BlockSpec((s_b, 8), lambda n, t: (0, 0)),
        ],
        out_specs=pl.BlockSpec((None, tile_s, Cp_mid), lambda n, t: (n, t, 0)),
        scratch_shapes=[
            pltpu.VMEM((s_ext, Cp_mid), jnp.bfloat16),           # y1 (ext region)
            pltpu.VMEM((s_b + 2 * ph, Cp_mid), jnp.bfloat16),    # shared zb/zc shift buf
            pltpu.VMEM((s_b, Cp_mid), jnp.bfloat16),             # y2 (B region)
        ],
        compiler_params=pltpu.CompilerParams(
            dimension_semantics=("parallel", "parallel"),
            vmem_limit_bytes=vmem_limit),
        cost_estimate=pl.CostEstimate(flops=int(flops), transcendentals=0,
                                      bytes_accessed=bytes_accessed),
    )(x_main, halo_lo, halo_hi, w1, wv1, wh1, wv2, wh2, vecs, masks)

    # lane-dense bf16 kernel output = EDA branch; identity ReLU + concat in XLA
    eda = out.reshape(N, H, W, Cp_mid)[..., :C_mid]
    eda = jnp.transpose(eda, (0, 3, 1, 2)).astype(jnp.float32)
    return jnp.concatenate([eda, jnp.maximum(x_nchw, 0.0)], axis=1)


# ---------------- pure-JAX reference (NCHW, matches PyTorch module) ----------------
def ref_forward(x, p, dilation, bn_eps, bn1_eps=1e-5):
    def conv(z, w, b, pad, dil):
        y = lax.conv_general_dilated(
            z, w, window_strides=(1, 1),
            padding=((pad[0], pad[0]), (pad[1], pad[1])),
            rhs_dilation=dil,
            dimension_numbers=('NCHW', 'OIHW', 'NCHW'))
        return y + b[None, :, None, None]

    def bn(z, g, b, m, v, eps):
        s = g / jnp.sqrt(v + eps)
        return (z - m[None, :, None, None]) * s[None, :, None, None] + b[None, :, None, None]

    relu = lambda z: jnp.maximum(z, 0.0)
    identity = x
    y = conv(x, p['w1'], p['b1'], (0, 0), (1, 1))
    y = relu(bn(y, p['bn1_g'], p['bn1_b'], p['bn1_m'], p['bn1_v'], bn1_eps))
    y = conv(y, p['wv1'], p['bv1'], (1, 0), (1, 1))
    y = conv(y, p['wh1'], p['bh1'], (0, 1), (1, 1))
    y = relu(bn(y, p['bnh1_g'], p['bnh1_b'], p['bnh1_m'], p['bnh1_v'], bn_eps))
    y = relu(conv(y, p['wv2'], p['bv2'], (dilation, 0), (dilation, 1)))
    y = conv(y, p['wh2'], p['bh2'], (0, dilation), (1, dilation))
    y = bn(y, p['bnh2_g'], p['bnh2_b'], p['bnh2_m'], p['bnh2_v'], bn_eps)
    return relu(jnp.concatenate([y, identity], axis=1))


def init_params(key, c_in, c_mid):
    keys = jax.random.split(key, 24)
    nrm = lambda k, s, sc=0.3: (sc * jax.random.normal(k, s)).astype(jnp.float32)
    p = {}
    p['w1'] = nrm(keys[0], (c_mid, c_in, 1, 1))
    p['b1'] = nrm(keys[1], (c_mid,))
    p['wv1'] = nrm(keys[2], (c_mid, c_mid, 3, 1))
    p['bv1'] = nrm(keys[3], (c_mid,))
    p['wh1'] = nrm(keys[4], (c_mid, c_mid, 1, 3))
    p['bh1'] = nrm(keys[5], (c_mid,))
    p['wv2'] = nrm(keys[6], (c_mid, c_mid, 3, 1))
    p['bv2'] = nrm(keys[7], (c_mid,))
    p['wh2'] = nrm(keys[8], (c_mid, c_mid, 1, 3))
    p['bh2'] = nrm(keys[9], (c_mid,))
    for name, kk in [('bn1', 10), ('bnh1', 14), ('bnh2', 18)]:
        p[name + '_g'] = (1.0 + 0.2 * jax.random.normal(keys[kk], (c_mid,))).astype(jnp.float32)
        p[name + '_b'] = nrm(keys[kk + 1], (c_mid,), 0.1)
        p[name + '_m'] = nrm(keys[kk + 2], (c_mid,), 0.1)
        p[name + '_v'] = (0.5 + jax.random.uniform(keys[kk + 3], (c_mid,))).astype(jnp.float32)
    return p


if __name__ == "__main__":
    N, C_in, H, W = 2, 4, 16, 16
    C_out = 8
    C_mid = C_out - C_in
    dilation = 2
    dropout_rate = 0.1        # eval mode -> identity
    bn_eps = 1e-3

    key = jax.random.PRNGKey(0)
    kx, kp = jax.random.split(key)
    x = jax.random.normal(kx, (N, C_in, H, W), dtype=jnp.float32)
    params = init_params(kp, C_in, C_mid)

    # tile_h=8 -> 2 row-tiles per image, exercising the halo/pipeline path
    out = eda_unit_forward(x, params, dilation, bn_eps, tile_h=8)
    out = jax.block_until_ready(out)
    assert out.shape == (N, C_out, H, W)

    ref = ref_forward(x, params, dilation, bn_eps)
    # bf16 matmul operands / intermediates / output (f32 accumulation)
    # -> relaxed tolerance vs the f32 reference
    np.testing.assert_allclose(np.asarray(out), np.asarray(ref), rtol=5e-2, atol=5e-2)
    print("KERNEL_OK")
</pallas_src>

<mosaic_0001>
module attributes {stable_mosaic.version = 11 : i64} {
  func.func @edaunit_kernel(%arg0: i32, %arg1: i32, %arg2: memref<1x128x128xbf16, #tpu.memory_space<vmem>>, %arg3: memref<1x1x48x128xbf16, #tpu.memory_space<vmem>>, %arg4: memref<1x1x48x128xbf16, #tpu.memory_space<vmem>>, %arg5: memref<128x128xbf16, #tpu.memory_space<vmem>>, %arg6: memref<384x128xbf16, #tpu.memory_space<vmem>>, %arg7: memref<384x128xbf16, #tpu.memory_space<vmem>>, %arg8: memref<384x128xbf16, #tpu.memory_space<vmem>>, %arg9: memref<384x128xbf16, #tpu.memory_space<vmem>>, %arg10: memref<8x128xf32, #tpu.memory_space<vmem>>, %arg11: memref<192x8xbf16, #tpu.memory_space<vmem>>, %arg12: memref<1x128x128xbf16, #tpu.memory_space<vmem>>, %arg13: memref<224x128xbf16, #tpu.memory_space<vmem>>, %arg14: memref<208x128xbf16, #tpu.memory_space<vmem>>, %arg15: memref<192x128xbf16, #tpu.memory_space<vmem>>) attributes {dimension_semantics = [#tpu.dimension_semantics<parallel>, #tpu.dimension_semantics<parallel>], iteration_bounds = array<i64: 2, 2>, scalar_prefetch = 0 : i64, scratch_operands = 3 : i64, tpu.core_type = #tpu.core_type<tc>, window_params = [{transform_indices = @transform_0, window_bounds = array<i64: 1, 128, 128>}, {transform_indices = @transform_1, window_bounds = array<i64: 1, 1, 48, 128>}, {transform_indices = @transform_2, window_bounds = array<i64: 1, 1, 48, 128>}, {pipeline_mode = #tpu.pipeline_mode<synchronous>, transform_indices = @transform_3, window_bounds = array<i64: 128, 128>}, {pipeline_mode = #tpu.pipeline_mode<synchronous>, transform_indices = @transform_4, window_bounds = array<i64: 384, 128>}, {pipeline_mode = #tpu.pipeline_mode<synchronous>, transform_indices = @transform_5, window_bounds = array<i64: 384, 128>}, {pipeline_mode = #tpu.pipeline_mode<synchronous>, transform_indices = @transform_6, window_bounds = array<i64: 384, 128>}, {pipeline_mode = #tpu.pipeline_mode<synchronous>, transform_indices = @transform_7, window_bounds = array<i64: 384, 128>}, {pipeline_mode = #tpu.pipeline_mode<synchronous>, transform_indices = @transform_8, window_bounds = array<i64: 8, 128>}, {pipeline_mode = #tpu.pipeline_mode<synchronous>, transform_indices = @transform_9, window_bounds = array<i64: 192, 8>}, {transform_indices = @transform_10, window_bounds = array<i64: 1, 128, 128>}]} {
    %cst = arith.constant 0.000000e+00 : bf16
    %0 = vector.broadcast %cst : bf16 to vector<8x128xbf16>
    %c0 = arith.constant 0 : index
    %c0_0 = arith.constant 0 : index
    %1 = vector.load %arg14[%c0, %c0_0] : memref<208x128xbf16, #tpu.memory_space<vmem>>, vector<8x128xbf16>
    tpu.vector_store %arg14[%c0, %c0_0], %0 {strides = array<i32>} : memref<208x128xbf16, #tpu.memory_space<vmem>>, vector<8x128xbf16>,
    %cst_1 = arith.constant 0.000000e+00 : bf16
    %2 = vector.broadcast %cst_1 : bf16 to vector<8x128xbf16>
    %c200 = arith.constant 200 : index
    %c0_2 = arith.constant 0 : index
    %3 = vector.load %arg14[%c200, %c0_2] : memref<208x128xbf16, #tpu.memory_space<vmem>>, vector<8x128xbf16>
    tpu.vector_store %arg14[%c200, %c0_2], %2 {strides = array<i32>} : memref<208x128xbf16, #tpu.memory_space<vmem>>, vector<8x128xbf16>,
    %c0_3 = arith.constant 0 : index
    %c0_4 = arith.constant 0 : index
    %c0_5 = arith.constant 0 : index
    %4 = vector.load %arg2[%c0_3, %c0_4, %c0_5] : memref<1x128x128xbf16, #tpu.memory_space<vmem>>, vector<1x128x128xbf16>
    %5 = vector.shape_cast %4 : vector<1x128x128xbf16> to vector<128x128xbf16>
    %c0_6 = arith.constant 0 : index
    %c0_7 = arith.constant 0 : index
    %6 = vector.load %arg5[%c0_6, %c0_7] : memref<128x128xbf16, #tpu.memory_space<vmem>>, vector<128x128xbf16>
    %cst_8 = arith.constant dense<0.000000e+00> : vector<128x128xf32>
    %7 = tpu.matmul %5, %6, %cst_8 {dimension_numbers = #tpu.dot_dimension_numbers<[1], [0], [0], [1], [0, 0, 1, 1], [], []>} : vector<128x128xbf16>, vector<128x128xbf16>, vector<128x128xf32> -> vector<128x128xf32>
    %c0_9 = arith.constant 0 : index
    %c0_10 = arith.constant 0 : index
    %8 = vector.load %arg10[%c0_9, %c0_10] : memref<8x128xf32, #tpu.memory_space<vmem>>, vector<1x128xf32>
    %9 = vector.broadcast %8 : vector<1x128xf32> to vector<128x128xf32>
    %10 = arith.addf %7, %9 : vector<128x128xf32>
    %cst_11 = arith.constant 0.000000e+00 : f32
    %11 = vector.broadcast %cst_11 : f32 to vector<128x128xf32>
    %12 = arith.maximumf %10, %11 : vector<128x128xf32>
    %13 = arith.truncf %12 : vector<128x128xf32> to vector<128x128xbf16>
    %c48 = arith.constant 48 : index
    %c0_12 = arith.constant 0 : index
    %14 = vector.load %arg13[%c48, %c0_12] : memref<224x128xbf16, #tpu.memory_space<vmem>>, vector<128x128xbf16>
    tpu.vector_store %arg13[%c48, %c0_12], %13 {strides = array<i32>} : memref<224x128xbf16, #tpu.memory_space<vmem>>, vector<128x128xbf16>,
    %c0_13 = arith.constant 0 : index
    %c0_14 = arith.constant 0 : index
    %c0_15 = arith.constant 0 : index
    %c0_16 = arith.constant 0 : index
    %15 = vector.load %arg3[%c0_13, %c0_14, %c0_15, %c0_16] : memref<1x1x48x128xbf16, #tpu.memory_space<vmem>>, vector<1x1x48x128xbf16>
    %16 = vector.shape_cast %15 : vector<1x1x48x128xbf16> to vector<48x128xbf16>
    %c0_17 = arith.constant 0 : index
    %c0_18 = arith.constant 0 : index
    %17 = vector.load %arg5[%c0_17, %c0_18] : memref<128x128xbf16, #tpu.memory_space<vmem>>, vector<128x128xbf16>
    %cst_19 = arith.constant dense<0.000000e+00> : vector<48x128xf32>
    %18 = tpu.matmul %16, %17, %cst_19 {dimension_numbers = #tpu.dot_dimension_numbers<[1], [0], [0], [1], [0, 0, 1, 1], [], []>} : vector<48x128xbf16>, vector<128x128xbf16>, vector<48x128xf32> -> vector<48x128xf32>
    %c0_20 = arith.constant 0 : index
    %c0_21 = arith.constant 0 : index
    %19 = vector.load %arg10[%c0_20, %c0_21] : memref<8x128xf32, #tpu.memory_space<vmem>>, vector<1x128xf32>
    %20 = vector.broadcast %19 : vector<1x128xf32> to vector<48x128xf32>
    %21 = arith.addf %18, %20 : vector<48x128xf32>
    %cst_22 = arith.constant 0.000000e+00 : f32
    %22 = vector.broadcast %cst_22 : f32 to vector<48x128xf32>
    %23 = arith.maximumf %21, %22 : vector<48x128xf32>
    %24 = arith.truncf %23 : vector<48x128xf32> to vector<48x128xbf16>
    %c0_23 = arith.constant 0 : index
    %c0_24 = arith.constant 0 : index
    %25 = vector.load %arg13[%c0_23, %c0_24] : memref<224x128xbf16, #tpu.memory_space<vmem>>, vector<48x128xbf16>
    tpu.vector_store %arg13[%c0_23, %c0_24], %24 {strides = array<i32>} : memref<224x128xbf16, #tpu.memory_space<vmem>>, vector<48x128xbf16>,
    %c0_25 = arith.constant 0 : index
    %c0_26 = arith.constant 0 : index
    %c0_27 = arith.constant 0 : index
    %c0_28 = arith.constant 0 : index
    %26 = vector.load %arg4[%c0_25, %c0_26, %c0_27, %c0_28] : memref<1x1x48x128xbf16, #tpu.memory_space<vmem>>, vector<1x1x48x128xbf16>
    %27 = vector.shape_cast %26 : vector<1x1x48x128xbf16> to vector<48x128xbf16>
    %c0_29 = arith.constant 0 : index
    %c0_30 = arith.constant 0 : index
    %28 = vector.load %arg5[%c0_29, %c0_30] : memref<128x128xbf16, #tpu.memory_space<vmem>>, vector<128x128xbf16>
    %cst_31 = arith.constant dense<0.000000e+00> : vector<48x128xf32>
    %29 = tpu.matmul %27, %28, %cst_31 {dimension_numbers = #tpu.dot_dimension_numbers<[1], [0], [0], [1], [0, 0, 1, 1], [], []>} : vector<48x128xbf16>, vector<128x128xbf16>, vector<48x128xf32> -> vector<48x128xf32>
    %c0_32 = arith.constant 0 : index
    %c0_33 = arith.constant 0 : index
    %30 = vector.load %arg10[%c0_32, %c0_33] : memref<8x128xf32, #tpu.memory_space<vmem>>, vector<1x128xf32>
    %31 = vector.broadcast %30 : vector<1x128xf32> to vector<48x128xf32>
    %32 = arith.addf %29, %31 : vector<48x128xf32>
    %cst_34 = arith.constant 0.000000e+00 : f32
    %33 = vector.broadcast %cst_34 : f32 to vector<48x128xf32>
    %34 = arith.maximumf %32, %33 : vector<48x128xf32>
    %35 = arith.truncf %34 : vector<48x128xf32> to vector<48x128xbf16>
    %c176 = arith.constant 176 : index
    %c0_35 = arith.constant 0 : index
    %36 = vector.load %arg13[%c176, %c0_35] : memref<224x128xbf16, #tpu.memory_space<vmem>>, vector<48x128xbf16>
    tpu.vector_store %arg13[%c176, %c0_35], %35 {strides = array<i32>} : memref<224x128xbf16, #tpu.memory_space<vmem>>, vector<48x128xbf16>,
    %c0_i32 = arith.constant 0 : i32
    %37 = arith.cmpi eq, %arg1, %c0_i32 : i32
    %38 = arith.extui %37 : i1 to i32
    %c0_i32_36 = arith.constant 0 : i32
    %39 = arith.cmpi ne, %38, %c0_i32_36 : i32
    scf.if %39 {
      %cst_116 = arith.constant 0.000000e+00 : bf16
      %133 = vector.broadcast %cst_116 : bf16 to vector<48x128xbf16>
      %c0_117 = arith.constant 0 : index
      %c0_118 = arith.constant 0 : index
      %134 = vector.load %arg13[%c0_117, %c0_118] : memref<224x128xbf16, #tpu.memory_space<vmem>>, vector<48x128xbf16>
      tpu.vector_store %arg13[%c0_117, %c0_118], %133 {strides = array<i32>} : memref<224x128xbf16, #tpu.memory_space<vmem>>, vector<48x128xbf16>,
    } else {
    }
    %c1_i32 = arith.constant 1 : i32
    %40 = arith.cmpi eq, %arg1, %c1_i32 : i32
    %41 = arith.extui %40 : i1 to i32
    %c0_i32_37 = arith.constant 0 : i32
    %42 = arith.cmpi ne, %41, %c0_i32_37 : i32
    scf.if %42 {
      %cst_116 = arith.constant 0.000000e+00 : bf16
      %133 = vector.broadcast %cst_116 : bf16 to vector<48x128xbf16>
      %c176_117 = arith.constant 176 : index
      %c0_118 = arith.constant 0 : index
      %134 = vector.load %arg13[%c176_117, %c0_118] : memref<224x128xbf16, #tpu.memory_space<vmem>>, vector<48x128xbf16>
      tpu.vector_store %arg13[%c176_117, %c0_118], %133 {strides = array<i32>} : memref<224x128xbf16, #tpu.memory_space<vmem>>, vector<48x128xbf16>,
    } else {
    }
    %c0_38 = arith.constant 0 : index
    %c0_39 = arith.constant 0 : index
    %43 = vector.load %arg11[%c0_38, %c0_39] : memref<192x8xbf16, #tpu.memory_space<vmem>>, vector<192x1xbf16>
    %c0_40 = arith.constant 0 : index
    %c1 = arith.constant 1 : index
    %44 = vector.load %arg11[%c0_40, %c1] : memref<192x8xbf16, #tpu.memory_space<vmem>>, vector<192x1xbf16>
    %c32 = arith.constant 32 : index
    %c2 = arith.constant 2 : index
    %45 = vector.load %arg11[%c32, %c2] : memref<192x8xbf16, #tpu.memory_space<vmem>>, vector<128x1xbf16>
    %c32_41 = arith.constant 32 : index
    %c3 = arith.constant 3 : index
    %46 = vector.load %arg11[%c32_41, %c3] : memref<192x8xbf16, #tpu.memory_space<vmem>>, vector<128x1xbf16>
    %c0_42 = arith.constant 0 : index
    %c0_43 = arith.constant 0 : index
    %47 = vector.load %arg13[%c0_42, %c0_43] : memref<224x128xbf16, #tpu.memory_space<vmem>>, vector<192x128xbf16>
    %c0_44 = arith.constant 0 : index
    %c0_45 = arith.constant 0 : index
    %48 = vector.load %arg6[%c0_44, %c0_45] : memref<384x128xbf16, #tpu.memory_space<vmem>>, vector<128x128xbf16>
    %cst_46 = arith.constant dense<0.000000e+00> : vector<192x128xf32>
    %49 = tpu.matmul %47, %48, %cst_46 {dimension_numbers = #tpu.dot_dimension_numbers<[1], [0], [0], [1], [0, 0, 1, 1], [], []>} : vector<192x128xbf16>, vector<128x128xbf16>, vector<192x128xf32> -> vector<192x128xf32>
    %c16 = arith.constant 16 : index
    %c0_47 = arith.constant 0 : index
    %50 = vector.load %arg13[%c16, %c0_47] : memref<224x128xbf16, #tpu.memory_space<vmem>>, vector<192x128xbf16>
    %c128 = arith.constant 128 : index
    %c0_48 = arith.constant 0 : index
    %51 = vector.load %arg6[%c128, %c0_48] : memref<384x128xbf16, #tpu.memory_space<vmem>>, vector<128x128xbf16>
    %cst_49 = arith.constant dense<0.000000e+00> : vector<192x128xf32>
    %52 = tpu.matmul %50, %51, %cst_49 {dimension_numbers = #tpu.dot_dimension_numbers<[1], [0], [0], [1], [0, 0, 1, 1], [], []>} : vector<192x128xbf16>, vector<128x128xbf16>, vector<192x128xf32> -> vector<192x128xf32>
    %53 = arith.addf %49, %52 : vector<192x128xf32>
    %c32_50 = arith.constant 32 : index
    %c0_51 = arith.constant 0 : index
    %54 = vector.load %arg13[%c32_50, %c0_51] : memref<224x128xbf16, #tpu.memory_space<vmem>>, vector<192x128xbf16>
    %c256 = arith.constant 256 : index
    %c0_52 = arith.constant 0 : index
    %55 = vector.load %arg6[%c256, %c0_52] : memref<384x128xbf16, #tpu.memory_space<vmem>>, vector<128x128xbf16>
    %cst_53 = arith.constant dense<0.000000e+00> : vector<192x128xf32>
    %56 = tpu.matmul %54, %55, %cst_53 {dimension_numbers = #tpu.dot_dimension_numbers<[1], [0], [0], [1], [0, 0, 1, 1], [], []>} : vector<192x128xbf16>, vector<128x128xbf16>, vector<192x128xf32> -> vector<192x128xf32>
    %57 = arith.addf %53, %56 : vector<192x128xf32>
    %c1_54 = arith.constant 1 : index
    %c0_55 = arith.constant 0 : index
    %58 = vector.load %arg10[%c1_54, %c0_55] : memref<8x128xf32, #tpu.memory_space<vmem>>, vector<1x128xf32>
    %59 = vector.broadcast %58 : vector<1x128xf32> to vector<192x128xf32>
    %60 = arith.addf %57, %59 : vector<192x128xf32>
    %61 = arith.truncf %60 : vector<192x128xf32> to vector<192x128xbf16>
    %c8 = arith.constant 8 : index
    %c0_56 = arith.constant 0 : index
    %62 = vector.load %arg14[%c8, %c0_56] : memref<208x128xbf16, #tpu.memory_space<vmem>>, vector<192x128xbf16>
    tpu.vector_store %arg14[%c8, %c0_56], %61 {strides = array<i32>} : memref<208x128xbf16, #tpu.memory_space<vmem>>, vector<192x128xbf16>,
    %c7 = arith.constant 7 : index
    %c0_57 = arith.constant 0 : index
    %63 = vector.load %arg14[%c7, %c0_57] : memref<208x128xbf16, #tpu.memory_space<vmem>>, vector<192x128xbf16>
    %64 = vector.broadcast %43 : vector<192x1xbf16> to vector<192x128xbf16>
    %65 = arith.mulf %63, %64 : vector<192x128xbf16>
    %c0_58 = arith.constant 0 : index
    %c0_59 = arith.constant 0 : index
    %66 = vector.load %arg7[%c0_58, %c0_59] : memref<384x128xbf16, #tpu.memory_space<vmem>>, vector<128x128xbf16>
    %cst_60 = arith.constant dense<0.000000e+00> : vector<192x128xf32>
    %67 = tpu.matmul %65, %66, %cst_60 {dimension_numbers = #tpu.dot_dimension_numbers<[1], [0], [0], [1], [0, 0, 1, 1], [], []>} : vector<192x128xbf16>, vector<128x128xbf16>, vector<192x128xf32> -> vector<192x128xf32>
    %c8_61 = arith.constant 8 : index
    %c0_62 = arith.constant 0 : index
    %68 = vector.load %arg14[%c8_61, %c0_62] : memref<208x128xbf16, #tpu.memory_space<vmem>>, vector<192x128xbf16>
    %c128_63 = arith.constant 128 : index
    %c0_64 = arith.constant 0 : index
    %69 = vector.load %arg7[%c128_63, %c0_64] : memref<384x128xbf16, #tpu.memory_space<vmem>>, vector<128x128xbf16>
    %cst_65 = arith.constant dense<0.000000e+00> : vector<192x128xf32>
    %70 = tpu.matmul %68, %69, %cst_65 {dimension_numbers = #tpu.dot_dimension_numbers<[1], [0], [0], [1], [0, 0, 1, 1], [], []>} : vector<192x128xbf16>, vector<128x128xbf16>, vector<192x128xf32> -> vector<192x128xf32>
    %71 = arith.addf %67, %70 : vector<192x128xf32>
    %c9 = arith.constant 9 : index
    %c0_66 = arith.constant 0 : index
    %72 = vector.load %arg14[%c9, %c0_66] : memref<208x128xbf16, #tpu.memory_space<vmem>>, vector<192x128xbf16>
    %73 = vector.broadcast %44 : vector<192x1xbf16> to vector<192x128xbf16>
    %74 = arith.mulf %72, %73 : vector<192x128xbf16>
    %c256_67 = arith.constant 256 : index
    %c0_68 = arith.constant 0 : index
    %75 = vector.load %arg7[%c256_67, %c0_68] : memref<384x128xbf16, #tpu.memory_space<vmem>>, vector<128x128xbf16>
    %cst_69 = arith.constant dense<0.000000e+00> : vector<192x128xf32>
    %76 = tpu.matmul %74, %75, %cst_69 {dimension_numbers = #tpu.dot_dimension_numbers<[1], [0], [0], [1], [0, 0, 1, 1], [], []>} : vector<192x128xbf16>, vector<128x128xbf16>, vector<192x128xf32> -> vector<192x128xf32>
    %77 = arith.addf %71, %76 : vector<192x128xf32>
    %c2_70 = arith.constant 2 : index
    %c0_71 = arith.constant 0 : index
    %78 = vector.load %arg10[%c2_70, %c0_71] : memref<8x128xf32, #tpu.memory_space<vmem>>, vector<1x128xf32>
    %79 = vector.broadcast %78 : vector<1x128xf32> to vector<192x128xf32>
    %80 = arith.addf %77, %79 : vector<192x128xf32>
    %cst_72 = arith.constant 0.000000e+00 : f32
    %81 = vector.broadcast %cst_72 : f32 to vector<192x128xf32>
    %82 = arith.maximumf %80, %81 : vector<192x128xf32>
    %83 = arith.truncf %82 : vector<192x128xf32> to vector<192x128xbf16>
    %c0_73 = arith.constant 0 : index
    %c0_74 = arith.constant 0 : index
    %84 = vector.load %arg15[%c0_73, %c0_74] : memref<192x128xbf16, #tpu.memory_space<vmem>>, vector<192x128xbf16>
    tpu.vector_store %arg15[%c0_73, %c0_74], %83 {strides = array<i32>} : memref<192x128xbf16, #tpu.memory_space<vmem>>, vector<192x128xbf16>,
    %c0_i32_75 = arith.constant 0 : i32
    %85 = arith.cmpi eq, %arg1, %c0_i32_75 : i32
    %86 = arith.extui %85 : i1 to i32
    %c0_i32_76 = arith.constant 0 : i32
    %87 = arith.cmpi ne, %86, %c0_i32_76 : i32
    scf.if %87 {
      %cst_116 = arith.constant 0.000000e+00 : bf16
      %133 = vector.broadcast %cst_116 : bf16 to vector<32x128xbf16>
      %c0_117 = arith.constant 0 : index
      %c0_118 = arith.constant 0 : index
      %134 = vector.load %arg15[%c0_117, %c0_118] : memref<192x128xbf16, #tpu.memory_space<vmem>>, vector<32x128xbf16>
      tpu.vector_store %arg15[%c0_117, %c0_118], %133 {strides = array<i32>} : memref<192x128xbf16, #tpu.memory_space<vmem>>, vector<32x128xbf16>,
    } else {
    }
    %c1_i32_77 = arith.constant 1 : i32
    %88 = arith.cmpi eq, %arg1, %c1_i32_77 : i32
    %89 = arith.extui %88 : i1 to i32
    %c0_i32_78 = arith.constant 0 : i32
    %90 = arith.cmpi ne, %89, %c0_i32_78 : i32
    scf.if %90 {
      %cst_116 = arith.constant 0.000000e+00 : bf16
      %133 = vector.broadcast %cst_116 : bf16 to vector<32x128xbf16>
      %c160 = arith.constant 160 : index
      %c0_117 = arith.constant 0 : index
      %134 = vector.load %arg15[%c160, %c0_117] : memref<192x128xbf16, #tpu.memory_space<vmem>>, vector<32x128xbf16>
      tpu.vector_store %arg15[%c160, %c0_117], %133 {strides = array<i32>} : memref<192x128xbf16, #tpu.memory_space<vmem>>, vector<32x128xbf16>,
    } else {
    }
    %c0_79 = arith.constant 0 : index
    %c0_80 = arith.constant 0 : index
    %91 = vector.load %arg15[%c0_79, %c0_80] : memref<192x128xbf16, #tpu.memory_space<vmem>>, vector<128x128xbf16>
    %c0_81 = arith.constant 0 : index
    %c0_82 = arith.constant 0 : index
    %92 = vector.load %arg8[%c0_81, %c0_82] : memref<384x128xbf16, #tpu.memory_space<vmem>>, vector<128x128xbf16>
    %cst_83 = arith.constant dense<0.000000e+00> : vector<128x128xf32>
    %93 = tpu.matmul %91, %92, %cst_83 {dimension_numbers = #tpu.dot_dimension_numbers<[1], [0], [0], [1], [0, 0, 1, 1], [], []>} : vector<128x128xbf16>, vector<128x128xbf16>, vector<128x128xf32> -> vector<128x128xf32>
    %c32_84 = arith.constant 32 : index
    %c0_85 = arith.constant 0 : index
    %94 = vector.load %arg15[%c32_84, %c0_85] : memref<192x128xbf16, #tpu.memory_space<vmem>>, vector<128x128xbf16>
    %c128_86 = arith.constant 128 : index
    %c0_87 = arith.constant 0 : index
    %95 = vector.load %arg8[%c128_86, %c0_87] : memref<384x128xbf16, #tpu.memory_space<vmem>>, vector<128x128xbf16>
    %cst_88 = arith.constant dense<0.000000e+00> : vector<128x128xf32>
    %96 = tpu.matmul %94, %95, %cst_88 {dimension_numbers = #tpu.dot_dimension_numbers<[1], [0], [0], [1], [0, 0, 1, 1], [], []>} : vector<128x128xbf16>, vector<128x128xbf16>, vector<128x128xf32> -> vector<128x128xf32>
    %97 = arith.addf %93, %96 : vector<128x128xf32>
    %c64 = arith.constant 64 : index
    %c0_89 = arith.constant 0 : index
    %98 = vector.load %arg15[%c64, %c0_89] : memref<192x128xbf16, #tpu.memory_space<vmem>>, vector<128x128xbf16>
    %c256_90 = arith.constant 256 : index
    %c0_91 = arith.constant 0 : index
    %99 = vector.load %arg8[%c256_90, %c0_91] : memref<384x128xbf16, #tpu.memory_space<vmem>>, vector<128x128xbf16>
    %cst_92 = arith.constant dense<0.000000e+00> : vector<128x128xf32>
    %100 = tpu.matmul %98, %99, %cst_92 {dimension_numbers = #tpu.dot_dimension_numbers<[1], [0], [0], [1], [0, 0, 1, 1], [], []>} : vector<128x128xbf16>, vector<128x128xbf16>, vector<128x128xf32> -> vector<128x128xf32>
    %101 = arith.addf %97, %100 : vector<128x128xf32>
    %c3_93 = arith.constant 3 : index
    %c0_94 = arith.constant 0 : index
    %102 = vector.load %arg10[%c3_93, %c0_94] : memref<8x128xf32, #tpu.memory_space<vmem>>, vector<1x128xf32>
    %103 = vector.broadcast %102 : vector<1x128xf32> to vector<128x128xf32>
    %104 = arith.addf %101, %103 : vector<128x128xf32>
    %cst_95 = arith.constant 0.000000e+00 : f32
    %105 = vector.broadcast %cst_95 : f32 to vector<128x128xf32>
    %106 = arith.maximumf %104, %105 : vector<128x128xf32>
    %107 = arith.truncf %106 : vector<128x128xf32> to vector<128x128xbf16>
    %c8_96 = arith.constant 8 : index
    %c0_97 = arith.constant 0 : index
    %108 = vector.load %arg14[%c8_96, %c0_97] : memref<208x128xbf16, #tpu.memory_space<vmem>>, vector<128x128xbf16>
    tpu.vector_store %arg14[%c8_96, %c0_97], %107 {strides = array<i32>} : memref<208x128xbf16, #tpu.memory_space<vmem>>, vector<128x128xbf16>,
    %c6 = arith.constant 6 : index
    %c0_98 = arith.constant 0 : index
    %109 = vector.load %arg14[%c6, %c0_98] : memref<208x128xbf16, #tpu.memory_space<vmem>>, vector<128x128xbf16>
    %110 = vector.broadcast %45 : vector<128x1xbf16> to vector<128x128xbf16>
    %111 = arith.mulf %109, %110 : vector<128x128xbf16>
    %c0_99 = arith.constant 0 : index
    %c0_100 = arith.constant 0 : index
    %112 = vector.load %arg9[%c0_99, %c0_100] : memref<384x128xbf16, #tpu.memory_space<vmem>>, vector<128x128xbf16>
    %cst_101 = arith.constant dense<0.000000e+00> : vector<128x128xf32>
    %113 = tpu.matmul %111, %112, %cst_101 {dimension_numbers = #tpu.dot_dimension_numbers<[1], [0], [0], [1], [0, 0, 1, 1], [], []>} : vector<128x128xbf16>, vector<128x128xbf16>, vector<128x128xf32> -> vector<128x128xf32>
    %c8_102 = arith.constant 8 : index
    %c0_103 = arith.constant 0 : index
    %114 = vector.load %arg14[%c8_102, %c0_103] : memref<208x128xbf16, #tpu.memory_space<vmem>>, vector<128x128xbf16>
    %c128_104 = arith.constant 128 : index
    %c0_105 = arith.constant 0 : index
    %115 = vector.load %arg9[%c128_104, %c0_105] : memref<384x128xbf16, #tpu.memory_space<vmem>>, vector<128x128xbf16>
    %cst_106 = arith.constant dense<0.000000e+00> : vector<128x128xf32>
    %116 = tpu.matmul %114, %115, %cst_106 {dimension_numbers = #tpu.dot_dimension_numbers<[1], [0], [0], [1], [0, 0, 1, 1], [], []>} : vector<128x128xbf16>, vector<128x128xbf16>, vector<128x128xf32> -> vector<128x128xf32>
    %117 = arith.addf %113, %116 : vector<128x128xf32>
    %c10 = arith.constant 10 : index
    %c0_107 = arith.constant 0 : index
    %118 = vector.load %arg14[%c10, %c0_107] : memref<208x128xbf16, #tpu.memory_space<vmem>>, vector<128x128xbf16>
    %119 = vector.broadcast %46 : vector<128x1xbf16> to vector<128x128xbf16>
    %120 = arith.mulf %118, %119 : vector<128x128xbf16>
    %c256_108 = arith.constant 256 : index
    %c0_109 = arith.constant 0 : index
    %121 = vector.load %arg9[%c256_108, %c0_109] : memref<384x128xbf16, #tpu.memory_space<vmem>>, vector<128x128xbf16>
    %cst_110 = arith.constant dense<0.000000e+00> : vector<128x128xf32>
    %122 = tpu.matmul %120, %121, %cst_110 {dimension_numbers = #tpu.dot_dimension_numbers<[1], [0], [0], [1], [0, 0, 1, 1], [], []>} : vector<128x128xbf16>, vector<128x128xbf16>, vector<128x128xf32> -> vector<128x128xf32>
    %123 = arith.addf %117, %122 : vector<128x128xf32>
    %c4 = arith.constant 4 : index
    %c0_111 = arith.constant 0 : index
    %124 = vector.load %arg10[%c4, %c0_111] : memref<8x128xf32, #tpu.memory_space<vmem>>, vector<1x128xf32>
    %125 = vector.broadcast %124 : vector<1x128xf32> to vector<128x128xf32>
    %126 = arith.addf %123, %125 : vector<128x128xf32>
    %cst_112 = arith.constant 0.000000e+00 : f32
    %127 = vector.broadcast %cst_112 : f32 to vector<128x128xf32>
    %128 = arith.maximumf %126, %127 : vector<128x128xf32>
    %129 = arith.truncf %128 : vector<128x128xf32> to vector<128x128xbf16>
    %c0_113 = arith.constant 0 : index
    %c0_114 = arith.constant 0 : index
    %c0_115 = arith.constant 0 : index
    %130 = vector.load %arg12[%c0_113, %c0_114, %c0_115] : memref<1x128x128xbf16, #tpu.memory_space<vmem>>, vector<1x128x128xbf16>
    %131 = vector.shape_cast %130 : vector<1x128x128xbf16> to vector<128x128xbf16>
    %132 = vector.shape_cast %129 : vector<128x128xbf16> to vector<1x128x128xbf16>
    tpu.vector_store %arg12[%c0_113, %c0_114, %c0_115], %132 {strides = array<i32>} : memref<1x128x128xbf16, #tpu.memory_space<vmem>>, vector<1x128x128xbf16>,
    return
  }
  func.func @transform_0(%arg0: i32, %arg1: i32) -> (i32, i32, i32) {
    %c0_i32 = arith.constant 0 : i32
    %c0_i32_0 = arith.constant 0 : i32
    return %arg0, %arg1, %c0_i32 : i32, i32, i32
  }
  func.func @transform_1(%arg0: i32, %arg1: i32) -> (i32, i32, i32, i32) {
    %c0_i32 = arith.constant 0 : i32
    %c0_i32_0 = arith.constant 0 : i32
    %c0_i32_1 = arith.constant 0 : i32
    return %arg0, %arg1, %c0_i32, %c0_i32_0 : i32, i32, i32, i32
  }
  func.func @transform_2(%arg0: i32, %arg1: i32) -> (i32, i32, i32, i32) {
    %c0_i32 = arith.constant 0 : i32
    %c0_i32_0 = arith.constant 0 : i32
    %c0_i32_1 = arith.constant 0 : i32
    return %arg0, %arg1, %c0_i32, %c0_i32_0 : i32, i32, i32, i32
  }
  func.func @transform_3(%arg0: i32, %arg1: i32) -> (i32, i32) {
    %c0_i32 = arith.constant 0 : i32
    %c0_i32_0 = arith.constant 0 : i32
    %c0_i32_1 = arith.constant 0 : i32
    return %c0_i32, %c0_i32_0 : i32, i32
  }
  func.func @transform_4(%arg0: i32, %arg1: i32) -> (i32, i32) {
    %c0_i32 = arith.constant 0 : i32
    %c0_i32_0 = arith.constant 0 : i32
    %c0_i32_1 = arith.constant 0 : i32
    return %c0_i32, %c0_i32_0 : i32, i32
  }
  func.func @transform_5(%arg0: i32, %arg1: i32) -> (i32, i32) {
    %c0_i32 = arith.constant 0 : i32
    %c0_i32_0 = arith.constant 0 : i32
    %c0_i32_1 = arith.constant 0 : i32
    return %c0_i32, %c0_i32_0 : i32, i32
  }
  func.func @transform_6(%arg0: i32, %arg1: i32) -> (i32, i32) {
    %c0_i32 = arith.constant 0 : i32
    %c0_i32_0 = arith.constant 0 : i32
    %c0_i32_1 = arith.constant 0 : i32
    return %c0_i32, %c0_i32_0 : i32, i32
  }
  func.func @transform_7(%arg0: i32, %arg1: i32) -> (i32, i32) {
    %c0_i32 = arith.constant 0 : i32
    %c0_i32_0 = arith.constant 0 : i32
    %c0_i32_1 = arith.constant 0 : i32
    return %c0_i32, %c0_i32_0 : i32, i32
  }
  func.func @transform_8(%arg0: i32, %arg1: i32) -> (i32, i32) {
    %c0_i32 = arith.constant 0 : i32
    %c0_i32_0 = arith.constant 0 : i32
    %c0_i32_1 = arith.constant 0 : i32
    return %c0_i32, %c0_i32_0 : i32, i32
  }
  func.func @transform_9(%arg0: i32, %arg1: i32) -> (i32, i32) {
    %c0_i32 = arith.constant 0 : i32
    %c0_i32_0 = arith.constant 0 : i32
    %c0_i32_1 = arith.constant 0 : i32
    return %c0_i32, %c0_i32_0 : i32, i32
  }
  func.func @transform_10(%arg0: i32, %arg1: i32) -> (i32, i32, i32) {
    %c0_i32 = arith.constant 0 : i32
    %c0_i32_0 = arith.constant 0 : i32
    return %arg0, %arg1, %c0_i32 : i32, i32, i32
  }
}

</mosaic_0001>

<llo_original>
// kernel: tpu_custom_call.1
$region0: #{tpu_custom_call.1}
  #allocation0 [shape = 'u32[]', space=smem, size = 0x4, offset = 0x4, fixed_abs, tag = 'smem constant byte address 0x4 - core index']
  #allocation1 [shape = 'u32[72,128]{1,0:T(1,128)}', space=vmem, size = 0x9000, scoped, tag = 'internal scratch']
  #allocation2 [shape = 'bf16[224,128]{1,0:T(8,128)(2,1)}', space=vmem, size = 0xe000, scoped, tag = 'scratch operand']
  #allocation3 [shape = 'bf16[208,128]{1,0:T(8,128)(2,1)}', space=vmem, size = 0xd000, scoped, tag = 'scratch operand']
  #allocation4 [shape = 'bf16[192,128]{1,0:T(8,128)(2,1)}', space=vmem, size = 0xc000, scoped, tag = 'scratch operand']
  %s0 = inlined_call_operand.hbm [shape: bf16[2,256,128], index: 0, kind: input, shape index: {}]
  %s1 = inlined_call_operand.vmem [shape: bf16[2,2,48,128], index: 1, kind: input, shape index: {}]
  %s2 = inlined_call_operand.hbm [shape: bf16[2,2,48,128], index: 2, kind: input, shape index: {}]
  %s3 = inlined_call_operand.hbm [shape: bf16[128,128], index: 3, kind: input, shape index: {}]
  %s4 = inlined_call_operand.hbm [shape: bf16[384,128], index: 4, kind: input, shape index: {}]
  %s5 = inlined_call_operand.hbm [shape: bf16[384,128], index: 5, kind: input, shape index: {}]
  %s6 = inlined_call_operand.hbm [shape: bf16[384,128], index: 6, kind: input, shape index: {}]
  %s7 = inlined_call_operand.hbm [shape: bf16[384,128], index: 7, kind: input, shape index: {}]
  %s8 = inlined_call_operand.vmem [shape: f32[8,128], index: 8, kind: input, shape index: {}]
  %s9 = inlined_call_operand.vmem [shape: bf16[192,8], index: 9, kind: input, shape index: {}]
  %s10 = inlined_call_operand.hbm [shape: bf16[2,256,128], index: 10, kind: output, shape index: {}]
  %s11 = sld [smem:[#allocation0]]
  $region117: #{tpu_custom_call.1} parent=0
    _
  %s13 = ssub.s32 1, %s11
  %s14 = scalar_select 0, %s13, %s11
  $region1: #{tpu_custom_call.1} parent=0
    #allocation5 [shape = 'u8[65536]{0}', space=vmem, size = 0x10000, scoped, tag = 'input window, operand 0']
    #allocation6 [shape = 's32[2]{0}', space=sflag, size = 0x8, scoped, tag = 'scoped memory for tpu_custom_call.1']
    #allocation7 [shape = 's32[2]{0}', space=sflag, size = 0x8, scoped, tag = 'scoped memory for tpu_custom_call.1']
    #allocation8 [shape = 'u8[24576]{0}', space=vmem, size = 0x6000, scoped, tag = 'input window, operand 2']
    #allocation9 [shape = 's32[2]{0}', space=sflag, size = 0x8, scoped, tag = 'scoped memory for tpu_custom_call.1']
    #allocation10 [shape = 'u8[32768]{0}', space=vmem, size = 0x8000, scoped, tag = 'input window, operand 3, single buffered']
    #allocation11 [shape = 'u8[98304]{0}', space=vmem, size = 0x18000, scoped, tag = 'input window, operand 4, single buffered']
    #allocation12 [shape = 's32[1]{0}', space=sflag, size = 0x4, scoped, tag = 'scoped memory for tpu_custom_call.1']
    #allocation13 [shape = 'u8[98304]{0}', space=vmem, size = 0x18000, scoped, tag = 'input window, operand 5, single buffered']
    #allocation14 [shape = 'u8[98304]{0}', space=vmem, size = 0x18000, scoped, tag = 'input window, operand 6, single buffered']
    #allocation15 [shape = 's32[1]{0}', space=sflag, size = 0x4, scoped, tag = 'scoped memory for tpu_custom_call.1']
    #allocation16 [shape = 'u8[98304]{0}', space=vmem, size = 0x18000, scoped, tag = 'input window, operand 7, single buffered']
    #allocation17 [shape = 'u8[65536]{0}', space=vmem, size = 0x10000, scoped, tag = 'output window, operand 0']
    %15 = vsyncpa [#allocation6], 0
    %s16 = scalar_lea.sflag [#allocation6], 1
    %17 = vsyncpa %s16, 0
    %18 = vsyncpa [#allocation9], 0
    %s19 = scalar_lea.sflag [#allocation9], 1
    %20 = vsyncpa %s19, 0
    %21 = vsyncpa [#allocation12], 0
    %22 = vsyncpa [#allocation15], 0
    %23 = vsyncpa [#allocation7], 0
    %s24 = scalar_lea.sflag [#allocation7], 1
    %25 = vsyncpa %s24, 0
    loop: start=0, step=1, limit=6
    $region2: #{tpu_custom_call.1} parent=1 // loop_pre_header
      _
    $region3: #{tpu_custom_call.1} parent=1 // loop_header
      %s27 = sphi 0, %s31
      %p28 = scmp.ge.s32.totalorder %s27, 6
      %s34 = sphi 0, %s46
      %s35 = sphi 0, %s42
      %s36 = sphi 0, %s34
      %s37 = sphi 0, %s35
      %s38 = sphi 0, %s36
      %s39 = sphi 0, %s37
      %s51 = sphi 0, %s53
      %s54 = sphi 0, %s51
      %s55 = sphi 0, %s54
      %s71 = sphi 0, %s55
      %s79 = sphi 0, %s81
      %s82 = sphi 0, %s79
      %s83 = sphi 0, %s82
      %s99 = sphi 0, %s83
      %s107 = sphi 0, %s109
      %s110 = sphi 0, %s107
      %s111 = sphi 0, %s110
      %s127 = sphi 0, %s111
      %s131 = sphi 0, %s131
      %s133 = sphi 0, %s131
      %s134 = sphi 0, %s133
      %s148 = sphi 0, %s134
      %s152 = sphi 0, %s152
      %s154 = sphi 0, %s152
      %s155 = sphi 0, %s154
      %s169 = sphi 0, %s155
      %s173 = sphi 0, %s173
      %s175 = sphi 0, %s173
      %s176 = sphi 0, %s175
      %s190 = sphi 0, %s176
      %s194 = sphi 0, %s194
      %s196 = sphi 0, %s194
      %s197 = sphi 0, %s196
      %s211 = sphi 0, %s197
      %s215 = sphi 0, %s215
      %s217 = sphi 0, %s215
      %s218 = sphi 0, %s217
      %s232 = sphi 0, %s218
      %s236 = sphi 0, %s236
      %s238 = sphi 0, %s236
      %s239 = sphi 0, %s238
      %s253 = sphi 0, %s239
      %s257 = sphi 0, %s257
      %s259 = sphi 0, %s257
      %s260 = sphi 0, %s259
      %s274 = sphi 0, %s260
      %s282 = sphi 0, %s284
      %s285 = sphi 0, %s282
      %s286 = sphi 0, %s285
      %s302 = sphi 0, %s286
    $region4: #{tpu_custom_call.1} parent=1 // loop_header_branch
      %30 = sbr.rel (%p28) target = $region8
    $region5: #{tpu_custom_call.1} parent=1 // loop_body
      %s32 = ssub.s32 %s27, 1
      %s33 = ssub.s32 %s27, 2
      %s40 = sadd.s32 1, %s35
      %p41 = scmp.ge.s32.totalorder %s40, 2
      %s42 = scalar_select %p41, 0, %s40
      %s43 = sadd.s32 1, %s34
      %s44 = scalar_select %p41, %s43, %s34
      %p45 = scmp.ge.s32.totalorder %s44, 2
      %s46 = scalar_select %p45, 0, %s44
      %s47 = ssub.s32 %s34, %s46
      %s48 = ssub.s32 %s35, %s42
      %s49 = sor.u32 %s47, %s48
      %p50 = scmp.eq.s32.totalorder %s49, 0
      %s52 = sadd.s32 %s51, 1
      %s53 = scalar_select %p50, %s51, %s52
      %p56 = pneg %p50
      %p57 = scmp.eq.s32.totalorder %s27, 3
      %p58 = por %p56, %p57
      %p59 = scmp.ne.s32.totalorder %s51, %s54
      %p60 = scmp.eq.s32.totalorder %s27, 0
      %p61 = por %p59, %p60
      %p62 = scmp.ne.s32.totalorder %s51, %s54
      %p63 = scmp.eq.s32.totalorder %s32, 3
      %p64 = por %p62, %p63
      %p65 = scmp.ne.s32.totalorder %s54, %s55
      %p66 = scmp.eq.s32.totalorder %s32, 0
      %p67 = por %p65, %p66
      %p68 = scmp.ne.s32.totalorder %s54, %s55
      %p69 = scmp.eq.s32.totalorder %s33, 3
      %p70 = por %p68, %p69
      %p72 = scmp.ne.s32.totalorder %s55, %s71
      %p73 = scmp.eq.s32.totalorder %s33, 0
      %p74 = por %p72, %p73
      %s75 = ssub.s32 %s34, %s46
      %s76 = ssub.s32 %s35, %s42
      %s77 = sor.u32 %s75, %s76
      %p78 = scmp.eq.s32.totalorder %s77, 0
      %s80 = sadd.s32 %s79, 1
      %s81 = scalar_select %p78, %s79, %s80
      %p84 = pneg %p78
      %p85 = scmp.eq.s32.totalorder %s27, 3
      %p86 = por %p84, %p85
      %p87 = scmp.ne.s32.totalorder %s79, %s82
      %p88 = scmp.eq.s32.totalorder %s27, 0
      %p89 = por %p87, %p88
      %p90 = scmp.ne.s32.totalorder %s79, %s82
      %p91 = scmp.eq.s32.totalorder %s32, 3
      %p92 = por %p90, %p91
      %p93 = scmp.ne.s32.totalorder %s82, %s83
      %p94 = scmp.eq.s32.totalorder %s32, 0
      %p95 = por %p93, %p94
      %p96 = scmp.ne.s32.totalorder %s82, %s83
      %p97 = scmp.eq.s32.totalorder %s33, 3
      %p98 = por %p96, %p97
      %p100 = scmp.ne.s32.totalorder %s83, %s99
      %p101 = scmp.eq.s32.totalorder %s33, 0
      %p102 = por %p100, %p101
      %s103 = ssub.s32 %s34, %s46
      %s104 = ssub.s32 %s35, %s42
      %s105 = sor.u32 %s103, %s104
      %p106 = scmp.eq.s32.totalorder %s105, 0
      %s108 = sadd.s32 %s107, 1
      %s109 = scalar_select %p106, %s107, %s108
      %p112 = pneg %p106
      %p113 = scmp.eq.s32.totalorder %s27, 3
      %p114 = por %p112, %p113
      %p115 = scmp.ne.s32.totalorder %s107, %s110
      %p116 = scmp.eq.s32.totalorder %s27, 0
      %p117 = por %p115, %p116
      %p118 = scmp.ne.s32.totalorder %s107, %s110
      %p119 = scmp.eq.s32.totalorder %s32, 3
      %p120 = por %p118, %p119
      %p121 = scmp.ne.s32.totalorder %s110, %s111
      %p122 = scmp.eq.s32.totalorder %s32, 0
      %p123 = por %p121, %p122
      %p124 = scmp.ne.s32.totalorder %s110, %s111
      %p125 = scmp.eq.s32.totalorder %s33, 3
      %p126 = por %p124, %p125
      %p128 = scmp.ne.s32.totalorder %s111, %s127
      %p129 = scmp.eq.s32.totalorder %s33, 0
      %p130 = por %p128, %p129
      %s132 = sadd.s32 %s131, 1
      %p135 = scmp.eq.s32.totalorder %s27, 3
      %p136 = scmp.ne.s32.totalorder %s131, %s133
      %p137 = scmp.eq.s32.totalorder %s27, 0
      %p138 = por %p136, %p137
      %p139 = scmp.ne.s32.totalorder %s131, %s133
      %p140 = scmp.eq.s32.totalorder %s32, 3
      %p141 = por %p139, %p140
      %p142 = scmp.ne.s32.totalorder %s133, %s134
      %p143 = scmp.eq.s32.totalorder %s32, 0
      %p144 = por %p142, %p143
      %p145 = scmp.ne.s32.totalorder %s133, %s134
      %p146 = scmp.eq.s32.totalorder %s33, 3
      %p147 = por %p145, %p146
      %p149 = scmp.ne.s32.totalorder %s134, %s148
      %p150 = scmp.eq.s32.totalorder %s33, 0
      %p151 = por %p149, %p150
      %s153 = sadd.s32 %s152, 1
      %p156 = scmp.eq.s32.totalorder %s27, 3
      %p157 = scmp.ne.s32.totalorder %s152, %s154
      %p158 = scmp.eq.s32.totalorder %s27, 0
      %p159 = por %p157, %p158
      %p160 = scmp.ne.s32.totalorder %s152, %s154
      %p161 = scmp.eq.s32.totalorder %s32, 3
      %p162 = por %p160, %p161
      %p163 = scmp.ne.s32.totalorder %s154, %s155
      %p164 = scmp.eq.s32.totalorder %s32, 0
      %p165 = por %p163, %p164
      %p166 = scmp.ne.s32.totalorder %s154, %s155
      %p167 = scmp.eq.s32.totalorder %s33, 3
      %p168 = por %p166, %p167
      %p170 = scmp.ne.s32.totalorder %s155, %s169
      %p171 = scmp.eq.s32.totalorder %s33, 0
      %p172 = por %p170, %p171
      %s174 = sadd.s32 %s173, 1
      %p177 = scmp.eq.s32.totalorder %s27, 3
      %p178 = scmp.ne.s32.totalorder %s173, %s175
      %p179 = scmp.eq.s32.totalorder %s27, 0
      %p180 = por %p178, %p179
      %p181 = scmp.ne.s32.totalorder %s173, %s175
      %p182 = scmp.eq.s32.totalorder %s32, 3
      %p183 = por %p181, %p182
      %p184 = scmp.ne.s32.totalorder %s175, %s176
      %p185 = scmp.eq.s32.totalorder %s32, 0
      %p186 = por %p184, %p185
      %p187 = scmp.ne.s32.totalorder %s175, %s176
      %p188 = scmp.eq.s32.totalorder %s33, 3
      %p189 = por %p187, %p188
      %p191 = scmp.ne.s32.totalorder %s176, %s190
      %p192 = scmp.eq.s32.totalorder %s33, 0
      %p193 = por %p191, %p192
      %s195 = sadd.s32 %s194, 1
      %p198 = scmp.eq.s32.totalorder %s27, 3
      %p199 = scmp.ne.s32.totalorder %s194, %s196
      %p200 = scmp.eq.s32.totalorder %s27, 0
      %p201 = por %p199, %p200
      %p202 = scmp.ne.s32.totalorder %s194, %s196
      %p203 = scmp.eq.s32.totalorder %s32, 3
      %p204 = por %p202, %p203
      %p205 = scmp.ne.s32.totalorder %s196, %s197
      %p206 = scmp.eq.s32.totalorder %s32, 0
      %p207 = por %p205, %p206
      %p208 = scmp.ne.s32.totalorder %s196, %s197
      %p209 = scmp.eq.s32.totalorder %s33, 3
      %p210 = por %p208, %p209
      %p212 = scmp.ne.s32.totalorder %s197, %s211
      %p213 = scmp.eq.s32.totalorder %s33, 0
      %p214 = por %p212, %p213
      %s216 = sadd.s32 %s215, 1
      %p219 = scmp.eq.s32.totalorder %s27, 3
      %p220 = scmp.ne.s32.totalorder %s215, %s217
      %p221 = scmp.eq.s32.totalorder %s27, 0
      %p222 = por %p220, %p221
      %p223 = scmp.ne.s32.totalorder %s215, %s217
      %p224 = scmp.eq.s32.totalorder %s32, 3
      %p225 = por %p223, %p224
      %p226 = scmp.ne.s32.totalorder %s217, %s218
      %p227 = scmp.eq.s32.totalorder %s32, 0
      %p228 = por %p226, %p227
      %p229 = scmp.ne.s32.totalorder %s217, %s218
      %p230 = scmp.eq.s32.totalorder %s33, 3
      %p231 = por %p229, %p230
      %p233 = scmp.ne.s32.totalorder %s218, %s232
      %p234 = scmp.eq.s32.totalorder %s33, 0
      %p235 = por %p233, %p234
      %s237 = sadd.s32 %s236, 1
      %p240 = scmp.eq.s32.totalorder %s27, 3
      %p241 = scmp.ne.s32.totalorder %s236, %s238
      %p242 = scmp.eq.s32.totalorder %s27, 0
      %p243 = por %p241, %p242
      %p244 = scmp.ne.s32.totalorder %s236, %s238
      %p245 = scmp.eq.s32.totalorder %s32, 3
      %p246 = por %p244, %p245
      %p247 = scmp.ne.s32.totalorder %s238, %s239
      %p248 = scmp.eq.s32.totalorder %s32, 0
      %p249 = por %p247, %p248
      %p250 = scmp.ne.s32.totalorder %s238, %s239
      %p251 = scmp.eq.s32.totalorder %s33, 3
      %p252 = por %p250, %p251
      %p254 = scmp.ne.s32.totalorder %s239, %s253
      %p255 = scmp.eq.s32.totalorder %s33, 0
      %p256 = por %p254, %p255
      %s258 = sadd.s32 %s257, 1
      %p261 = scmp.eq.s32.totalorder %s27, 3
      %p262 = scmp.ne.s32.totalorder %s257, %s259
      %p263 = scmp.eq.s32.totalorder %s27, 0
      %p264 = por %p262, %p263
      %p265 = scmp.ne.s32.totalorder %s257, %s259
      %p266 = scmp.eq.s32.totalorder %s32, 3
      %p267 = por %p265, %p266
      %p268 = scmp.ne.s32.totalorder %s259, %s260
      %p269 = scmp.eq.s32.totalorder %s32, 0
      %p270 = por %p268, %p269
      %p271 = scmp.ne.s32.totalorder %s259, %s260
      %p272 = scmp.eq.s32.totalorder %s33, 3
      %p273 = por %p271, %p272
      %p275 = scmp.ne.s32.totalorder %s260, %s274
      %p276 = scmp.eq.s32.totalorder %s33, 0
      %p277 = por %p275, %p276
      %s278 = ssub.s32 %s34, %s46
      %s279 = ssub.s32 %s35, %s42
      %s280 = sor.u32 %s278, %s279
      %p281 = scmp.eq.s32.totalorder %s280, 0
      %s283 = sadd.s32 %s282, 1
      %s284 = scalar_select %p281, %s282, %s283
      %p287 = pneg %p281
      %p288 = scmp.eq.s32.totalorder %s27, 3
      %p289 = por %p287, %p288
      %p290 = scmp.ne.s32.totalorder %s282, %s285
      %p291 = scmp.eq.s32.totalorder %s27, 0
      %p292 = por %p290, %p291
      %p293 = scmp.ne.s32.totalorder %s282, %s285
      %p294 = scmp.eq.s32.totalorder %s32, 3
      %p295 = por %p293, %p294
      %p296 = scmp.ne.s32.totalorder %s285, %s286
      %p297 = scmp.eq.s32.totalorder %s32, 0
      %p298 = por %p296, %p297
      %p299 = scmp.ne.s32.totalorder %s285, %s286
      %p300 = scmp.eq.s32.totalorder %s33, 3
      %p301 = por %p299, %p300
      %p303 = scmp.ne.s32.totalorder %s286, %s302
      %p304 = scmp.eq.s32.totalorder %s33, 0
      %p305 = por %p303, %p304
      %p306 = scmp.le.s32.totalorder 1, %s27
      %p307 = scmp.lt.s32.totalorder %s27, 5
      %p308 = pnand %p306, %p307
      %p309 = pneg %p308
      // Predicated region
      $region9: #{tpu_custom_call.1} parent=5 // pred_check
        _
      $region10: #{tpu_custom_call.1} parent=5 // pred_check_branch
        %311 = sbr.rel (%p308) target = $region12
      $region11: #{tpu_custom_call.1} parent=5 // pred_region
        %s312 = ssub.s32 %s27, 1
        // Predicated region
        $region13: #{tpu_custom_call.1} parent=11 // pred_check
          %p313 = pneg %p144
        $region14: #{tpu_custom_call.1} parent=11 // pred_check_branch
          %315 = sbr.rel (%p313) target = $region16
        $region15: #{tpu_custom_call.1} parent=11 // pred_region
          %317 = vsyncadd [#allocation9], 0
          %s318 = sshll.u32 %s3, 4
          %s319 = int_to_ptr.hbm [resolvable:$true] %s318
          %s320 = sshll.u32 [#allocation10], 4
          %s321 = int_to_ptr.vmem [resolvable:$true] %s320
          %326 = dma.hbm_to_vmem [thread:$0]  %s319, 1024, %s321, [#allocation9], 64, 64, 4
        $region16: #{tpu_custom_call.1} parent=11 // pred_fallthru
          _
        // Predicated region
        $region17: #{tpu_custom_call.1} parent=11 // pred_check
          %p327 = pneg %p165
        $region18: #{tpu_custom_call.1} parent=11 // pred_check_branch
          %329 = sbr.rel (%p327) target = $region20
        $region19: #{tpu_custom_call.1} parent=11 // pred_region
          %331 = vsyncadd [#allocation12], 0
          %s332 = sshll.u32 %s4, 4
          %s333 = int_to_ptr.hbm [resolvable:$true] %s332
          %s334 = sshll.u32 [#allocation11], 4
          %s335 = int_to_ptr.vmem [resolvable:$true] %s334
          %340 = dma.hbm_to_vmem [thread:$0]  %s333, 3072, %s335, [#allocation12], 64, 64, 4
        $region20: #{tpu_custom_call.1} parent=11 // pred_fallthru
          _
        // Predicated region
        $region21: #{tpu_custom_call.1} parent=11 // pred_check
          %p341 = pneg %p186
        $region22: #{tpu_custom_call.1} parent=11 // pred_check_branch
          %343 = sbr.rel (%p341) target = $region24
        $region23: #{tpu_custom_call.1} parent=11 // pred_region
          %345 = vsyncadd [#allocation12], 0
          %s346 = sshll.u32 %s5, 4
          %s347 = int_to_ptr.hbm [resolvable:$true] %s346
          %s348 = sshll.u32 [#allocation13], 4
          %s349 = int_to_ptr.vmem [resolvable:$true] %s348
          %354 = dma.hbm_to_vmem [thread:$0]  %s347, 3072, %s349, [#allocation12], 64, 64, 4
        $region24: #{tpu_custom_call.1} parent=11 // pred_fallthru
          _
        // Predicated region
        $region25: #{tpu_custom_call.1} parent=11 // pred_check
          %p355 = pneg %p207
        $region26: #{tpu_custom_call.1} parent=11 // pred_check_branch
          %357 = sbr.rel (%p355) target = $region28
        $region27: #{tpu_custom_call.1} parent=11 // pred_region
          %359 = vsyncadd [#allocation15], 0
          %s360 = sshll.u32 %s6, 4
          %s361 = int_to_ptr.hbm [resolvable:$true] %s360
          %s362 = sshll.u32 [#allocation14], 4
          %s363 = int_to_ptr.vmem [resolvable:$true] %s362
          %368 = dma.hbm_to_vmem [thread:$0]  %s361, 3072, %s363, [#allocation15], 64, 64, 4
        $region28: #{tpu_custom_call.1} parent=11 // pred_fallthru
          _
        // Predicated region
        $region29: #{tpu_custom_call.1} parent=11 // pred_check
          %p369 = pneg %p228
        $region30: #{tpu_custom_call.1} parent=11 // pred_check_branch
          %371 = sbr.rel (%p369) target = $region32
        $region31: #{tpu_custom_call.1} parent=11 // pred_region
          %373 = vsyncadd [#allocation15], 0
          %s374 = sshll.u32 %s7, 4
          %s375 = int_to_ptr.hbm [resolvable:$true] %s374
          %s376 = sshll.u32 [#allocation16], 4
          %s377 = int_to_ptr.vmem [resolvable:$true] %s376
          %382 = dma.hbm_to_vmem [thread:$0]  %s375, 3072, %s377, [#allocation15], 64, 64, 4
        $region32: #{tpu_custom_call.1} parent=11 // pred_fallthru
          _
        // Predicated region
        $region33: #{tpu_custom_call.1} parent=11 // pred_check
          %p383 = pneg %p249
        $region34: #{tpu_custom_call.1} parent=11 // pred_check_branch
          %385 = sbr.rel (%p383) target = $region36
        $region35: #{tpu_custom_call.1} parent=11 // pred_region
          _
        $region36: #{tpu_custom_call.1} parent=11 // pred_fallthru
          _
        // Predicated region
        $region37: #{tpu_custom_call.1} parent=11 // pred_check
          %p386 = pneg %p270
        $region38: #{tpu_custom_call.1} parent=11 // pred_check_branch
          %388 = sbr.rel (%p386) target = $region40
        $region39: #{tpu_custom_call.1} parent=11 // pred_region
          _
        $region40: #{tpu_custom_call.1} parent=11 // pred_fallthru
          _
      $region12: #{tpu_custom_call.1} parent=5 // pred_fallthru
        _
      %p389 = scmp.lt.s32.totalorder %s27, 4
      // Predicated region
      $region41: #{tpu_custom_call.1} parent=5 // pred_check
        %p390 = pneg %p389
      $region42: #{tpu_custom_call.1} parent=5 // pred_check_branch
        %392 = sbr.rel (%p390) target = $region44
      $region43: #{tpu_custom_call.1} parent=5 // pred_region
        // Predicated region
        $region45: #{tpu_custom_call.1} parent=43 // pred_check
          %p393 = pneg %p61
        $region46: #{tpu_custom_call.1} parent=43 // pred_check_branch
          %395 = sbr.rel (%p393) target = $region48
        $region47: #{tpu_custom_call.1} parent=43 // pred_region
          %s396 = sand.u32 %s51, 1
          %s397 = scalar_lea.sflag [#allocation6], %s396
          %s398 = sand.u32 %s51, 1
          %s399 = smul.addr %s398, 64
          %s400 = scalar_lea.vmem [#allocation5], %s399
          %s401 = smul.u32 16, %s35
          %403 = vsyncadd %s397, 0
          %s404 = smul.addr %s34, 32
          %s405 = sadd.s32 %s401, %s404
          %s406 = smul.addr %s405, 4
          %s407 = scalar_lea.hbm %s0, %s406
          %s408 = sshll.u32 %s407, 4
          %s409 = int_to_ptr.hbm [resolvable:$true] %s408
          %s410 = sshll.u32 %s400, 4
          %s411 = int_to_ptr.vmem [resolvable:$true] %s410
          %416 = dma.hbm_to_vmem [thread:$0]  %s409, 1024, %s411, %s397, 64, 64, 4
        $region48: #{tpu_custom_call.1} parent=43 // pred_fallthru
          _
        // Predicated region
        $region49: #{tpu_custom_call.1} parent=43 // pred_check
          %p417 = pneg %p89
        $region50: #{tpu_custom_call.1} parent=43 // pred_check_branch
          %419 = sbr.rel (%p417) target = $region52
        $region51: #{tpu_custom_call.1} parent=43 // pred_region
          %p420 = scmp.lt.s32.totalorder %s34, 1
          %s421 = scalar_select %p420, %s34, 1
          %p422 = scmp.lt.s32.totalorder %s35, 1
          %s423 = scalar_select %p422, %s35, 1
          %s424 = smul.addr %s423, 6
          %s425 = smul.addr %s421, 12
          %s426 = sadd.s32 %s424, %s425
          %s427 = smul.addr %s426, 4
          %s428 = scalar_lea.vmem %s1, %s427
        $region52: #{tpu_custom_call.1} parent=43 // pred_fallthru
          _
        // Predicated region
        $region53: #{tpu_custom_call.1} parent=43 // pred_check
          %p429 = pneg %p117
        $region54: #{tpu_custom_call.1} parent=43 // pred_check_branch
          %431 = sbr.rel (%p429) target = $region56
        $region55: #{tpu_custom_call.1} parent=43 // pred_region
          %s432 = sand.u32 %s27, 1
          %s433 = scalar_lea.sflag [#allocation9], %s432
          %s434 = sand.u32 %s107, 1
          %s435 = smul.addr %s434, 24
          %s436 = scalar_lea.vmem [#allocation8], %s435
          %438 = vsyncadd %s433, 0
          %s439 = smul.addr %s35, 6
          %s440 = smul.addr %s34, 12
          %s441 = sadd.s32 %s439, %s440
          %s442 = smul.addr %s441, 4
          %s443 = scalar_lea.hbm %s2, %s442
          %s444 = sshll.u32 %s443, 4
          %s445 = int_to_ptr.hbm [resolvable:$true] %s444
          %s446 = sshll.u32 %s436, 4
          %s447 = int_to_ptr.vmem [resolvable:$true] %s446
          %452 = dma.hbm_to_vmem [thread:$0]  %s445, 384, %s447, %s433, 64, 64, 4
        $region56: #{tpu_custom_call.1} parent=43 // pred_fallthru
          _
      $region44: #{tpu_custom_call.1} parent=5 // pred_fallthru
        _
      %p453 = scmp.le.s32.totalorder 1, %s27
      %p454 = scmp.lt.s32.totalorder %s27, 5
      %p455 = pnand %p453, %p454
      %p456 = pneg %p455
      // Predicated region
      $region57: #{tpu_custom_call.1} parent=5 // pred_check
        _
      $region58: #{tpu_custom_call.1} parent=5 // pred_check_branch
        %458 = sbr.rel (%p455) target = $region60
      $region59: #{tpu_custom_call.1} parent=5 // pred_region
        %s459 = ssub.s32 %s27, 1
        %s460 = sand.u32 %s54, 1
        %s461 = scalar_lea.sflag [#allocation6], %s460
        %s462 = sand.u32 %s54, 1
        %s463 = smul.addr %s462, 64
        %s464 = scalar_lea.vmem [#allocation5], %s463
        // Predicated region
        $region61: #{tpu_custom_call.1} parent=59 // pred_check
          %p465 = pneg %p67
        $region62: #{tpu_custom_call.1} parent=59 // pred_check_branch
          %467 = sbr.rel (%p465) target = $region64
        $region63: #{tpu_custom_call.1} parent=59 // pred_region
          %469 = dma.done %s461, 1024
        $region64: #{tpu_custom_call.1} parent=59 // pred_fallthru
          _
        %s470 = sand.u32 %s32, 1
        %s471 = scalar_lea.sflag [#allocation9], %s470
        %s472 = sand.u32 %s110, 1
        %s473 = smul.addr %s472, 24
        %s474 = scalar_lea.vmem [#allocation8], %s473
        // Predicated region
        $region65: #{tpu_custom_call.1} parent=59 // pred_check
          %p475 = pneg %p123
        $region66: #{tpu_custom_call.1} parent=59 // pred_check_branch
          %477 = sbr.rel (%p475) target = $region68
        $region67: #{tpu_custom_call.1} parent=59 // pred_region
          %479 = dma.done %s471, 384
        $region68: #{tpu_custom_call.1} parent=59 // pred_fallthru
          _
        // Predicated region
        $region69: #{tpu_custom_call.1} parent=59 // pred_check
          %p480 = pneg %p144
        $region70: #{tpu_custom_call.1} parent=59 // pred_check_branch
          %482 = sbr.rel (%p480) target = $region72
        $region71: #{tpu_custom_call.1} parent=59 // pred_region
          %484 = dma.done [#allocation9], 1024
        $region72: #{tpu_custom_call.1} parent=59 // pred_fallthru
          _
        // Predicated region
        $region73: #{tpu_custom_call.1} parent=59 // pred_check
          %p485 = pneg %p165
        $region74: #{tpu_custom_call.1} parent=59 // pred_check_branch
          %487 = sbr.rel (%p485) target = $region76
        $region75: #{tpu_custom_call.1} parent=59 // pred_region
          %489 = dma.done [#allocation12], 3072
        $region76: #{tpu_custom_call.1} parent=59 // pred_fallthru
          _
        // Predicated region
        $region77: #{tpu_custom_call.1} parent=59 // pred_check
          %p490 = pneg %p186
        $region78: #{tpu_custom_call.1} parent=59 // pred_check_branch
          %492 = sbr.rel (%p490) target = $region80
        $region79: #{tpu_custom_call.1} parent=59 // pred_region
          %494 = dma.done [#allocation12], 3072
        $region80: #{tpu_custom_call.1} parent=59 // pred_fallthru
          _
        // Predicated region
        $region81: #{tpu_custom_call.1} parent=59 // pred_check
          %p495 = pneg %p207
        $region82: #{tpu_custom_call.1} parent=59 // pred_check_branch
          %497 = sbr.rel (%p495) target = $region84
        $region83: #{tpu_custom_call.1} parent=59 // pred_region
          %499 = dma.done [#allocation15], 3072
        $region84: #{tpu_custom_call.1} parent=59 // pred_fallthru
          _
        // Predicated region
        $region85: #{tpu_custom_call.1} parent=59 // pred_check
          %p500 = pneg %p228
        $region86: #{tpu_custom_call.1} parent=59 // pred_check_branch
          %502 = sbr.rel (%p500) target = $region88
        $region87: #{tpu_custom_call.1} parent=59 // pred_region
          %504 = dma.done [#allocation15], 3072
        $region88: #{tpu_custom_call.1} parent=59 // pred_fallthru
          _
        %s505 = sand.u32 %s54, 1
        %s506 = scalar_lea.sflag [#allocation6], %s505
        %s507 = sand.u32 %s54, 1
        %s508 = smul.addr %s507, 64
        %s509 = scalar_lea.vmem [#allocation5], %s508
        %p510 = pneg %p67
        %p511 = pneg %p64
        %p512 = scmp.lt.s32.totalorder %s36, 1
        %s513 = scalar_select %p512, %s36, 1
        %p514 = scmp.lt.s32.totalorder %s37, 1
        %s515 = scalar_select %p514, %s37, 1
        %s516 = smul.addr %s515, 6
        %s517 = smul.addr %s513, 12
        %s518 = sadd.s32 %s516, %s517
        %s519 = smul.addr %s518, 4
        %s520 = scalar_lea.vmem %s1, %s519
        %p521 = pneg %p95
        %p522 = pneg %p92
        %s523 = sand.u32 %s32, 1
        %s524 = scalar_lea.sflag [#allocation9], %s523
        %s525 = sand.u32 %s110, 1
        %s526 = smul.addr %s525, 24
        %s527 = scalar_lea.vmem [#allocation8], %s526
        %p528 = pneg %p123
        %p529 = pneg %p120
        %p530 = pneg %p144
        %p531 = pneg %p141
        %p532 = pneg %p165
        %p533 = pneg %p162
        %p534 = pneg %p186
        %p535 = pneg %p183
        %p536 = pneg %p207
        %p537 = pneg %p204
        %p538 = pneg %p228
        %p539 = pneg %p225
        %p540 = pneg %p249
        %p541 = pneg %p246
        %p542 = pneg %p270
        %p543 = pneg %p267
        %p544 = pneg %p298
        %p545 = pneg %p295
        %s546 = sand.u32 %s285, 1
        %s547 = scalar_lea.sflag [#allocation7], %s546
        %s548 = sand.u32 %s285, 1
        %s549 = smul.addr %s548, 64
        %s550 = scalar_lea.vmem [#allocation17], %s549
        %s551 = smul.u32 16, %s37
        %p552 = scmp.lt.s32.totalorder %s36, 1
        %s553 = scalar_select %p552, %s36, 1
        %p554 = scmp.lt.s32.totalorder %s37, 1
        %s555 = scalar_select %p554, %s37, 1
        %s556 = smul.addr %s555, 6
        %s557 = smul.addr %s553, 12
        %s558 = sadd.s32 %s556, %s557
        %s559 = smul.addr %s558, 4
        %s560 = scalar_lea.vmem %s1, %s559
        %s561 = smul.u32 16, %s37
        %563 = vst [vmem:[#allocation3] sm:$0xf] 0
        %564 = vst [vmem:[#allocation3 + $0x64] sm:$0xf] 0
        %v565 = vld [vmem:[%s464] sm:$0xf]
        %v566 = vld [vmem:[%s464 + $0x4] sm:$0xf]
        %v567 = vld [vmem:[%s464 + $0x8] sm:$0xf]
        %v568 = vld [vmem:[%s464 + $0xc] sm:$0xf]
        %v569 = vld [vmem:[%s464 + $0x10] sm:$0xf]
        %v570 = vld [vmem:[%s464 + $0x14] sm:$0xf]
        %v571 = vld [vmem:[%s464 + $0x18] sm:$0xf]
        %v572 = vld [vmem:[%s464 + $0x1c] sm:$0xf]
        %v573 = vld [vmem:[%s464 + $0x20] sm:$0xf]
        %v574 = vld [vmem:[%s464 + $0x24] sm:$0xf]
        %v575 = vld [vmem:[%s464 + $0x28] sm:$0xf]
        %v576 = vld [vmem:[%s464 + $0x2c] sm:$0xf]
        %v577 = vld [vmem:[%s464 + $0x30] sm:$0xf]
        %v578 = vld [vmem:[%s464 + $0x34] sm:$0xf]
        %v579 = vld [vmem:[%s464 + $0x38] sm:$0xf]
        %v580 = vld [vmem:[%s464 + $0x3c] sm:$0xf]
        %v581 = vld [vmem:[#allocation10] sm:$0xf]
        %v582 = vld [vmem:[#allocation10 + $0x4] sm:$0xf]
        %v583 = vld [vmem:[#allocation10 + $0x8] sm:$0xf]
        %v584 = vld [vmem:[#allocation10 + $0xc] sm:$0xf]
        %v585 = vld [vmem:[#allocation10 + $0x10] sm:$0xf]
        %v586 = vld [vmem:[#allocation10 + $0x14] sm:$0xf]
        %v587 = vld [vmem:[#allocation10 + $0x18] sm:$0xf]
        %v588 = vld [vmem:[#allocation10 + $0x1c] sm:$0xf]
        %v589 = vld [vmem:[#allocation10 + $0x20] sm:$0xf]
        %v590 = vld [vmem:[#allocation10 + $0x24] sm:$0xf]
        %v591 = vld [vmem:[#allocation10 + $0x28] sm:$0xf]
        %v592 = vld [vmem:[#allocation10 + $0x2c] sm:$0xf]
        %v593 = vld [vmem:[#allocation10 + $0x30] sm:$0xf]
        %v594 = vld [vmem:[#allocation10 + $0x34] sm:$0xf]
        %v595 = vld [vmem:[#allocation10 + $0x38] sm:$0xf]
        %v596 = vld [vmem:[#allocation10 + $0x3c] sm:$0xf]
        %v597 = vld [vmem:[%s8] sm:$0x1]
        %v598 = vperm.slane %v597, 0
        %v615 = vunpack.c.l.b16 %v565
        %v616 = vunpack.c.l.b16 %v566
        %v617 = vunpack.c.l.b16 %v567
        %v618 = vunpack.c.l.b16 %v568
        %v619 = vunpack.c.l.b16 %v569
        %v620 = vunpack.c.l.b16 %v570
        %v621 = vunpack.c.l.b16 %v571
        %v622 = vunpack.c.l.b16 %v572
        %v623 = vunpack.c.l.b16 %v573
        %v624 = vunpack.c.l.b16 %v574
        %v625 = vunpack.c.l.b16 %v575
        %v626 = vunpack.c.l.b16 %v576
        %v627 = vunpack.c.l.b16 %v577
        %v628 = vunpack.c.l.b16 %v578
        %v629 = vunpack.c.l.b16 %v579
        %v630 = vunpack.c.l.b16 %v580
        %v631 = vpack.c.b16 %v616, %v615
        %v632 = vpack.c.b16 %v618, %v617
        %v633 = vpack.c.b16 %v620, %v619
        %v634 = vpack.c.b16 %v622, %v621
        %v635 = vpack.c.b16 %v624, %v623
        %v636 = vpack.c.b16 %v626, %v625
        %v637 = vpack.c.b16 %v628, %v627
        %v638 = vpack.c.b16 %v630, %v629
        %v663 = vunpack.c.l.b16 %v581
        %v664 = vunpack.c.l.b16 %v582
        %v665 = vunpack.c.l.b16 %v583
        %v666 = vunpack.c.l.b16 %v584
        %v667 = vunpack.c.l.b16 %v585
        %v668 = vunpack.c.l.b16 %v586
        %v669 = vunpack.c.l.b16 %v587
        %v670 = vunpack.c.l.b16 %v588
        %v671 = vunpack.c.l.b16 %v589
        %v672 = vunpack.c.l.b16 %v590
        %v673 = vunpack.c.l.b16 %v591
        %v674 = vunpack.c.l.b16 %v592
        %v675 = vunpack.c.l.b16 %v593
        %v676 = vunpack.c.l.b16 %v594
        %v677 = vunpack.c.l.b16 %v595
        %v678 = vunpack.c.l.b16 %v596
        %v679 = vpack.c.b16 %v664, %v663
        %v680 = vpack.c.b16 %v666, %v665
        %v681 = vpack.c.b16 %v668, %v667
        %v682 = vpack.c.b16 %v670, %v669
        %v683 = vpack.c.b16 %v672, %v671
        %v684 = vpack.c.b16 %v674, %v673
        %v685 = vpack.c.b16 %v676, %v675
        %v686 = vpack.c.b16 %v678, %v677
        %695 = vmatpush.bf16.msra.mxu0 %v686
        %696 = vmatpush.bf16.msra.mxu0 %v685
        %697 = vmatpush.bf16.msra.mxu0 %v684
        %698 = vmatpush.bf16.msra.mxu0 %v683
        %699 = vmatpush.bf16.msra.mxu0 %v682
        %700 = vmatpush.bf16.msra.mxu0 %v681
        %701 = vmatpush.bf16.msra.mxu0 %v680
        %702 = vmatpush.bf16.msra.mxu0 %v679
        %703 = vmatmul.bf16.gmra.mxu0 %v631
        %v704 = vpop.f32.mrf.mxu0
        %v705 = vadd.f32 %v598, %v704
        %v706 = vpop.f32.mrf.mxu0
        %v707 = vadd.f32 %v598, %v706
        %708 = vmatmul.bf16.gmra.mxu0 %v632
        %v709 = vpop.f32.mrf.mxu0
        %v710 = vadd.f32 %v598, %v709
        %v711 = vpop.f32.mrf.mxu0
        %v712 = vadd.f32 %v598, %v711
        %713 = vmatmul.bf16.gmra.mxu0 %v633
        %v714 = vpop.f32.mrf.mxu0
        %v715 = vadd.f32 %v598, %v714
        %v716 = vpop.f32.mrf.mxu0
        %v717 = vadd.f32 %v598, %v716
        %718 = vmatmul.bf16.gmra.mxu0 %v634
        %v719 = vpop.f32.mrf.mxu0
        %v720 = vadd.f32 %v598, %v719
        %v721 = vpop.f32.mrf.mxu0
        %v722 = vadd.f32 %v598, %v721
        %723 = vmatmul.bf16.gmra.mxu0 %v635
        %v724 = vpop.f32.mrf.mxu0
        %v725 = vadd.f32 %v598, %v724
        %v726 = vpop.f32.mrf.mxu0
        %v727 = vadd.f32 %v598, %v726
        %728 = vmatmul.bf16.gmra.mxu0 %v636
        %v729 = vpop.f32.mrf.mxu0
        %v730 = vadd.f32 %v598, %v729
        %v731 = vpop.f32.mrf.mxu0
        %v732 = vadd.f32 %v598, %v731
        %733 = vmatmul.bf16.gmra.mxu0 %v637
        %v734 = vpop.f32.mrf.mxu0
        %v735 = vadd.f32 %v598, %v734
        %v736 = vpop.f32.mrf.mxu0
        %v737 = vadd.f32 %v598, %v736
        %738 = vmatmul.bf16.gmra.mxu0 %v638
        %v739 = vpop.f32.mrf.mxu0
        %v740 = vadd.f32 %v598, %v739
        %v741 = vpop.f32.mrf.mxu0
        %v742 = vadd.f32 %v598, %v741
        %743 = vdwg.mxu0
        %v744 = vmax.f32 %v705, 0.0
        %v745 = vmax.f32 %v707, 0.0
        %v746 = vmax.f32 %v710, 0.0
        %v747 = vmax.f32 %v712, 0.0
        %v748 = vmax.f32 %v715, 0.0
        %v749 = vmax.f32 %v717, 0.0
        %v750 = vmax.f32 %v720, 0.0
        %v751 = vmax.f32 %v722, 0.0
        %v752 = vmax.f32 %v725, 0.0
        %v753 = vmax.f32 %v727, 0.0
        %v754 = vmax.f32 %v730, 0.0
        %v755 = vmax.f32 %v732, 0.0
        %v756 = vmax.f32 %v735, 0.0
        %v757 = vmax.f32 %v737, 0.0
        %v758 = vmax.f32 %v740, 0.0
        %v759 = vmax.f32 %v742, 0.0
        %v760 = vpack.c.bf16 %v744, %v744
        %v761 = vpack.c.bf16 %v745, %v745
        %v762 = vpack.c.bf16 %v746, %v746
        %v763 = vpack.c.bf16 %v747, %v747
        %v764 = vpack.c.bf16 %v748, %v748
        %v765 = vpack.c.bf16 %v749, %v749
        %v766 = vpack.c.bf16 %v750, %v750
        %v767 = vpack.c.bf16 %v751, %v751
        %v768 = vpack.c.bf16 %v752, %v752
        %v769 = vpack.c.bf16 %v753, %v753
        %v770 = vpack.c.bf16 %v754, %v754
        %v771 = vpack.c.bf16 %v755, %v755
        %v772 = vpack.c.bf16 %v756, %v756
        %v773 = vpack.c.bf16 %v757, %v757
        %v774 = vpack.c.bf16 %v758, %v758
        %v775 = vpack.c.bf16 %v759, %v759
        %776 = vst [vmem:[#allocation2 + $0x18] sm:$0xf] %v760
        %777 = vst [vmem:[#allocation2 + $0x1c] sm:$0xf] %v761
        %778 = vst [vmem:[#allocation2 + $0x20] sm:$0xf] %v762
        %779 = vst [vmem:[#allocation2 + $0x24] sm:$0xf] %v763
        %780 = vst [vmem:[#allocation2 + $0x28] sm:$0xf] %v764
        %781 = vst [vmem:[#allocation2 + $0x2c] sm:$0xf] %v765
        %782 = vst [vmem:[#allocation2 + $0x30] sm:$0xf] %v766
        %783 = vst [vmem:[#allocation2 + $0x34] sm:$0xf] %v767
        %784 = vst [vmem:[#allocation2 + $0x38] sm:$0xf] %v768
        %785 = vst [vmem:[#allocation2 + $0x3c] sm:$0xf] %v769
        %786 = vst [vmem:[#allocation2 + $0x40] sm:$0xf] %v770
        %787 = vst [vmem:[#allocation2 + $0x44] sm:$0xf] %v771
        %788 = vst [vmem:[#allocation2 + $0x48] sm:$0xf] %v772
        %789 = vst [vmem:[#allocation2 + $0x4c] sm:$0xf] %v773
        %790 = vst [vmem:[#allocation2 + $0x50] sm:$0xf] %v774
        %791 = vst [vmem:[#allocation2 + $0x54] sm:$0xf] %v775
        %v792 = vld [vmem:[%s560] sm:$0xf]
        %v793 = vld [vmem:[%s560 + $0x4] sm:$0xf]
        %v794 = vld [vmem:[%s560 + $0x8] sm:$0xf]
        %v795 = vld [vmem:[%s560 + $0xc] sm:$0xf]
        %v796 = vld [vmem:[%s560 + $0x10] sm:$0xf]
        %v797 = vld [vmem:[%s560 + $0x14] sm:$0xf]
        %v798 = vld [vmem:[#allocation10] sm:$0xf]
        %v799 = vld [vmem:[#allocation10 + $0x4] sm:$0xf]
        %v800 = vld [vmem:[#allocation10 + $0x8] sm:$0xf]
        %v801 = vld [vmem:[#allocation10 + $0xc] sm:$0xf]
        %v802 = vld [vmem:[#allocation10 + $0x10] sm:$0xf]
        %v803 = vld [vmem:[#allocation10 + $0x14] sm:$0xf]
        %v804 = vld [vmem:[#allocation10 + $0x18] sm:$0xf]
        %v805 = vld [vmem:[#allocation10 + $0x1c] sm:$0xf]
        %v806 = vld [vmem:[#allocation10 + $0x20] sm:$0xf]
        %v807 = vld [vmem:[#allocation10 + $0x24] sm:$0xf]
        %v808 = vld [vmem:[#allocation10 + $0x28] sm:$0xf]
        %v809 = vld [vmem:[#allocation10 + $0x2c] sm:$0xf]
        %v810 = vld [vmem:[#allocation10 + $0x30] sm:$0xf]
        %v811 = vld [vmem:[#allocation10 + $0x34] sm:$0xf]
        %v812 = vld [vmem:[#allocation10 + $0x38] sm:$0xf]
        %v813 = vld [vmem:[#allocation10 + $0x3c] sm:$0xf]
        %v814 = vld [vmem:[%s8] sm:$0x1]
        %v815 = vperm.slane %v814, 0
        %v822 = vunpack.c.l.b16 %v792
        %v823 = vunpack.c.l.b16 %v793
        %v824 = vunpack.c.l.b16 %v794
        %v825 = vunpack.c.l.b16 %v795
        %v826 = vunpack.c.l.b16 %v796
        %v827 = vunpack.c.l.b16 %v797
        %v828 = vpack.c.b16 %v823, %v822
        %v829 = vpack.c.b16 %v825, %v824
        %v830 = vpack.c.b16 %v827, %v826
        %v850 = vunpack.c.l.b16 %v798
        %v851 = vunpack.c.l.b16 %v799
        %v852 = vunpack.c.l.b16 %v800
        %v853 = vunpack.c.l.b16 %v801
        %v854 = vunpack.c.l.b16 %v802
        %v855 = vunpack.c.l.b16 %v803
        %v856 = vunpack.c.l.b16 %v804
        %v857 = vunpack.c.l.b16 %v805
        %v858 = vunpack.c.l.b16 %v806
        %v859 = vunpack.c.l.b16 %v807
        %v860 = vunpack.c.l.b16 %v808
        %v861 = vunpack.c.l.b16 %v809
        %v862 = vunpack.c.l.b16 %v810
        %v863 = vunpack.c.l.b16 %v811
        %v864 = vunpack.c.l.b16 %v812
        %v865 = vunpack.c.l.b16 %v813
        %v866 = vpack.c.b16 %v851, %v850
        %v867 = vpack.c.b16 %v853, %v852
        %v868 = vpack.c.b16 %v855, %v854
        %v869 = vpack.c.b16 %v857, %v856
        %v870 = vpack.c.b16 %v859, %v858
        %v871 = vpack.c.b16 %v861, %v860
        %v872 = vpack.c.b16 %v863, %v862
        %v873 = vpack.c.b16 %v865, %v864
        %882 = vmatpush.bf16.msra.mxu0 %v873
        %883 = vmatpush.bf16.msra.mxu0 %v872
        %884 = vmatpush.bf16.msra.mxu0 %v871
        %885 = vmatpush.bf16.msra.mxu0 %v870
        %886 = vmatpush.bf16.msra.mxu0 %v869
        %887 = vmatpush.bf16.msra.mxu0 %v868
        %888 = vmatpush.bf16.msra.mxu0 %v867
        %889 = vmatpush.bf16.msra.mxu0 %v866
        %890 = vmatmul.bf16.gmra.mxu0 %v828
        %v891 = vpop.f32.mrf.mxu0
        %v892 = vadd.f32 %v815, %v891
        %v893 = vpop.f32.mrf.mxu0
        %v894 = vadd.f32 %v815, %v893
        %895 = vmatmul.bf16.gmra.mxu0 %v829
        %v896 = vpop.f32.mrf.mxu0
        %v897 = vadd.f32 %v815, %v896
        %v898 = vpop.f32.mrf.mxu0
        %v899 = vadd.f32 %v815, %v898
        %900 = vmatmul.bf16.gmra.mxu0 %v830
        %v901 = vpop.f32.mrf.mxu0
        %v902 = vadd.f32 %v815, %v901
        %v903 = vpop.f32.mrf.mxu0
        %v904 = vadd.f32 %v815, %v903
        %905 = vdwg.mxu0
        %v906 = vmax.f32 %v892, 0.0
        %v907 = vmax.f32 %v894, 0.0
        %v908 = vmax.f32 %v897, 0.0
        %v909 = vmax.f32 %v899, 0.0
        %v910 = vmax.f32 %v902, 0.0
        %v911 = vmax.f32 %v904, 0.0
        %v912 = vpack.c.bf16 %v906, %v906
        %v913 = vpack.c.bf16 %v907, %v907
        %v914 = vpack.c.bf16 %v908, %v908
        %v915 = vpack.c.bf16 %v909, %v909
        %v916 = vpack.c.bf16 %v910, %v910
        %v917 = vpack.c.bf16 %v911, %v911
        %918 = vst [vmem:[#allocation2] sm:$0xf] %v912
        %919 = vst [vmem:[#allocation2 + $0x4] sm:$0xf] %v913
        %920 = vst [vmem:[#allocation2 + $0x8] sm:$0xf] %v914
        %921 = vst [vmem:[#allocation2 + $0xc] sm:$0xf] %v915
        %922 = vst [vmem:[#allocation2 + $0x10] sm:$0xf] %v916
        %923 = vst [vmem:[#allocation2 + $0x14] sm:$0xf] %v917
        %v924 = vld [vmem:[%s474] sm:$0xf]
        %v925 = vld [vmem:[%s474 + $0x4] sm:$0xf]
        %v926 = vld [vmem:[%s474 + $0x8] sm:$0xf]
        %v927 = vld [vmem:[%s474 + $0xc] sm:$0xf]
        %v928 = vld [vmem:[%s474 + $0x10] sm:$0xf]
        %v929 = vld [vmem:[%s474 + $0x14] sm:$0xf]
        %v930 = vld [vmem:[#allocation10] sm:$0xf]
        %v931 = vld [vmem:[#allocation10 + $0x4] sm:$0xf]
        %v932 = vld [vmem:[#allocation10 + $0x8] sm:$0xf]
        %v933 = vld [vmem:[#allocation10 + $0xc] sm:$0xf]
        %v934 = vld [vmem:[#allocation10 + $0x10] sm:$0xf]
        %v935 = vld [vmem:[#allocation10 + $0x14] sm:$0xf]
        %v936 = vld [vmem:[#allocation10 + $0x18] sm:$0xf]
        %v937 = vld [vmem:[#allocation10 + $0x1c] sm:$0xf]
        %v938 = vld [vmem:[#allocation10 + $0x20] sm:$0xf]
        %v939 = vld [vmem:[#allocation10 + $0x24] sm:$0xf]
        %v940 = vld [vmem:[#allocation10 + $0x28] sm:$0xf]
        %v941 = vld [vmem:[#allocation10 + $0x2c] sm:$0xf]
        %v942 = vld [vmem:[#allocation10 + $0x30] sm:$0xf]
        %v943 = vld [vmem:[#allocation10 + $0x34] sm:$0xf]
        %v944 = vld [vmem:[#allocation10 + $0x38] sm:$0xf]
        %v945 = vld [vmem:[#allocation10 + $0x3c] sm:$0xf]
        %v946 = vld [vmem:[%s8] sm:$0x1]
        %v947 = vperm.slane %v946, 0
        %v954 = vunpack.c.l.b16 %v924
        %v955 = vunpack.c.l.b16 %v925
        %v956 = vunpack.c.l.b16 %v926
        %v957 = vunpack.c.l.b16 %v927
        %v958 = vunpack.c.l.b16 %v928
        %v959 = vunpack.c.l.b16 %v929
        %v960 = vpack.c.b16 %v955, %v954
        %v961 = vpack.c.b16 %v957, %v956
        %v962 = vpack.c.b16 %v959, %v958
        %v982 = vunpack.c.l.b16 %v930
        %v983 = vunpack.c.l.b16 %v931
        %v984 = vunpack.c.l.b16 %v932
        %v985 = vunpack.c.l.b16 %v933
        %v986 = vunpack.c.l.b16 %v934
        %v987 = vunpack.c.l.b16 %v935
        %v988 = vunpack.c.l.b16 %v936
        %v989 = vunpack.c.l.b16 %v937
        %v990 = vunpack.c.l.b16 %v938
        %v991 = vunpack.c.l.b16 %v939
        %v992 = vunpack.c.l.b16 %v940
        %v993 = vunpack.c.l.b16 %v941
        %v994 = vunpack.c.l.b16 %v942
        %v995 = vunpack.c.l.b16 %v943
        %v996 = vunpack.c.l.b16 %v944
        %v997 = vunpack.c.l.b16 %v945
        %v998 = vpack.c.b16 %v983, %v982
        %v999 = vpack.c.b16 %v985, %v984
        %v1000 = vpack.c.b16 %v987, %v986
        %v1001 = vpack.c.b16 %v989, %v988
        %v1002 = vpack.c.b16 %v991, %v990
        %v1003 = vpack.c.b16 %v993, %v992
        %v1004 = vpack.c.b16 %v995, %v994
        %v1005 = vpack.c.b16 %v997, %v996
        %1014 = vmatpush.bf16.msra.mxu0 %v1005
        %1015 = vmatpush.bf16.msra.mxu0 %v1004
        %1016 = vmatpush.bf16.msra.mxu0 %v1003
        %1017 = vmatpush.bf16.msra.mxu0 %v1002
        %1018 = vmatpush.bf16.msra.mxu0 %v1001
        %1019 = vmatpush.bf16.msra.mxu0 %v1000
        %1020 = vmatpush.bf16.msra.mxu0 %v999
        %1021 = vmatpush.bf16.msra.mxu0 %v998
        %1022 = vmatmul.bf16.gmra.mxu0 %v960
        %v1023 = vpop.f32.mrf.mxu0
        %v1024 = vadd.f32 %v947, %v1023
        %v1025 = vpop.f32.mrf.mxu0
        %v1026 = vadd.f32 %v947, %v1025
        %1027 = vmatmul.bf16.gmra.mxu0 %v961
        %v1028 = vpop.f32.mrf.mxu0
        %v1029 = vadd.f32 %v947, %v1028
        %v1030 = vpop.f32.mrf.mxu0
        %v1031 = vadd.f32 %v947, %v1030
        %1032 = vmatmul.bf16.gmra.mxu0 %v962
        %v1033 = vpop.f32.mrf.mxu0
        %v1034 = vadd.f32 %v947, %v1033
        %v1035 = vpop.f32.mrf.mxu0
        %v1036 = vadd.f32 %v947, %v1035
        %1037 = vdwg.mxu0
        %v1038 = vmax.f32 %v1024, 0.0
        %v1039 = vmax.f32 %v1026, 0.0
        %v1040 = vmax.f32 %v1029, 0.0
        %v1041 = vmax.f32 %v1031, 0.0
        %v1042 = vmax.f32 %v1034, 0.0
        %v1043 = vmax.f32 %v1036, 0.0
        %v1044 = vpack.c.bf16 %v1038, %v1038
        %v1045 = vpack.c.bf16 %v1039, %v1039
        %v1046 = vpack.c.bf16 %v1040, %v1040
        %v1047 = vpack.c.bf16 %v1041, %v1041
        %v1048 = vpack.c.bf16 %v1042, %v1042
        %v1049 = vpack.c.bf16 %v1043, %v1043
        %1050 = vst [vmem:[#allocation2 + $0x58] sm:$0xf] %v1044
        %1051 = vst [vmem:[#allocation2 + $0x5c] sm:$0xf] %v1045
        %1052 = vst [vmem:[#allocation2 + $0x60] sm:$0xf] %v1046
        %1053 = vst [vmem:[#allocation2 + $0x64] sm:$0xf] %v1047
        %1054 = vst [vmem:[#allocation2 + $0x68] sm:$0xf] %v1048
        %1055 = vst [vmem:[#allocation2 + $0x6c] sm:$0xf] %v1049
        %p1056 = scmp.eq.s32.totalorder %s37, 0
        // Predicated region
        $region89: #{tpu_custom_call.1} parent=59 // pred_check
          %p1057 = pneg %p1056
        $region90: #{tpu_custom_call.1} parent=59 // pred_check_branch
          %1059 = sbr.rel (%p1057) target = $region92
        $region91: #{tpu_custom_call.1} parent=59 // pred_region
          %1060 = vst [vmem:[#allocation2] sm:$0xf] 0
          %1061 = vst [vmem:[#allocation2 + $0x4] sm:$0xf] 0
          %1062 = vst [vmem:[#allocation2 + $0x8] sm:$0xf] 0
          %1063 = vst [vmem:[#allocation2 + $0xc] sm:$0xf] 0
          %1064 = vst [vmem:[#allocation2 + $0x10] sm:$0xf] 0
          %1065 = vst [vmem:[#allocation2 + $0x14] sm:$0xf] 0
        $region92: #{tpu_custom_call.1} parent=59 // pred_fallthru
          _
        %p1066 = scmp.eq.s32.totalorder %s37, 1
        // Predicated region
        $region93: #{tpu_custom_call.1} parent=59 // pred_check
          %p1067 = pneg %p1066
        $region94: #{tpu_custom_call.1} parent=59 // pred_check_branch
          %1069 = sbr.rel (%p1067) target = $region96
        $region95: #{tpu_custom_call.1} parent=59 // pred_region
          %1070 = vst [vmem:[#allocation2 + $0x58] sm:$0xf] 0
          %1071 = vst [vmem:[#allocation2 + $0x5c] sm:$0xf] 0
          %1072 = vst [vmem:[#allocation2 + $0x60] sm:$0xf] 0
          %1073 = vst [vmem:[#allocation2 + $0x64] sm:$0xf] 0
          %1074 = vst [vmem:[#allocation2 + $0x68] sm:$0xf] 0
          %1075 = vst [vmem:[#allocation2 + $0x6c] sm:$0xf] 0
        $region96: #{tpu_custom_call.1} parent=59 // pred_fallthru
          _
        %v1076 = vld [vmem:[%s9] sm:$0xf]
        %v1077 = vld [vmem:[%s9 + $0x4] sm:$0xf]
        %v1078 = vld [vmem:[%s9 + $0x8] sm:$0xf]
        %v1079 = vld [vmem:[%s9 + $0xc] sm:$0xf]
        %v1080 = vld [vmem:[%s9 + $0x10] sm:$0xf]
        %v1081 = vld [vmem:[%s9 + $0x14] sm:$0xf]
        %v1082 = vld [vmem:[%s9 + $0x18] sm:$0xf]
        %v1083 = vld [vmem:[%s9 + $0x1c] sm:$0xf]
        %v1084 = vld [vmem:[%s9 + $0x20] sm:$0xf]
        %v1085 = vld [vmem:[%s9 + $0x24] sm:$0xf]
        %v1086 = vld [vmem:[%s9 + $0x28] sm:$0xf]
        %v1087 = vld [vmem:[%s9 + $0x2c] sm:$0xf]
        %v1088 = vld [vmem:[%s9 + $0x30] sm:$0xf]
        %v1089 = vld [vmem:[%s9 + $0x34] sm:$0xf]
        %v1090 = vld [vmem:[%s9 + $0x38] sm:$0xf]
        %v1091 = vld [vmem:[%s9 + $0x3c] sm:$0xf]
        %v1092 = vld [vmem:[%s9 + $0x40] sm:$0xf]
        %v1093 = vld [vmem:[%s9 + $0x44] sm:$0xf]
        %v1094 = vld [vmem:[%s9 + $0x48] sm:$0xf]
        %v1095 = vld [vmem:[%s9 + $0x4c] sm:$0xf]
        %v1096 = vld [vmem:[%s9 + $0x50] sm:$0xf]
        %v1097 = vld [vmem:[%s9 + $0x54] sm:$0xf]
        %v1098 = vld [vmem:[%s9 + $0x58] sm:$0xf]
        %v1099 = vld [vmem:[%s9 + $0x5c] sm:$0xf]
        %v1100 = vld [vmem:[#allocation2] sm:$0xf]
        %v1101 = vld [vmem:[#allocation2 + $0x4] sm:$0xf]
        %v1102 = vld [vmem:[#allocation2 + $0x8] sm:$0xf]
        %v1103 = vld [vmem:[#allocation2 + $0xc] sm:$0xf]
        %v1104 = vld [vmem:[#allocation2 + $0x10] sm:$0xf]
        %v1105 = vld [vmem:[#allocation2 + $0x14] sm:$0xf]
        %v1106 = vld [vmem:[#allocation2 + $0x18] sm:$0xf]
        %v1107 = vld [vmem:[#allocation2 + $0x1c] sm:$0xf]
        %v1108 = vld [vmem:[#allocation2 + $0x20] sm:$0xf]
        %v1109 = vld [vmem:[#allocation2 + $0x24] sm:$0xf]
        %v1110 = vld [vmem:[#allocation2 + $0x28] sm:$0xf]
        %v1111 = vld [vmem:[#allocation2 + $0x2c] sm:$0xf]
        %v1112 = vld [vmem:[#allocation2 + $0x30] sm:$0xf]
        %v1113 = vld [vmem:[#allocation2 + $0x34] sm:$0xf]
        %v1114 = vld [vmem:[#allocation2 + $0x38] sm:$0xf]
        %v1115 = vld [vmem:[#allocation2 + $0x3c] sm:$0xf]
        %v1116 = vld [vmem:[#allocation2 + $0x40] sm:$0xf]
        %v1117 = vld [vmem:[#allocation2 + $0x44] sm:$0xf]
        %v1118 = vld [vmem:[#allocation2 + $0x48] sm:$0xf]
        %v1119 = vld [vmem:[#allocation2 + $0x4c] sm:$0xf]
        %v1120 = vld [vmem:[#allocation2 + $0x50] sm:$0xf]
        %v1121 = vld [vmem:[#allocation2 + $0x54] sm:$0xf]
        %v1122 = vld [vmem:[#allocation2 + $0x58] sm:$0xf]
        %v1123 = vld [vmem:[#allocation2 + $0x5c] sm:$0xf]
        %v1124 = vld [vmem:[#allocation11] sm:$0xf]
        %v1125 = vld [vmem:[#allocation11 + $0x4] sm:$0xf]
        %v1126 = vld [vmem:[#allocation11 + $0x8] sm:$0xf]
        %v1127 = vld [vmem:[#allocation11 + $0xc] sm:$0xf]
        %v1128 = vld [vmem:[#allocation11 + $0x10] sm:$0xf]
        %v1129 = vld [vmem:[#allocation11 + $0x14] sm:$0xf]
        %v1130 = vld [vmem:[#allocation11 + $0x18] sm:$0xf]
        %v1131 = vld [vmem:[#allocation11 + $0x1c] sm:$0xf]
        %v1132 = vld [vmem:[#allocation11 + $0x20] sm:$0xf]
        %v1133 = vld [vmem:[#allocation11 + $0x24] sm:$0xf]
        %v1134 = vld [vmem:[#allocation11 + $0x28] sm:$0xf]
        %v1135 = vld [vmem:[#allocation11 + $0x2c] sm:$0xf]
        %v1136 = vld [vmem:[#allocation11 + $0x30] sm:$0xf]
        %v1137 = vld [vmem:[#allocation11 + $0x34] sm:$0xf]
        %v1138 = vld [vmem:[#allocation11 + $0x38] sm:$0xf]
        %v1139 = vld [vmem:[#allocation11 + $0x3c] sm:$0xf]
        %v1140 = vld [vmem:[#allocation2 + $0x60] sm:$0xf]
        %v1141 = vld [vmem:[#allocation2 + $0x64] sm:$0xf]
        %v1142 = vld [vmem:[#allocation11 + $0x40] sm:$0xf]
        %v1143 = vld [vmem:[#allocation11 + $0x44] sm:$0xf]
        %v1144 = vld [vmem:[#allocation11 + $0x48] sm:$0xf]
        %v1145 = vld [vmem:[#allocation11 + $0x4c] sm:$0xf]
        %v1146 = vld [vmem:[#allocation11 + $0x50] sm:$0xf]
        %v1147 = vld [vmem:[#allocation11 + $0x54] sm:$0xf]
        %v1148 = vld [vmem:[#allocation11 + $0x58] sm:$0xf]
        %v1149 = vld [vmem:[#allocation11 + $0x5c] sm:$0xf]
        %v1150 = vld [vmem:[#allocation11 + $0x60] sm:$0xf]
        %v1151 = vld [vmem:[#allocation11 + $0x64] sm:$0xf]
        %v1152 = vld [vmem:[#allocation11 + $0x68] sm:$0xf]
        %v1153 = vld [vmem:[#allocation11 + $0x6c] sm:$0xf]
        %v1154 = vld [vmem:[#allocation11 + $0x70] sm:$0xf]
        %v1155 = vld [vmem:[#allocation11 + $0x74] sm:$0xf]
        %v1156 = vld [vmem:[#allocation11 + $0x78] sm:$0xf]
        %v1157 = vld [vmem:[#allocation11 + $0x7c] sm:$0xf]
        %v1182 = vunpack.c.l.b16 %v1102
        %v1183 = vunpack.c.l.b16 %v1103
        %v1184 = vunpack.c.l.b16 %v1104
        %v1185 = vunpack.c.l.b16 %v1105
        %v1186 = vunpack.c.l.b16 %v1106
        %v1187 = vunpack.c.l.b16 %v1107
        %v1188 = vunpack.c.l.b16 %v1108
        %v1189 = vunpack.c.l.b16 %v1109
        %v1190 = vunpack.c.l.b16 %v1110
        %v1191 = vunpack.c.l.b16 %v1111
        %v1192 = vunpack.c.l.b16 %v1112
        %v1193 = vunpack.c.l.b16 %v1113
        %v1194 = vunpack.c.l.b16 %v1114
        %v1195 = vunpack.c.l.b16 %v1115
        %v1196 = vunpack.c.l.b16 %v1116
        %v1197 = vunpack.c.l.b16 %v1117
        %v1198 = vunpack.c.l.b16 %v1118
        %v1199 = vunpack.c.l.b16 %v1119
        %v1200 = vunpack.c.l.b16 %v1120
        %v1201 = vunpack.c.l.b16 %v1121
        %v1202 = vunpack.c.l.b16 %v1122
        %v1203 = vunpack.c.l.b16 %v1123
        %v1204 = vunpack.c.l.b16 %v1140
        %v1205 = vunpack.c.l.b16 %v1141
        %v1206 = vpack.c.b16 %v1183, %v1182
        %v1207 = vpack.c.b16 %v1185, %v1184
        %v1208 = vpack.c.b16 %v1187, %v1186
        %v1209 = vpack.c.b16 %v1189, %v1188
        %v1210 = vpack.c.b16 %v1191, %v1190
        %v1211 = vpack.c.b16 %v1193, %v1192
        %v1212 = vpack.c.b16 %v1195, %v1194
        %v1213 = vpack.c.b16 %v1197, %v1196
        %v1214 = vpack.c.b16 %v1199, %v1198
        %v1215 = vpack.c.b16 %v1201, %v1200
        %v1216 = vpack.c.b16 %v1203, %v1202
        %v1217 = vpack.c.b16 %v1205, %v1204
        %v1246 = vunpack.c.l.b16 %v1142
        %v1247 = vunpack.c.l.b16 %v1143
        %v1248 = vunpack.c.l.b16 %v1144
        %v1249 = vunpack.c.l.b16 %v1145
        %v1250 = vunpack.c.l.b16 %v1146
        %v1251 = vunpack.c.l.b16 %v1147
        %v1252 = vunpack.c.l.b16 %v1148
        %v1253 = vunpack.c.l.b16 %v1149
        %v1254 = vunpack.c.l.b16 %v1150
        %v1255 = vunpack.c.l.b16 %v1151
        %v1256 = vunpack.c.l.b16 %v1152
        %v1257 = vunpack.c.l.b16 %v1153
        %v1258 = vunpack.c.l.b16 %v1154
        %v1259 = vunpack.c.l.b16 %v1155
        %v1260 = vunpack.c.l.b16 %v1156
        %v1261 = vunpack.c.l.b16 %v1157
        %v1262 = vpack.c.b16 %v1247, %v1246
        %v1263 = vpack.c.b16 %v1249, %v1248
        %v1264 = vpack.c.b16 %v1251, %v1250
        %v1265 = vpack.c.b16 %v1253, %v1252
        %v1266 = vpack.c.b16 %v1255, %v1254
        %v1267 = vpack.c.b16 %v1257, %v1256
        %v1268 = vpack.c.b16 %v1259, %v1258
        %v1269 = vpack.c.b16 %v1261, %v1260
        %1278 = vmatpush.bf16.msra.mxu0 %v1269
        %1279 = vmatpush.bf16.msra.mxu0 %v1268
        %1280 = vmatpush.bf16.msra.mxu0 %v1267
        %1281 = vmatpush.bf16.msra.mxu0 %v1266
        %1282 = vmatpush.bf16.msra.mxu0 %v1265
        %1283 = vmatpush.bf16.msra.mxu0 %v1264
        %1284 = vmatpush.bf16.msra.mxu0 %v1263
        %1285 = vmatpush.bf16.msra.mxu0 %v1262
        %1286 = vmatmul.bf16.gmra.mxu0 %v1206
        %v1287 = vpop.f32.mrf.mxu0
        %v1288 = vadd.f32 0.0, %v1287
        %v1289 = vpop.f32.mrf.mxu0
        %v1290 = vadd.f32 0.0, %v1289
        %1291 = vmatmul.bf16.gmra.mxu0 %v1207
        %v1292 = vpop.f32.mrf.mxu0
        %v1293 = vadd.f32 0.0, %v1292
        %v1294 = vpop.f32.mrf.mxu0
        %v1295 = vadd.f32 0.0, %v1294
        %1296 = vmatmul.bf16.gmra.mxu0 %v1208
        %v1297 = vpop.f32.mrf.mxu0
        %v1298 = vadd.f32 0.0, %v1297
        %v1299 = vpop.f32.mrf.mxu0
        %v1300 = vadd.f32 0.0, %v1299
        %1301 = vmatmul.bf16.gmra.mxu0 %v1209
        %v1302 = vpop.f32.mrf.mxu0
        %v1303 = vadd.f32 0.0, %v1302
        %v1304 = vpop.f32.mrf.mxu0
        %v1305 = vadd.f32 0.0, %v1304
        %1306 = vmatmul.bf16.gmra.mxu0 %v1210
        %v1307 = vpop.f32.mrf.mxu0
        %v1308 = vadd.f32 0.0, %v1307
        %v1309 = vpop.f32.mrf.mxu0
        %v1310 = vadd.f32 0.0, %v1309
        %1311 = vmatmul.bf16.gmra.mxu0 %v1211
        %v1312 = vpop.f32.mrf.mxu0
        %v1313 = vadd.f32 0.0, %v1312
        %v1314 = vpop.f32.mrf.mxu0
        %v1315 = vadd.f32 0.0, %v1314
        %1316 = vmatmul.bf16.gmra.mxu0 %v1212
        %v1317 = vpop.f32.mrf.mxu0
        %v1318 = vadd.f32 0.0, %v1317
        %v1319 = vpop.f32.mrf.mxu0
        %v1320 = vadd.f32 0.0, %v1319
        %1321 = vmatmul.bf16.gmra.mxu0 %v1213
        %v1322 = vpop.f32.mrf.mxu0
        %v1323 = vadd.f32 0.0, %v1322
        %v1324 = vpop.f32.mrf.mxu0
        %v1325 = vadd.f32 0.0, %v1324
        %1326 = vmatmul.bf16.gmra.mxu0 %v1214
        %v1327 = vpop.f32.mrf.mxu0
        %v1328 = vadd.f32 0.0, %v1327
        %v1329 = vpop.f32.mrf.mxu0
        %v1330 = vadd.f32 0.0, %v1329
        %1331 = vmatmul.bf16.gmra.mxu0 %v1215
        %v1332 = vpop.f32.mrf.mxu0
        %v1333 = vadd.f32 0.0, %v1332
        %v1334 = vpop.f32.mrf.mxu0
        %v1335 = vadd.f32 0.0, %v1334
        %1336 = vmatmul.bf16.gmra.mxu0 %v1216
        %v1337 = vpop.f32.mrf.mxu0
        %v1338 = vadd.f32 0.0, %v1337
        %v1339 = vpop.f32.mrf.mxu0
        %v1340 = vadd.f32 0.0, %v1339
        %1341 = vmatmul.bf16.gmra.mxu0 %v1217
        %v1342 = vpop.f32.mrf.mxu0
        %v1343 = vadd.f32 0.0, %v1342
        %v1344 = vpop.f32.mrf.mxu0
        %v1345 = vadd.f32 0.0, %v1344
        %1346 = vdwg.mxu0
        %v1349 = vunpack.c.l.b16 %v1100
        %v1350 = vunpack.c.l.b16 %v1101
        %v1351 = vpack.c.b16 %v1350, %v1349
        %v1369 = vunpack.c.l.b16 %v1124
        %v1370 = vunpack.c.l.b16 %v1125
        %v1371 = vunpack.c.l.b16 %v1126
        %v1372 = vunpack.c.l.b16 %v1127
        %v1373 = vunpack.c.l.b16 %v1128
        %v1374 = vunpack.c.l.b16 %v1129
        %v1375 = vunpack.c.l.b16 %v1130
        %v1376 = vunpack.c.l.b16 %v1131
        %v1377 = vunpack.c.l.b16 %v1132
        %v1378 = vunpack.c.l.b16 %v1133
        %v1379 = vunpack.c.l.b16 %v1134
        %v1380 = vunpack.c.l.b16 %v1135
        %v1381 = vunpack.c.l.b16 %v1136
        %v1382 = vunpack.c.l.b16 %v1137
        %v1383 = vunpack.c.l.b16 %v1138
        %v1384 = vunpack.c.l.b16 %v1139
        %v1385 = vpack.c.b16 %v1370, %v1369
        %v1386 = vpack.c.b16 %v1372, %v1371
        %v1387 = vpack.c.b16 %v1374, %v1373
        %v1388 = vpack.c.b16 %v1376, %v1375
        %v1389 = vpack.c.b16 %v1378, %v1377
        %v1390 = vpack.c.b16 %v1380, %v1379
        %v1391 = vpack.c.b16 %v1382, %v1381
        %v1392 = vpack.c.b16 %v1384, %v1383
        %1401 = vmatpush.bf16.msra.mxu0 %v1392
        %1402 = vmatpush.bf16.msra.mxu0 %v1391
        %1403 = vmatpush.bf16.msra.mxu0 %v1390
        %1404 = vmatpush.bf16.msra.mxu0 %v1389
        %1405 = vmatpush.bf16.msra.mxu0 %v1388
        %1406 = vmatpush.bf16.msra.mxu0 %v1387
        %1407 = vmatpush.bf16.msra.mxu0 %v1386
        %1408 = vmatpush.bf16.msra.mxu0 %v1385
        %1409 = vmatmul.bf16.gmra.mxu0 %v1351
        %v1410 = vpop.f32.mrf.mxu0
        %v1411 = vadd.f32 %v1288, %v1410
        %v1412 = vpop.f32.mrf.mxu0
        %v1413 = vadd.f32 %v1290, %v1412
        %1414 = vmatmul.bf16.gmra.mxu0 %v1206
        %v1415 = vpop.f32.mrf.mxu0
        %v1416 = vadd.f32 %v1293, %v1415
        %v1417 = vpop.f32.mrf.mxu0
        %v1418 = vadd.f32 %v1295, %v1417
        %1419 = vmatmul.bf16.gmra.mxu0 %v1207
        %v1420 = vpop.f32.mrf.mxu0
        %v1421 = vadd.f32 %v1298, %v1420
        %v1422 = vpop.f32.mrf.mxu0
        %v1423 = vadd.f32 %v1300, %v1422
        %1424 = vmatmul.bf16.gmra.mxu0 %v1208
        %v1425 = vpop.f32.mrf.mxu0
        %v1426 = vadd.f32 %v1303, %v1425
        %v1427 = vpop.f32.mrf.mxu0
        %v1428 = vadd.f32 %v1305, %v1427
        %1429 = vmatmul.bf16.gmra.mxu0 %v1209
        %v1430 = vpop.f32.mrf.mxu0
        %v1431 = vadd.f32 %v1308, %v1430
        %v1432 = vpop.f32.mrf.mxu0
        %v1433 = vadd.f32 %v1310, %v1432
        %1434 = vmatmul.bf16.gmra.mxu0 %v1210
        %v1435 = vpop.f32.mrf.mxu0
        %v1436 = vadd.f32 %v1313, %v1435
        %v1437 = vpop.f32.mrf.mxu0
        %v1438 = vadd.f32 %v1315, %v1437
        %1439 = vmatmul.bf16.gmra.mxu0 %v1211
        %v1440 = vpop.f32.mrf.mxu0
        %v1441 = vadd.f32 %v1318, %v1440
        %v1442 = vpop.f32.mrf.mxu0
        %v1443 = vadd.f32 %v1320, %v1442
        %1444 = vmatmul.bf16.gmra.mxu0 %v1212
        %v1445 = vpop.f32.mrf.mxu0
        %v1446 = vadd.f32 %v1323, %v1445
        %v1447 = vpop.f32.mrf.mxu0
        %v1448 = vadd.f32 %v1325, %v1447
        %1449 = vmatmul.bf16.gmra.mxu0 %v1213
        %v1450 = vpop.f32.mrf.mxu0
        %v1451 = vadd.f32 %v1328, %v1450
        %v1452 = vpop.f32.mrf.mxu0
        %v1453 = vadd.f32 %v1330, %v1452
        %1454 = vmatmul.bf16.gmra.mxu0 %v1214
        %v1455 = vpop.f32.mrf.mxu0
        %v1456 = vadd.f32 %v1333, %v1455
        %v1457 = vpop.f32.mrf.mxu0
        %v1458 = vadd.f32 %v1335, %v1457
        %1459 = vmatmul.bf16.gmra.mxu0 %v1215
        %v1460 = vpop.f32.mrf.mxu0
        %v1461 = vadd.f32 %v1338, %v1460
        %v1462 = vpop.f32.mrf.mxu0
        %v1463 = vadd.f32 %v1340, %v1462
        %1464 = vmatmul.bf16.gmra.mxu0 %v1216
        %v1465 = vpop.f32.mrf.mxu0
        %v1466 = vadd.f32 %v1343, %v1465
        %v1467 = vpop.f32.mrf.mxu0
        %v1468 = vadd.f32 %v1345, %v1467
        %1469 = vdwg.mxu0
        %v1470 = vld [vmem:[#allocation2 + $0x10] sm:$0xf]
        %v1471 = vld [vmem:[#allocation2 + $0x14] sm:$0xf]
        %v1472 = vld [vmem:[#allocation2 + $0x18] sm:$0xf]
        %v1473 = vld [vmem:[#allocation2 + $0x1c] sm:$0xf]
        %v1474 = vld [vmem:[#allocation2 + $0x20] sm:$0xf]
        %v1475 = vld [vmem:[#allocation2 + $0x24] sm:$0xf]
        %v1476 = vld [vmem:[#allocation2 + $0x28] sm:$0xf]
        %v1477 = vld [vmem:[#allocation2 + $0x2c] sm:$0xf]
        %v1478 = vld [vmem:[#allocation2 + $0x30] sm:$0xf]
        %v1479 = vld [vmem:[#allocation2 + $0x34] sm:$0xf]
        %v1480 = vld [vmem:[#allocation2 + $0x38] sm:$0xf]
        %v1481 = vld [vmem:[#allocation2 + $0x3c] sm:$0xf]
        %v1482 = vld [vmem:[#allocation2 + $0x40] sm:$0xf]
        %v1483 = vld [vmem:[#allocation2 + $0x44] sm:$0xf]
        %v1484 = vld [vmem:[#allocation2 + $0x48] sm:$0xf]
        %v1485 = vld [vmem:[#allocation2 + $0x4c] sm:$0xf]
        %v1486 = vld [vmem:[#allocation2 + $0x50] sm:$0xf]
        %v1487 = vld [vmem:[#allocation2 + $0x54] sm:$0xf]
        %v1488 = vld [vmem:[#allocation2 + $0x58] sm:$0xf]
        %v1489 = vld [vmem:[#allocation2 + $0x5c] sm:$0xf]
        %v1490 = vld [vmem:[#allocation2 + $0x60] sm:$0xf]
        %v1491 = vld [vmem:[#allocation2 + $0x64] sm:$0xf]
        %v1492 = vld [vmem:[#allocation2 + $0x68] sm:$0xf]
        %v1493 = vld [vmem:[#allocation2 + $0x6c] sm:$0xf]
        %v1494 = vld [vmem:[#allocation11 + $0x80] sm:$0xf]
        %v1495 = vld [vmem:[#allocation11 + $0x84] sm:$0xf]
        %v1496 = vld [vmem:[#allocation11 + $0x88] sm:$0xf]
        %v1497 = vld [vmem:[#allocation11 + $0x8c] sm:$0xf]
        %v1498 = vld [vmem:[#allocation11 + $0x90] sm:$0xf]
        %v1499 = vld [vmem:[#allocation11 + $0x94] sm:$0xf]
        %v1500 = vld [vmem:[#allocation11 + $0x98] sm:$0xf]
        %v1501 = vld [vmem:[#allocation11 + $0x9c] sm:$0xf]
        %v1502 = vld [vmem:[#allocation11 + $0xa0] sm:$0xf]
        %v1503 = vld [vmem:[#allocation11 + $0xa4] sm:$0xf]
        %v1504 = vld [vmem:[#allocation11 + $0xa8] sm:$0xf]
        %v1505 = vld [vmem:[#allocation11 + $0xac] sm:$0xf]
        %v1506 = vld [vmem:[#allocation11 + $0xb0] sm:$0xf]
        %v1507 = vld [vmem:[#allocation11 + $0xb4] sm:$0xf]
        %v1508 = vld [vmem:[#allocation11 + $0xb8] sm:$0xf]
        %v1509 = vld [vmem:[#allocation11 + $0xbc] sm:$0xf]
        %v1534 = vunpack.c.l.b16 %v1470
        %v1535 = vunpack.c.l.b16 %v1471
        %v1536 = vunpack.c.l.b16 %v1472
        %v1537 = vunpack.c.l.b16 %v1473
        %v1538 = vunpack.c.l.b16 %v1474
        %v1539 = vunpack.c.l.b16 %v1475
        %v1540 = vunpack.c.l.b16 %v1476
        %v1541 = vunpack.c.l.b16 %v1477
        %v1542 = vunpack.c.l.b16 %v1478
        %v1543 = vunpack.c.l.b16 %v1479
        %v1544 = vunpack.c.l.b16 %v1480
        %v1545 = vunpack.c.l.b16 %v1481
        %v1546 = vunpack.c.l.b16 %v1482
        %v1547 = vunpack.c.l.b16 %v1483
        %v1548 = vunpack.c.l.b16 %v1484
        %v1549 = vunpack.c.l.b16 %v1485
        %v1550 = vunpack.c.l.b16 %v1486
        %v1551 = vunpack.c.l.b16 %v1487
        %v1552 = vunpack.c.l.b16 %v1488
        %v1553 = vunpack.c.l.b16 %v1489
        %v1554 = vunpack.c.l.b16 %v1490
        %v1555 = vunpack.c.l.b16 %v1491
        %v1556 = vunpack.c.l.b16 %v1492
        %v1557 = vunpack.c.l.b16 %v1493
        %v1558 = vpack.c.b16 %v1535, %v1534
        %v1559 = vpack.c.b16 %v1537, %v1536
        %v1560 = vpack.c.b16 %v1539, %v1538
        %v1561 = vpack.c.b16 %v1541, %v1540
        %v1562 = vpack.c.b16 %v1543, %v1542
        %v1563 = vpack.c.b16 %v1545, %v1544
        %v1564 = vpack.c.b16 %v1547, %v1546
        %v1565 = vpack.c.b16 %v1549, %v1548
        %v1566 = vpack.c.b16 %v1551, %v1550
        %v1567 = vpack.c.b16 %v1553, %v1552
        %v1568 = vpack.c.b16 %v1555, %v1554
        %v1569 = vpack.c.b16 %v1557, %v1556
        %v1598 = vunpack.c.l.b16 %v1494
        %v1599 = vunpack.c.l.b16 %v1495
        %v1600 = vunpack.c.l.b16 %v1496
        %v1601 = vunpack.c.l.b16 %v1497
        %v1602 = vunpack.c.l.b16 %v1498
        %v1603 = vunpack.c.l.b16 %v1499
        %v1604 = vunpack.c.l.b16 %v1500
        %v1605 = vunpack.c.l.b16 %v1501
        %v1606 = vunpack.c.l.b16 %v1502
        %v1607 = vunpack.c.l.b16 %v1503
        %v1608 = vunpack.c.l.b16 %v1504
        %v1609 = vunpack.c.l.b16 %v1505
        %v1610 = vunpack.c.l.b16 %v1506
        %v1611 = vunpack.c.l.b16 %v1507
        %v1612 = vunpack.c.l.b16 %v1508
        %v1613 = vunpack.c.l.b16 %v1509
        %v1614 = vpack.c.b16 %v1599, %v1598
        %v1615 = vpack.c.b16 %v1601, %v1600
        %v1616 = vpack.c.b16 %v1603, %v1602
        %v1617 = vpack.c.b16 %v1605, %v1604
        %v1618 = vpack.c.b16 %v1607, %v1606
        %v1619 = vpack.c.b16 %v1609, %v1608
        %v1620 = vpack.c.b16 %v1611, %v1610
        %v1621 = vpack.c.b16 %v1613, %v1612
        %1630 = vmatpush.bf16.msra.mxu0 %v1621
        %1631 = vmatpush.bf16.msra.mxu0 %v1620
        %1632 = vmatpush.bf16.msra.mxu0 %v1619
        %1633 = vmatpush.bf16.msra.mxu0 %v1618
        %1634 = vmatpush.bf16.msra.mxu0 %v1617
        %1635 = vmatpush.bf16.msra.mxu0 %v1616
        %1636 = vmatpush.bf16.msra.mxu0 %v1615
        %1637 = vmatpush.bf16.msra.mxu0 %v1614
        %1638 = vmatmul.bf16.gmra.mxu0 %v1558
        %v1639 = vpop.f32.mrf.mxu0
        %v1640 = vadd.f32 0.0, %v1639
        %v1641 = vpop.f32.mrf.mxu0
        %v1642 = vadd.f32 0.0, %v1641
        %1643 = vmatmul.bf16.gmra.mxu0 %v1559
        %v1644 = vpop.f32.mrf.mxu0
        %v1645 = vadd.f32 0.0, %v1644
        %v1646 = vpop.f32.mrf.mxu0
        %v1647 = vadd.f32 0.0, %v1646
        %1648 = vmatmul.bf16.gmra.mxu0 %v1560
        %v1649 = vpop.f32.mrf.mxu0
        %v1650 = vadd.f32 0.0, %v1649
        %v1651 = vpop.f32.mrf.mxu0
        %v1652 = vadd.f32 0.0, %v1651
        %1653 = vmatmul.bf16.gmra.mxu0 %v1561
        %v1654 = vpop.f32.mrf.mxu0
        %v1655 = vadd.f32 0.0, %v1654
        %v1656 = vpop.f32.mrf.mxu0
        %v1657 = vadd.f32 0.0, %v1656
        %1658 = vmatmul.bf16.gmra.mxu0 %v1562
        %v1659 = vpop.f32.mrf.mxu0
        %v1660 = vadd.f32 0.0, %v1659
        %v1661 = vpop.f32.mrf.mxu0
        %v1662 = vadd.f32 0.0, %v1661
        %1663 = vmatmul.bf16.gmra.mxu0 %v1563
        %v1664 = vpop.f32.mrf.mxu0
        %v1665 = vadd.f32 0.0, %v1664
        %v1666 = vpop.f32.mrf.mxu0
        %v1667 = vadd.f32 0.0, %v1666
        %1668 = vmatmul.bf16.gmra.mxu0 %v1564
        %v1669 = vpop.f32.mrf.mxu0
        %v1670 = vadd.f32 0.0, %v1669
        %v1671 = vpop.f32.mrf.mxu0
        %v1672 = vadd.f32 0.0, %v1671
        %1673 = vmatmul.bf16.gmra.mxu0 %v1565
        %v1674 = vpop.f32.mrf.mxu0
        %v1675 = vadd.f32 0.0, %v1674
        %v1676 = vpop.f32.mrf.mxu0
        %v1677 = vadd.f32 0.0, %v1676
        %1678 = vmatmul.bf16.gmra.mxu0 %v1566
        %v1679 = vpop.f32.mrf.mxu0
        %v1680 = vadd.f32 0.0, %v1679
        %v1681 = vpop.f32.mrf.mxu0
        %v1682 = vadd.f32 0.0, %v1681
        %1683 = vmatmul.bf16.gmra.mxu0 %v1567
        %v1684 = vpop.f32.mrf.mxu0
        %v1685 = vadd.f32 0.0, %v1684
        %v1686 = vpop.f32.mrf.mxu0
        %v1687 = vadd.f32 0.0, %v1686
        %1688 = vmatmul.bf16.gmra.mxu0 %v1568
        %v1689 = vpop.f32.mrf.mxu0
        %v1690 = vadd.f32 0.0, %v1689
        %v1691 = vpop.f32.mrf.mxu0
        %v1692 = vadd.f32 0.0, %v1691
        %1693 = vmatmul.bf16.gmra.mxu0 %v1569
        %v1694 = vpop.f32.mrf.mxu0
        %v1695 = vadd.f32 0.0, %v1694
        %v1696 = vpop.f32.mrf.mxu0
        %v1697 = vadd.f32 0.0, %v1696
        %1698 = vdwg.mxu0
        %v1699 = vadd.f32 %v1411, %v1640
        %v1700 = vadd.f32 %v1413, %v1642
        %v1701 = vadd.f32 %v1416, %v1645
        %v1702 = vadd.f32 %v1418, %v1647
        %v1703 = vadd.f32 %v1421, %v1650
        %v1704 = vadd.f32 %v1423, %v1652
        %v1705 = vadd.f32 %v1426, %v1655
        %v1706 = vadd.f32 %v1428, %v1657
        %v1707 = vadd.f32 %v1431, %v1660
        %v1708 = vadd.f32 %v1433, %v1662
        %v1709 = vadd.f32 %v1436, %v1665
        %v1710 = vadd.f32 %v1438, %v1667
        %v1711 = vadd.f32 %v1441, %v1670
        %v1712 = vadd.f32 %v1443, %v1672
        %v1713 = vadd.f32 %v1446, %v1675
        %v1714 = vadd.f32 %v1448, %v1677
        %v1715 = vadd.f32 %v1451, %v1680
        %v1716 = vadd.f32 %v1453, %v1682
        %v1717 = vadd.f32 %v1456, %v1685
        %v1718 = vadd.f32 %v1458, %v1687
        %v1719 = vadd.f32 %v1461, %v1690
        %v1720 = vadd.f32 %v1463, %v1692
        %v1721 = vadd.f32 %v1466, %v1695
        %v1722 = vadd.f32 %v1468, %v1697
        %v1723 = vld [vmem:[%s8 + $0x1] sm:$0x1]
        %v1724 = vperm.slane %v1723, 0
        %v1725 = vadd.f32 %v1699, %v1724
        %v1726 = vadd.f32 %v1700, %v1724
        %v1727 = vadd.f32 %v1701, %v1724
        %v1728 = vadd.f32 %v1702, %v1724
        %v1729 = vadd.f32 %v1703, %v1724
        %v1730 = vadd.f32 %v1704, %v1724
        %v1731 = vadd.f32 %v1705, %v1724
        %v1732 = vadd.f32 %v1706, %v1724
        %v1733 = vadd.f32 %v1707, %v1724
        %v1734 = vadd.f32 %v1708, %v1724
        %v1735 = vadd.f32 %v1709, %v1724
        %v1736 = vadd.f32 %v1710, %v1724
        %v1737 = vadd.f32 %v1711, %v1724
        %v1738 = vadd.f32 %v1712, %v1724
        %v1739 = vadd.f32 %v1713, %v1724
        %v1740 = vadd.f32 %v1714, %v1724
        %v1741 = vadd.f32 %v1715, %v1724
        %v1742 = vadd.f32 %v1716, %v1724
        %v1743 = vadd.f32 %v1717, %v1724
        %v1744 = vadd.f32 %v1718, %v1724
        %v1745 = vadd.f32 %v1719, %v1724
        %v1746 = vadd.f32 %v1720, %v1724
        %v1747 = vadd.f32 %v1721, %v1724
        %v1748 = vadd.f32 %v1722, %v1724
        %v1749 = vpack.c.bf16 %v1725, %v1725
        %v1750 = vpack.c.bf16 %v1726, %v1726
        %v1751 = vpack.c.bf16 %v1727, %v1727
        %v1752 = vpack.c.bf16 %v1728, %v1728
        %v1753 = vpack.c.bf16 %v1729, %v1729
        %v1754 = vpack.c.bf16 %v1730, %v1730
        %v1755 = vpack.c.bf16 %v1731, %v1731
        %v1756 = vpack.c.bf16 %v1732, %v1732
        %v1757 = vpack.c.bf16 %v1733, %v1733
        %v1758 = vpack.c.bf16 %v1734, %v1734
        %v1759 = vpack.c.bf16 %v1735, %v1735
        %v1760 = vpack.c.bf16 %v1736, %v1736
        %v1761 = vpack.c.bf16 %v1737, %v1737
        %v1762 = vpack.c.bf16 %v1738, %v1738
        %v1763 = vpack.c.bf16 %v1739, %v1739
        %v1764 = vpack.c.bf16 %v1740, %v1740
        %v1765 = vpack.c.bf16 %v1741, %v1741
        %v1766 = vpack.c.bf16 %v1742, %v1742
        %v1767 = vpack.c.bf16 %v1743, %v1743
        %v1768 = vpack.c.bf16 %v1744, %v1744
        %v1769 = vpack.c.bf16 %v1745, %v1745
        %v1770 = vpack.c.bf16 %v1746, %v1746
        %v1771 = vpack.c.bf16 %v1747, %v1747
        %v1772 = vpack.c.bf16 %v1748, %v1748
        %1773 = vst [vmem:[#allocation3 + $0x4] sm:$0xf] %v1749
        %1774 = vst [vmem:[#allocation3 + $0x8] sm:$0xf] %v1750
        %1775 = vst [vmem:[#allocation3 + $0xc] sm:$0xf] %v1751
        %1776 = vst [vmem:[#allocation3 + $0x10] sm:$0xf] %v1752
        %1777 = vst [vmem:[#allocation3 + $0x14] sm:$0xf] %v1753
        %1778 = vst [vmem:[#allocation3 + $0x18] sm:$0xf] %v1754
        %1779 = vst [vmem:[#allocation3 + $0x1c] sm:$0xf] %v1755
        %1780 = vst [vmem:[#allocation3 + $0x20] sm:$0xf] %v1756
        %1781 = vst [vmem:[#allocation3 + $0x24] sm:$0xf] %v1757
        %1782 = vst [vmem:[#allocation3 + $0x28] sm:$0xf] %v1758
        %1783 = vst [vmem:[#allocation3 + $0x2c] sm:$0xf] %v1759
        %1784 = vst [vmem:[#allocation3 + $0x30] sm:$0xf] %v1760
        %1785 = vst [vmem:[#allocation3 + $0x34] sm:$0xf] %v1761
        %1786 = vst [vmem:[#allocation3 + $0x38] sm:$0xf] %v1762
        %1787 = vst [vmem:[#allocation3 + $0x3c] sm:$0xf] %v1763
        %1788 = vst [vmem:[#allocation3 + $0x40] sm:$0xf] %v1764
        %1789 = vst [vmem:[#allocation3 + $0x44] sm:$0xf] %v1765
        %1790 = vst [vmem:[#allocation3 + $0x48] sm:$0xf] %v1766
        %1791 = vst [vmem:[#allocation3 + $0x4c] sm:$0xf] %v1767
        %1792 = vst [vmem:[#allocation3 + $0x50] sm:$0xf] %v1768
        %1793 = vst [vmem:[#allocation3 + $0x54] sm:$0xf] %v1769
        %1794 = vst [vmem:[#allocation3 + $0x58] sm:$0xf] %v1770
        %1795 = vst [vmem:[#allocation3 + $0x5c] sm:$0xf] %v1771
        %1796 = vst [vmem:[#allocation3 + $0x60] sm:$0xf] %v1772
        %v1797 = vld [vmem:[#allocation3] sm:$0x8]
        %v1798 = vld [vmem:[#allocation3 + $0x4] sm:$0xf]
        %v1799 = vld [vmem:[#allocation3 + $0x8] sm:$0xf]
        %v1800 = vld [vmem:[#allocation3 + $0xc] sm:$0xf]
        %v1801 = vld [vmem:[#allocation3 + $0x10] sm:$0xf]
        %v1802 = vld [vmem:[#allocation3 + $0x14] sm:$0xf]
        %v1803 = vld [vmem:[#allocation3 + $0x18] sm:$0xf]
        %v1804 = vld [vmem:[#allocation3 + $0x1c] sm:$0xf]
        %v1805 = vld [vmem:[#allocation3 + $0x20] sm:$0xf]
        %v1806 = vld [vmem:[#allocation3 + $0x24] sm:$0xf]
        %v1807 = vld [vmem:[#allocation3 + $0x28] sm:$0xf]
        %v1808 = vld [vmem:[#allocation3 + $0x2c] sm:$0xf]
        %v1809 = vld [vmem:[#allocation3 + $0x30] sm:$0xf]
        %v1810 = vld [vmem:[#allocation3 + $0x34] sm:$0xf]
        %v1811 = vld [vmem:[#allocation3 + $0x38] sm:$0xf]
        %v1812 = vld [vmem:[#allocation3 + $0x3c] sm:$0xf]
        %v1813 = vld [vmem:[#allocation3 + $0x40] sm:$0xf]
        %v1814 = vld [vmem:[#allocation3 + $0x44] sm:$0xf]
        %v1815 = vld [vmem:[#allocation3 + $0x48] sm:$0xf]
        %v1816 = vld [vmem:[#allocation3 + $0x4c] sm:$0xf]
        %v1817 = vld [vmem:[#allocation3 + $0x50] sm:$0xf]
        %v1818 = vld [vmem:[#allocation3 + $0x54] sm:$0xf]
        %v1819 = vld [vmem:[#allocation3 + $0x58] sm:$0xf]
        %v1820 = vld [vmem:[#allocation3 + $0x5c] sm:$0xf]
        %v1821 = vld [vmem:[#allocation3 + $0x60] sm:$0xf]
        %1823 = vset.pattern.permute.xlu0 0
        %1824 = vperm.xlu0 %1823, %v1076
        %v1825 = vpop.permute.xlu0 %1824
        %v1828 = vunpack.c.l.s4 839922192
        %v1829 = vunpack.c.0.s8 %v1828
        %v1830 = vperm.slane %v1825, %v1829
        %1832 = vset.pattern.permute.xlu0 0
        %1833 = vperm.xlu0 %1832, %v1077
        %v1834 = vpop.permute.xlu0 %1833
        %v1837 = vunpack.c.l.s4 839922192
        %v1838 = vunpack.c.0.s8 %v1837
        %v1839 = vperm.slane %v1834, %v1838
        %1841 = vset.pattern.permute.xlu0 0
        %1842 = vperm.xlu0 %1841, %v1078
        %v1843 = vpop.permute.xlu0 %1842
        %v1846 = vunpack.c.l.s4 839922192
        %v1847 = vunpack.c.0.s8 %v1846
        %v1848 = vperm.slane %v1843, %v1847
        %1850 = vset.pattern.permute.xlu0 0
        %1851 = vperm.xlu0 %1850, %v1079
        %v1852 = vpop.permute.xlu0 %1851
        %v1855 = vunpack.c.l.s4 839922192
        %v1856 = vunpack.c.0.s8 %v1855
        %v1857 = vperm.slane %v1852, %v1856
        %1859 = vset.pattern.permute.xlu0 0
        %1860 = vperm.xlu0 %1859, %v1080
        %v1861 = vpop.permute.xlu0 %1860
        %v1864 = vunpack.c.l.s4 839922192
        %v1865 = vunpack.c.0.s8 %v1864
        %v1866 = vperm.slane %v1861, %v1865
        %1868 = vset.pattern.permute.xlu0 0
        %1869 = vperm.xlu0 %1868, %v1081
        %v1870 = vpop.permute.xlu0 %1869
        %v1873 = vunpack.c.l.s4 839922192
        %v1874 = vunpack.c.0.s8 %v1873
        %v1875 = vperm.slane %v1870, %v1874
        %1877 = vset.pattern.permute.xlu0 0
        %1878 = vperm.xlu0 %1877, %v1082
        %v1879 = vpop.permute.xlu0 %1878
        %v1882 = vunpack.c.l.s4 839922192
        %v1883 = vunpack.c.0.s8 %v1882
        %v1884 = vperm.slane %v1879, %v1883
        %1886 = vset.pattern.permute.xlu0 0
        %1887 = vperm.xlu0 %1886, %v1083
        %v1888 = vpop.permute.xlu0 %1887
        %v1891 = vunpack.c.l.s4 839922192
        %v1892 = vunpack.c.0.s8 %v1891
        %v1893 = vperm.slane %v1888, %v1892
        %1895 = vset.pattern.permute.xlu0 0
        %1896 = vperm.xlu0 %1895, %v1084
        %v1897 = vpop.permute.xlu0 %1896
        %v1900 = vunpack.c.l.s4 839922192
        %v1901 = vunpack.c.0.s8 %v1900
        %v1902 = vperm.slane %v1897, %v1901
        %1904 = vset.pattern.permute.xlu0 0
        %1905 = vperm.xlu0 %1904, %v1085
        %v1906 = vpop.permute.xlu0 %1905
        %v1909 = vunpack.c.l.s4 839922192
        %v1910 = vunpack.c.0.s8 %v1909
        %v1911 = vperm.slane %v1906, %v1910
        %1913 = vset.pattern.permute.xlu0 0
        %1914 = vperm.xlu0 %1913, %v1086
        %v1915 = vpop.permute.xlu0 %1914
        %v1918 = vunpack.c.l.s4 839922192
        %v1919 = vunpack.c.0.s8 %v1918
        %v1920 = vperm.slane %v1915, %v1919
        %1922 = vset.pattern.permute.xlu0 0
        %1923 = vperm.xlu0 %1922, %v1087
        %v1924 = vpop.permute.xlu0 %1923
        %v1927 = vunpack.c.l.s4 839922192
        %v1928 = vunpack.c.0.s8 %v1927
        %v1929 = vperm.slane %v1924, %v1928
        %1931 = vset.pattern.permute.xlu0 0
        %1932 = vperm.xlu0 %1931, %v1088
        %v1933 = vpop.permute.xlu0 %1932
        %v1936 = vunpack.c.l.s4 839922192
        %v1937 = vunpack.c.0.s8 %v1936
        %v1938 = vperm.slane %v1933, %v1937
        %1940 = vset.pattern.permute.xlu0 0
        %1941 = vperm.xlu0 %1940, %v1089
        %v1942 = vpop.permute.xlu0 %1941
        %v1945 = vunpack.c.l.s4 839922192
        %v1946 = vunpack.c.0.s8 %v1945
        %v1947 = vperm.slane %v1942, %v1946
        %1949 = vset.pattern.permute.xlu0 0
        %1950 = vperm.xlu0 %1949, %v1090
        %v1951 = vpop.permute.xlu0 %1950
        %v1954 = vunpack.c.l.s4 839922192
        %v1955 = vunpack.c.0.s8 %v1954
        %v1956 = vperm.slane %v1951, %v1955
        %1958 = vset.pattern.permute.xlu0 0
        %1959 = vperm.xlu0 %1958, %v1091
        %v1960 = vpop.permute.xlu0 %1959
        %v1963 = vunpack.c.l.s4 839922192
        %v1964 = vunpack.c.0.s8 %v1963
        %v1965 = vperm.slane %v1960, %v1964
        %1967 = vset.pattern.permute.xlu0 0
        %1968 = vperm.xlu0 %1967, %v1092
        %v1969 = vpop.permute.xlu0 %1968
        %v1972 = vunpack.c.l.s4 839922192
        %v1973 = vunpack.c.0.s8 %v1972
        %v1974 = vperm.slane %v1969, %v1973
        %1976 = vset.pattern.permute.xlu0 0
        %1977 = vperm.xlu0 %1976, %v1093
        %v1978 = vpop.permute.xlu0 %1977
        %v1981 = vunpack.c.l.s4 839922192
        %v1982 = vunpack.c.0.s8 %v1981
        %v1983 = vperm.slane %v1978, %v1982
        %1985 = vset.pattern.permute.xlu0 0
        %1986 = vperm.xlu0 %1985, %v1094
        %v1987 = vpop.permute.xlu0 %1986
        %v1990 = vunpack.c.l.s4 839922192
        %v1991 = vunpack.c.0.s8 %v1990
        %v1992 = vperm.slane %v1987, %v1991
        %1994 = vset.pattern.permute.xlu0 0
        %1995 = vperm.xlu0 %1994, %v1095
        %v1996 = vpop.permute.xlu0 %1995
        %v1999 = vunpack.c.l.s4 839922192
        %v2000 = vunpack.c.0.s8 %v1999
        %v2001 = vperm.slane %v1996, %v2000
        %2003 = vset.pattern.permute.xlu0 0
        %2004 = vperm.xlu0 %2003, %v1096
        %v2005 = vpop.permute.xlu0 %2004
        %v2008 = vunpack.c.l.s4 839922192
        %v2009 = vunpack.c.0.s8 %v2008
        %v2010 = vperm.slane %v2005, %v2009
        %2012 = vset.pattern.permute.xlu0 0
        %2013 = vperm.xlu0 %2012, %v1097
        %v2014 = vpop.permute.xlu0 %2013
        %v2017 = vunpack.c.l.s4 839922192
        %v2018 = vunpack.c.0.s8 %v2017
        %v2019 = vperm.slane %v2014, %v2018
        %2021 = vset.pattern.permute.xlu0 0
        %2022 = vperm.xlu0 %2021, %v1098
        %v2023 = vpop.permute.xlu0 %2022
        %v2026 = vunpack.c.l.s4 839922192
        %v2027 = vunpack.c.0.s8 %v2026
        %v2028 = vperm.slane %v2023, %v2027
        %2030 = vset.pattern.permute.xlu0 0
        %2031 = vperm.xlu0 %2030, %v1099
        %v2032 = vpop.permute.xlu0 %2031
        %v2035 = vunpack.c.l.s4 839922192
        %v2036 = vunpack.c.0.s8 %v2035
        %v2037 = vperm.slane %v2032, %v2036
        %v2038 = vunpack.c.l.bf16 %v1797
        %v2039 = vunpack.c.l.bf16 %v1798
        %v2040 = vunpack.c.l.bf16 %v1799
        %v2041 = vunpack.c.l.bf16 %v1800
        %v2042 = vunpack.c.l.bf16 %v1801
        %v2043 = vunpack.c.l.bf16 %v1802
        %v2044 = vunpack.c.l.bf16 %v1803
        %v2045 = vunpack.c.l.bf16 %v1804
        %v2046 = vunpack.c.l.bf16 %v1805
        %v2047 = vunpack.c.l.bf16 %v1806
        %v2048 = vunpack.c.l.bf16 %v1807
        %v2049 = vunpack.c.l.bf16 %v1808
        %v2050 = vunpack.c.l.bf16 %v1809
        %v2051 = vunpack.c.l.bf16 %v1810
        %v2052 = vunpack.c.l.bf16 %v1811
        %v2053 = vunpack.c.l.bf16 %v1812
        %v2054 = vunpack.c.l.bf16 %v1813
        %v2055 = vunpack.c.l.bf16 %v1814
        %v2056 = vunpack.c.l.bf16 %v1815
        %v2057 = vunpack.c.l.bf16 %v1816
        %v2058 = vunpack.c.l.bf16 %v1817
        %v2059 = vunpack.c.l.bf16 %v1818
        %v2060 = vunpack.c.l.bf16 %v1819
        %v2061 = vunpack.c.l.bf16 %v1820
        %v2062 = vunpack.c.l.bf16 %v1821
        %v2063 = vunpack.c.l.bf16 %v1830
        %v2064 = vunpack.c.l.bf16 %v1839
        %v2065 = vunpack.c.l.bf16 %v1848
        %v2066 = vunpack.c.l.bf16 %v1857
        %v2067 = vunpack.c.l.bf16 %v1866
        %v2068 = vunpack.c.l.bf16 %v1875
        %v2069 = vunpack.c.l.bf16 %v1884
        %v2070 = vunpack.c.l.bf16 %v1893
        %v2071 = vunpack.c.l.bf16 %v1902
        %v2072 = vunpack.c.l.bf16 %v1911
        %v2073 = vunpack.c.l.bf16 %v1920
        %v2074 = vunpack.c.l.bf16 %v1929
        %v2075 = vunpack.c.l.bf16 %v1938
        %v2076 = vunpack.c.l.bf16 %v1947
        %v2077 = vunpack.c.l.bf16 %v1956
        %v2078 = vunpack.c.l.bf16 %v1965
        %v2079 = vunpack.c.l.bf16 %v1974
        %v2080 = vunpack.c.l.bf16 %v1983
        %v2081 = vunpack.c.l.bf16 %v1992
        %v2082 = vunpack.c.l.bf16 %v2001
        %v2083 = vunpack.c.l.bf16 %v2010
        %v2084 = vunpack.c.l.bf16 %v2019
        %v2085 = vunpack.c.l.bf16 %v2028
        %v2086 = vunpack.c.l.bf16 %v2037
        %vm2111 = vcmask 1046528
        %v2112 = vrot.slane %v2063, 1
        %v2113 = vrot.slane %v2064, 1
        %v2114 = vsel %vm2111, %v2112, %v2113
        %v2115 = vrot.slane %v2065, 1
        %v2116 = vsel %vm2111, %v2113, %v2115
        %v2117 = vrot.slane %v2066, 1
        %v2118 = vsel %vm2111, %v2115, %v2117
        %v2119 = vrot.slane %v2067, 1
        %v2120 = vsel %vm2111, %v2117, %v2119
        %v2121 = vrot.slane %v2068, 1
        %v2122 = vsel %vm2111, %v2119, %v2121
        %v2123 = vrot.slane %v2069, 1
        %v2124 = vsel %vm2111, %v2121, %v2123
        %v2125 = vrot.slane %v2070, 1
        %v2126 = vsel %vm2111, %v2123, %v2125
        %v2127 = vrot.slane %v2071, 1
        %v2128 = vsel %vm2111, %v2125, %v2127
        %v2129 = vrot.slane %v2072, 1
        %v2130 = vsel %vm2111, %v2127, %v2129
        %v2131 = vrot.slane %v2073, 1
        %v2132 = vsel %vm2111, %v2129, %v2131
        %v2133 = vrot.slane %v2074, 1
        %v2134 = vsel %vm2111, %v2131, %v2133
        %v2135 = vrot.slane %v2075, 1
        %v2136 = vsel %vm2111, %v2133, %v2135
        %v2137 = vrot.slane %v2076, 1
        %v2138 = vsel %vm2111, %v2135, %v2137
        %v2139 = vrot.slane %v2077, 1
        %v2140 = vsel %vm2111, %v2137, %v2139
        %v2141 = vrot.slane %v2078, 1
        %v2142 = vsel %vm2111, %v2139, %v2141
        %v2143 = vrot.slane %v2079, 1
        %v2144 = vsel %vm2111, %v2141, %v2143
        %v2145 = vrot.slane %v2080, 1
        %v2146 = vsel %vm2111, %v2143, %v2145
        %v2147 = vrot.slane %v2081, 1
        %v2148 = vsel %vm2111, %v2145, %v2147
        %v2149 = vrot.slane %v2082, 1
        %v2150 = vsel %vm2111, %v2147, %v2149
        %v2151 = vrot.slane %v2083, 1
        %v2152 = vsel %vm2111, %v2149, %v2151
        %v2153 = vrot.slane %v2084, 1
        %v2154 = vsel %vm2111, %v2151, %v2153
        %v2155 = vrot.slane %v2085, 1
        %v2156 = vsel %vm2111, %v2153, %v2155
        %v2157 = vrot.slane %v2086, 1
        %v2158 = vsel %vm2111, %v2155, %v2157
        %v2184 = vmul.f32 %v2038, %v2112
        %v2185 = vmul.f32 %v2039, %v2114
        %v2186 = vmul.f32 %v2040, %v2116
        %v2187 = vmul.f32 %v2041, %v2118
        %v2188 = vmul.f32 %v2042, %v2120
        %v2189 = vmul.f32 %v2043, %v2122
        %v2190 = vmul.f32 %v2044, %v2124
        %v2191 = vmul.f32 %v2045, %v2126
        %v2192 = vmul.f32 %v2046, %v2128
        %v2193 = vmul.f32 %v2047, %v2130
        %v2194 = vmul.f32 %v2048, %v2132
        %v2195 = vmul.f32 %v2049, %v2134
        %v2196 = vmul.f32 %v2050, %v2136
        %v2197 = vmul.f32 %v2051, %v2138
        %v2198 = vmul.f32 %v2052, %v2140
        %v2199 = vmul.f32 %v2053, %v2142
        %v2200 = vmul.f32 %v2054, %v2144
        %v2201 = vmul.f32 %v2055, %v2146
        %v2202 = vmul.f32 %v2056, %v2148
        %v2203 = vmul.f32 %v2057, %v2150
        %v2204 = vmul.f32 %v2058, %v2152
        %v2205 = vmul.f32 %v2059, %v2154
        %v2206 = vmul.f32 %v2060, %v2156
        %v2207 = vmul.f32 %v2061, %v2158
        %v2208 = vmul.f32 %v2062, %v2157
        %v2209 = vpack.c.bf16 %v2185, %v2184
        %v2210 = vpack.c.bf16 %v2187, %v2186
        %v2211 = vpack.c.bf16 %v2189, %v2188
        %v2212 = vpack.c.bf16 %v2191, %v2190
        %v2213 = vpack.c.bf16 %v2193, %v2192
        %v2214 = vpack.c.bf16 %v2195, %v2194
        %v2215 = vpack.c.bf16 %v2197, %v2196
        %v2216 = vpack.c.bf16 %v2199, %v2198
        %v2217 = vpack.c.bf16 %v2201, %v2200
        %v2218 = vpack.c.bf16 %v2203, %v2202
        %v2219 = vpack.c.bf16 %v2205, %v2204
        %v2220 = vpack.c.bf16 %v2207, %v2206
        %v2221 = vpack.c.bf16 %v2208, %v2208
        %v2222 = vld [vmem:[#allocation13] sm:$0xf]
        %v2223 = vld [vmem:[#allocation13 + $0x4] sm:$0xf]
        %v2224 = vld [vmem:[#allocation13 + $0x8] sm:$0xf]
        %v2225 = vld [vmem:[#allocation13 + $0xc] sm:$0xf]
        %v2226 = vld [vmem:[#allocation13 + $0x10] sm:$0xf]
        %v2227 = vld [vmem:[#allocation13 + $0x14] sm:$0xf]
        %v2228 = vld [vmem:[#allocation13 + $0x18] sm:$0xf]
        %v2229 = vld [vmem:[#allocation13 + $0x1c] sm:$0xf]
        %v2230 = vld [vmem:[#allocation13 + $0x20] sm:$0xf]
        %v2231 = vld [vmem:[#allocation13 + $0x24] sm:$0xf]
        %v2232 = vld [vmem:[#allocation13 + $0x28] sm:$0xf]
        %v2233 = vld [vmem:[#allocation13 + $0x2c] sm:$0xf]
        %v2234 = vld [vmem:[#allocation13 + $0x30] sm:$0xf]
        %v2235 = vld [vmem:[#allocation13 + $0x34] sm:$0xf]
        %v2236 = vld [vmem:[#allocation13 + $0x38] sm:$0xf]
        %v2237 = vld [vmem:[#allocation13 + $0x3c] sm:$0xf]
        %v2238 = vld [vmem:[#allocation13 + $0x40] sm:$0xf]
        %v2239 = vld [vmem:[#allocation13 + $0x44] sm:$0xf]
        %v2240 = vld [vmem:[#allocation13 + $0x48] sm:$0xf]
        %v2241 = vld [vmem:[#allocation13 + $0x4c] sm:$0xf]
        %v2242 = vld [vmem:[#allocation13 + $0x50] sm:$0xf]
        %v2243 = vld [vmem:[#allocation13 + $0x54] sm:$0xf]
        %v2244 = vld [vmem:[#allocation13 + $0x58] sm:$0xf]
        %v2245 = vld [vmem:[#allocation13 + $0x5c] sm:$0xf]
        %v2246 = vld [vmem:[#allocation13 + $0x60] sm:$0xf]
        %v2247 = vld [vmem:[#allocation13 + $0x64] sm:$0xf]
        %v2248 = vld [vmem:[#allocation13 + $0x68] sm:$0xf]
        %v2249 = vld [vmem:[#allocation13 + $0x6c] sm:$0xf]
        %v2250 = vld [vmem:[#allocation13 + $0x70] sm:$0xf]
        %v2251 = vld [vmem:[#allocation13 + $0x74] sm:$0xf]
        %v2252 = vld [vmem:[#allocation13 + $0x78] sm:$0xf]
        %v2253 = vld [vmem:[#allocation13 + $0x7c] sm:$0xf]
        %v2278 = vunpack.c.l.b16 %v1798
        %v2279 = vunpack.c.l.b16 %v1799
        %v2280 = vunpack.c.l.b16 %v1800
        %v2281 = vunpack.c.l.b16 %v1801
        %v2282 = vunpack.c.l.b16 %v1802
        %v2283 = vunpack.c.l.b16 %v1803
        %v2284 = vunpack.c.l.b16 %v1804
        %v2285 = vunpack.c.l.b16 %v1805
        %v2286 = vunpack.c.l.b16 %v1806
        %v2287 = vunpack.c.l.b16 %v1807
        %v2288 = vunpack.c.l.b16 %v1808
        %v2289 = vunpack.c.l.b16 %v1809
        %v2290 = vunpack.c.l.b16 %v1810
        %v2291 = vunpack.c.l.b16 %v1811
        %v2292 = vunpack.c.l.b16 %v1812
        %v2293 = vunpack.c.l.b16 %v1813
        %v2294 = vunpack.c.l.b16 %v1814
        %v2295 = vunpack.c.l.b16 %v1815
        %v2296 = vunpack.c.l.b16 %v1816
        %v2297 = vunpack.c.l.b16 %v1817
        %v2298 = vunpack.c.l.b16 %v1818
        %v2299 = vunpack.c.l.b16 %v1819
        %v2300 = vunpack.c.l.b16 %v1820
        %v2301 = vunpack.c.l.b16 %v1821
        %v2302 = vpack.c.b16 %v2279, %v2278
        %v2303 = vpack.c.b16 %v2281, %v2280
        %v2304 = vpack.c.b16 %v2283, %v2282
        %v2305 = vpack.c.b16 %v2285, %v2284
        %v2306 = vpack.c.b16 %v2287, %v2286
        %v2307 = vpack.c.b16 %v2289, %v2288
        %v2308 = vpack.c.b16 %v2291, %v2290
        %v2309 = vpack.c.b16 %v2293, %v2292
        %v2310 = vpack.c.b16 %v2295, %v2294
        %v2311 = vpack.c.b16 %v2297, %v2296
        %v2312 = vpack.c.b16 %v2299, %v2298
        %v2313 = vpack.c.b16 %v2301, %v2300
        %v2342 = vunpack.c.l.b16 %v2238
        %v2343 = vunpack.c.l.b16 %v2239
        %v2344 = vunpack.c.l.b16 %v2240
        %v2345 = vunpack.c.l.b16 %v2241
        %v2346 = vunpack.c.l.b16 %v2242
        %v2347 = vunpack.c.l.b16 %v2243
        %v2348 = vunpack.c.l.b16 %v2244
        %v2349 = vunpack.c.l.b16 %v2245
        %v2350 = vunpack.c.l.b16 %v2246
        %v2351 = vunpack.c.l.b16 %v2247
        %v2352 = vunpack.c.l.b16 %v2248
        %v2353 = vunpack.c.l.b16 %v2249
        %v2354 = vunpack.c.l.b16 %v2250
        %v2355 = vunpack.c.l.b16 %v2251
        %v2356 = vunpack.c.l.b16 %v2252
        %v2357 = vunpack.c.l.b16 %v2253
        %v2358 = vpack.c.b16 %v2343, %v2342
        %v2359 = vpack.c.b16 %v2345, %v2344
        %v2360 = vpack.c.b16 %v2347, %v2346
        %v2361 = vpack.c.b16 %v2349, %v2348
        %v2362 = vpack.c.b16 %v2351, %v2350
        %v2363 = vpack.c.b16 %v2353, %v2352
        %v2364 = vpack.c.b16 %v2355, %v2354
        %v2365 = vpack.c.b16 %v2357, %v2356
        %2374 = vmatpush.bf16.msra.mxu0 %v2365
        %2375 = vmatpush.bf16.msra.mxu0 %v2364
        %2376 = vmatpush.bf16.msra.mxu0 %v2363
        %2377 = vmatpush.bf16.msra.mxu0 %v2362
        %2378 = vmatpush.bf16.msra.mxu0 %v2361
        %2379 = vmatpush.bf16.msra.mxu0 %v2360
        %2380 = vmatpush.bf16.msra.mxu0 %v2359
        %2381 = vmatpush.bf16.msra.mxu0 %v2358
        %2382 = vmatmul.bf16.gmra.mxu0 %v2302
        %v2383 = vpop.f32.mrf.mxu0
        %v2384 = vadd.f32 0.0, %v2383
        %v2385 = vpop.f32.mrf.mxu0
        %v2386 = vadd.f32 0.0, %v2385
        %2387 = vmatmul.bf16.gmra.mxu0 %v2303
        %v2388 = vpop.f32.mrf.mxu0
        %v2389 = vadd.f32 0.0, %v2388
        %v2390 = vpop.f32.mrf.mxu0
        %v2391 = vadd.f32 0.0, %v2390
        %2392 = vmatmul.bf16.gmra.mxu0 %v2304
        %v2393 = vpop.f32.mrf.mxu0
        %v2394 = vadd.f32 0.0, %v2393
        %v2395 = vpop.f32.mrf.mxu0
        %v2396 = vadd.f32 0.0, %v2395
        %2397 = vmatmul.bf16.gmra.mxu0 %v2305
        %v2398 = vpop.f32.mrf.mxu0
        %v2399 = vadd.f32 0.0, %v2398
        %v2400 = vpop.f32.mrf.mxu0
        %v2401 = vadd.f32 0.0, %v2400
        %2402 = vmatmul.bf16.gmra.mxu0 %v2306
        %v2403 = vpop.f32.mrf.mxu0
        %v2404 = vadd.f32 0.0, %v2403
        %v2405 = vpop.f32.mrf.mxu0
        %v2406 = vadd.f32 0.0, %v2405
        %2407 = vmatmul.bf16.gmra.mxu0 %v2307
        %v2408 = vpop.f32.mrf.mxu0
        %v2409 = vadd.f32 0.0, %v2408
        %v2410 = vpop.f32.mrf.mxu0
        %v2411 = vadd.f32 0.0, %v2410
        %2412 = vmatmul.bf16.gmra.mxu0 %v2308
        %v2413 = vpop.f32.mrf.mxu0
        %v2414 = vadd.f32 0.0, %v2413
        %v2415 = vpop.f32.mrf.mxu0
        %v2416 = vadd.f32 0.0, %v2415
        %2417 = vmatmul.bf16.gmra.mxu0 %v2309
        %v2418 = vpop.f32.mrf.mxu0
        %v2419 = vadd.f32 0.0, %v2418
        %v2420 = vpop.f32.mrf.mxu0
        %v2421 = vadd.f32 0.0, %v2420
        %2422 = vmatmul.bf16.gmra.mxu0 %v2310
        %v2423 = vpop.f32.mrf.mxu0
        %v2424 = vadd.f32 0.0, %v2423
        %v2425 = vpop.f32.mrf.mxu0
        %v2426 = vadd.f32 0.0, %v2425
        %2427 = vmatmul.bf16.gmra.mxu0 %v2311
        %v2428 = vpop.f32.mrf.mxu0
        %v2429 = vadd.f32 0.0, %v2428
        %v2430 = vpop.f32.mrf.mxu0
        %v2431 = vadd.f32 0.0, %v2430
        %2432 = vmatmul.bf16.gmra.mxu0 %v2312
        %v2433 = vpop.f32.mrf.mxu0
        %v2434 = vadd.f32 0.0, %v2433
        %v2435 = vpop.f32.mrf.mxu0
        %v2436 = vadd.f32 0.0, %v2435
        %2437 = vmatmul.bf16.gmra.mxu0 %v2313
        %v2438 = vpop.f32.mrf.mxu0
        %v2439 = vadd.f32 0.0, %v2438
        %v2440 = vpop.f32.mrf.mxu0
        %v2441 = vadd.f32 0.0, %v2440
        %2442 = vdwg.mxu0
        %vm2443 = vsmask.f32 4352
        %v2445 = vshrl.u32 %v2209, 16
        %v2447 = vrot.slane %v2445, 3
        %v2448 = vshll.u32 %v2209, 16
        %v2450 = vrot.slane %v2448, 4
        %v2451 = vor.u32 %v2447, %v2450
        %v2453 = vshrl.u32 %v2210, 16
        %v2455 = vrot.slane %v2453, 3
        %v2456 = vshll.u32 %v2210, 16
        %v2458 = vrot.slane %v2456, 4
        %v2459 = vor.u32 %v2455, %v2458
        %v2460 = vsel %vm2443, %v2451, %v2459
        %v2462 = vshrl.u32 %v2211, 16
        %v2464 = vrot.slane %v2462, 3
        %v2465 = vshll.u32 %v2211, 16
        %v2467 = vrot.slane %v2465, 4
        %v2468 = vor.u32 %v2464, %v2467
        %v2469 = vsel %vm2443, %v2459, %v2468
        %v2471 = vshrl.u32 %v2212, 16
        %v2473 = vrot.slane %v2471, 3
        %v2474 = vshll.u32 %v2212, 16
        %v2476 = vrot.slane %v2474, 4
        %v2477 = vor.u32 %v2473, %v2476
        %v2478 = vsel %vm2443, %v2468, %v2477
        %v2480 = vshrl.u32 %v2213, 16
        %v2482 = vrot.slane %v2480, 3
        %v2483 = vshll.u32 %v2213, 16
        %v2485 = vrot.slane %v2483, 4
        %v2486 = vor.u32 %v2482, %v2485
        %v2487 = vsel %vm2443, %v2477, %v2486
        %v2489 = vshrl.u32 %v2214, 16
        %v2491 = vrot.slane %v2489, 3
        %v2492 = vshll.u32 %v2214, 16
        %v2494 = vrot.slane %v2492, 4
        %v2495 = vor.u32 %v2491, %v2494
        %v2496 = vsel %vm2443, %v2486, %v2495
        %v2498 = vshrl.u32 %v2215, 16
        %v2500 = vrot.slane %v2498, 3
        %v2501 = vshll.u32 %v2215, 16
        %v2503 = vrot.slane %v2501, 4
        %v2504 = vor.u32 %v2500, %v2503
        %v2505 = vsel %vm2443, %v2495, %v2504
        %v2507 = vshrl.u32 %v2216, 16
        %v2509 = vrot.slane %v2507, 3
        %v2510 = vshll.u32 %v2216, 16
        %v2512 = vrot.slane %v2510, 4
        %v2513 = vor.u32 %v2509, %v2512
        %v2514 = vsel %vm2443, %v2504, %v2513
        %v2516 = vshrl.u32 %v2217, 16
        %v2518 = vrot.slane %v2516, 3
        %v2519 = vshll.u32 %v2217, 16
        %v2521 = vrot.slane %v2519, 4
        %v2522 = vor.u32 %v2518, %v2521
        %v2523 = vsel %vm2443, %v2513, %v2522
        %v2525 = vshrl.u32 %v2218, 16
        %v2527 = vrot.slane %v2525, 3
        %v2528 = vshll.u32 %v2218, 16
        %v2530 = vrot.slane %v2528, 4
        %v2531 = vor.u32 %v2527, %v2530
        %v2532 = vsel %vm2443, %v2522, %v2531
        %v2534 = vshrl.u32 %v2219, 16
        %v2536 = vrot.slane %v2534, 3
        %v2537 = vshll.u32 %v2219, 16
        %v2539 = vrot.slane %v2537, 4
        %v2540 = vor.u32 %v2536, %v2539
        %v2541 = vsel %vm2443, %v2531, %v2540
        %v2543 = vshrl.u32 %v2220, 16
        %v2545 = vrot.slane %v2543, 3
        %v2546 = vshll.u32 %v2220, 16
        %v2548 = vrot.slane %v2546, 4
        %v2549 = vor.u32 %v2545, %v2548
        %v2550 = vsel %vm2443, %v2540, %v2549
        %v2552 = vshrl.u32 %v2221, 16
        %v2554 = vrot.slane %v2552, 3
        %v2555 = vshll.u32 %v2221, 16
        %v2557 = vrot.slane %v2555, 4
        %v2558 = vor.u32 %v2554, %v2557
        %v2559 = vsel %vm2443, %v2549, %v2558
        %v2588 = vunpack.c.l.b16 %v2222
        %v2589 = vunpack.c.l.b16 %v2223
        %v2590 = vunpack.c.l.b16 %v2224
        %v2591 = vunpack.c.l.b16 %v2225
        %v2592 = vunpack.c.l.b16 %v2226
        %v2593 = vunpack.c.l.b16 %v2227
        %v2594 = vunpack.c.l.b16 %v2228
        %v2595 = vunpack.c.l.b16 %v2229
        %v2596 = vunpack.c.l.b16 %v2230
        %v2597 = vunpack.c.l.b16 %v2231
        %v2598 = vunpack.c.l.b16 %v2232
        %v2599 = vunpack.c.l.b16 %v2233
        %v2600 = vunpack.c.l.b16 %v2234
        %v2601 = vunpack.c.l.b16 %v2235
        %v2602 = vunpack.c.l.b16 %v2236
        %v2603 = vunpack.c.l.b16 %v2237
        %v2604 = vpack.c.b16 %v2589, %v2588
        %v2605 = vpack.c.b16 %v2591, %v2590
        %v2606 = vpack.c.b16 %v2593, %v2592
        %v2607 = vpack.c.b16 %v2595, %v2594
        %v2608 = vpack.c.b16 %v2597, %v2596
        %v2609 = vpack.c.b16 %v2599, %v2598
        %v2610 = vpack.c.b16 %v2601, %v2600
        %v2611 = vpack.c.b16 %v2603, %v2602
        %2620 = vmatpush.bf16.msra.mxu0 %v2611
        %2621 = vmatpush.bf16.msra.mxu0 %v2610
        %2622 = vmatpush.bf16.msra.mxu0 %v2609
        %2623 = vmatpush.bf16.msra.mxu0 %v2608
        %2624 = vmatpush.bf16.msra.mxu0 %v2607
        %2625 = vmatpush.bf16.msra.mxu0 %v2606
        %2626 = vmatpush.bf16.msra.mxu0 %v2605
        %2627 = vmatpush.bf16.msra.mxu0 %v2604
        %2628 = vmatmul.bf16.gmra.mxu0 %v2460
        %v2629 = vpop.f32.mrf.mxu0
        %v2630 = vadd.f32 %v2384, %v2629
        %v2631 = vpop.f32.mrf.mxu0
        %v2632 = vadd.f32 %v2386, %v2631
        %2633 = vmatmul.bf16.gmra.mxu0 %v2469
        %v2634 = vpop.f32.mrf.mxu0
        %v2635 = vadd.f32 %v2389, %v2634
        %v2636 = vpop.f32.mrf.mxu0
        %v2637 = vadd.f32 %v2391, %v2636
        %2638 = vmatmul.bf16.gmra.mxu0 %v2478
        %v2639 = vpop.f32.mrf.mxu0
        %v2640 = vadd.f32 %v2394, %v2639
        %v2641 = vpop.f32.mrf.mxu0
        %v2642 = vadd.f32 %v2396, %v2641
        %2643 = vmatmul.bf16.gmra.mxu0 %v2487
        %v2644 = vpop.f32.mrf.mxu0
        %v2645 = vadd.f32 %v2399, %v2644
        %v2646 = vpop.f32.mrf.mxu0
        %v2647 = vadd.f32 %v2401, %v2646
        %2648 = vmatmul.bf16.gmra.mxu0 %v2496
        %v2649 = vpop.f32.mrf.mxu0
        %v2650 = vadd.f32 %v2404, %v2649
        %v2651 = vpop.f32.mrf.mxu0
        %v2652 = vadd.f32 %v2406, %v2651
        %2653 = vmatmul.bf16.gmra.mxu0 %v2505
        %v2654 = vpop.f32.mrf.mxu0
        %v2655 = vadd.f32 %v2409, %v2654
        %v2656 = vpop.f32.mrf.mxu0
        %v2657 = vadd.f32 %v2411, %v2656
        %2658 = vmatmul.bf16.gmra.mxu0 %v2514
        %v2659 = vpop.f32.mrf.mxu0
        %v2660 = vadd.f32 %v2414, %v2659
        %v2661 = vpop.f32.mrf.mxu0
        %v2662 = vadd.f32 %v2416, %v2661
        %2663 = vmatmul.bf16.gmra.mxu0 %v2523
        %v2664 = vpop.f32.mrf.mxu0
        %v2665 = vadd.f32 %v2419, %v2664
        %v2666 = vpop.f32.mrf.mxu0
        %v2667 = vadd.f32 %v2421, %v2666
        %2668 = vmatmul.bf16.gmra.mxu0 %v2532
        %v2669 = vpop.f32.mrf.mxu0
        %v2670 = vadd.f32 %v2424, %v2669
        %v2671 = vpop.f32.mrf.mxu0
        %v2672 = vadd.f32 %v2426, %v2671
        %2673 = vmatmul.bf16.gmra.mxu0 %v2541
        %v2674 = vpop.f32.mrf.mxu0
        %v2675 = vadd.f32 %v2429, %v2674
        %v2676 = vpop.f32.mrf.mxu0
        %v2677 = vadd.f32 %v2431, %v2676
        %2678 = vmatmul.bf16.gmra.mxu0 %v2550
        %v2679 = vpop.f32.mrf.mxu0
        %v2680 = vadd.f32 %v2434, %v2679
        %v2681 = vpop.f32.mrf.mxu0
        %v2682 = vadd.f32 %v2436, %v2681
        %2683 = vmatmul.bf16.gmra.mxu0 %v2559
        %v2684 = vpop.f32.mrf.mxu0
        %v2685 = vadd.f32 %v2439, %v2684
        %v2686 = vpop.f32.mrf.mxu0
        %v2687 = vadd.f32 %v2441, %v2686
        %2688 = vdwg.mxu0
        %v2689 = vld [vmem:[#allocation3 + $0x4] sm:$0xf]
        %v2690 = vld [vmem:[#allocation3 + $0x8] sm:$0xf]
        %v2691 = vld [vmem:[#allocation3 + $0xc] sm:$0xf]
        %v2692 = vld [vmem:[#allocation3 + $0x10] sm:$0xf]
        %v2693 = vld [vmem:[#allocation3 + $0x14] sm:$0xf]
        %v2694 = vld [vmem:[#allocation3 + $0x18] sm:$0xf]
        %v2695 = vld [vmem:[#allocation3 + $0x1c] sm:$0xf]
        %v2696 = vld [vmem:[#allocation3 + $0x20] sm:$0xf]
        %v2697 = vld [vmem:[#allocation3 + $0x24] sm:$0xf]
        %v2698 = vld [vmem:[#allocation3 + $0x28] sm:$0xf]
        %v2699 = vld [vmem:[#allocation3 + $0x2c] sm:$0xf]
        %v2700 = vld [vmem:[#allocation3 + $0x30] sm:$0xf]
        %v2701 = vld [vmem:[#allocation3 + $0x34] sm:$0xf]
        %v2702 = vld [vmem:[#allocation3 + $0x38] sm:$0xf]
        %v2703 = vld [vmem:[#allocation3 + $0x3c] sm:$0xf]
        %v2704 = vld [vmem:[#allocation3 + $0x40] sm:$0xf]
        %v2705 = vld [vmem:[#allocation3 + $0x44] sm:$0xf]
        %v2706 = vld [vmem:[#allocation3 + $0x48] sm:$0xf]
        %v2707 = vld [vmem:[#allocation3 + $0x4c] sm:$0xf]
        %v2708 = vld [vmem:[#allocation3 + $0x50] sm:$0xf]
        %v2709 = vld [vmem:[#allocation3 + $0x54] sm:$0xf]
        %v2710 = vld [vmem:[#allocation3 + $0x58] sm:$0xf]
        %v2711 = vld [vmem:[#allocation3 + $0x5c] sm:$0xf]
        %v2712 = vld [vmem:[#allocation3 + $0x60] sm:$0xf]
        %v2713 = vld [vmem:[#allocation3 + $0x64] sm:$0x1]
        %2714 = vset.pattern.permute.xlu0 1
        %2715 = vperm.xlu0 %2714, %v1076
        %v2716 = vpop.permute.xlu0 %2715
        %v2719 = vunpack.c.l.s4 839922192
        %v2720 = vunpack.c.0.s8 %v2719
        %v2721 = vperm.slane %v2716, %v2720
        %2722 = vset.pattern.permute.xlu0 1
        %2723 = vperm.xlu0 %2722, %v1077
        %v2724 = vpop.permute.xlu0 %2723
        %v2727 = vunpack.c.l.s4 839922192
        %v2728 = vunpack.c.0.s8 %v2727
        %v2729 = vperm.slane %v2724, %v2728
        %2730 = vset.pattern.permute.xlu0 1
        %2731 = vperm.xlu0 %2730, %v1078
        %v2732 = vpop.permute.xlu0 %2731
        %v2735 = vunpack.c.l.s4 839922192
        %v2736 = vunpack.c.0.s8 %v2735
        %v2737 = vperm.slane %v2732, %v2736
        %2738 = vset.pattern.permute.xlu0 1
        %2739 = vperm.xlu0 %2738, %v1079
        %v2740 = vpop.permute.xlu0 %2739
        %v2743 = vunpack.c.l.s4 839922192
        %v2744 = vunpack.c.0.s8 %v2743
        %v2745 = vperm.slane %v2740, %v2744
        %2746 = vset.pattern.permute.xlu0 1
        %2747 = vperm.xlu0 %2746, %v1080
        %v2748 = vpop.permute.xlu0 %2747
        %v2751 = vunpack.c.l.s4 839922192
        %v2752 = vunpack.c.0.s8 %v2751
        %v2753 = vperm.slane %v2748, %v2752
        %2754 = vset.pattern.permute.xlu0 1
        %2755 = vperm.xlu0 %2754, %v1081
        %v2756 = vpop.permute.xlu0 %2755
        %v2759 = vunpack.c.l.s4 839922192
        %v2760 = vunpack.c.0.s8 %v2759
        %v2761 = vperm.slane %v2756, %v2760
        %2762 = vset.pattern.permute.xlu0 1
        %2763 = vperm.xlu0 %2762, %v1082
        %v2764 = vpop.permute.xlu0 %2763
        %v2767 = vunpack.c.l.s4 839922192
        %v2768 = vunpack.c.0.s8 %v2767
        %v2769 = vperm.slane %v2764, %v2768
        %2770 = vset.pattern.permute.xlu0 1
        %2771 = vperm.xlu0 %2770, %v1083
        %v2772 = vpop.permute.xlu0 %2771
        %v2775 = vunpack.c.l.s4 839922192
        %v2776 = vunpack.c.0.s8 %v2775
        %v2777 = vperm.slane %v2772, %v2776
        %2778 = vset.pattern.permute.xlu0 1
        %2779 = vperm.xlu0 %2778, %v1084
        %v2780 = vpop.permute.xlu0 %2779
        %v2783 = vunpack.c.l.s4 839922192
        %v2784 = vunpack.c.0.s8 %v2783
        %v2785 = vperm.slane %v2780, %v2784
        %2786 = vset.pattern.permute.xlu0 1
        %2787 = vperm.xlu0 %2786, %v1085
        %v2788 = vpop.permute.xlu0 %2787
        %v2791 = vunpack.c.l.s4 839922192
        %v2792 = vunpack.c.0.s8 %v2791
        %v2793 = vperm.slane %v2788, %v2792
        %2794 = vset.pattern.permute.xlu0 1
        %2795 = vperm.xlu0 %2794, %v1086
        %v2796 = vpop.permute.xlu0 %2795
        %v2799 = vunpack.c.l.s4 839922192
        %v2800 = vunpack.c.0.s8 %v2799
        %v2801 = vperm.slane %v2796, %v2800
        %2802 = vset.pattern.permute.xlu0 1
        %2803 = vperm.xlu0 %2802, %v1087
        %v2804 = vpop.permute.xlu0 %2803
        %v2807 = vunpack.c.l.s4 839922192
        %v2808 = vunpack.c.0.s8 %v2807
        %v2809 = vperm.slane %v2804, %v2808
        %2810 = vset.pattern.permute.xlu0 1
        %2811 = vperm.xlu0 %2810, %v1088
        %v2812 = vpop.permute.xlu0 %2811
        %v2815 = vunpack.c.l.s4 839922192
        %v2816 = vunpack.c.0.s8 %v2815
        %v2817 = vperm.slane %v2812, %v2816
        %2818 = vset.pattern.permute.xlu0 1
        %2819 = vperm.xlu0 %2818, %v1089
        %v2820 = vpop.permute.xlu0 %2819
        %v2823 = vunpack.c.l.s4 839922192
        %v2824 = vunpack.c.0.s8 %v2823
        %v2825 = vperm.slane %v2820, %v2824
        %2826 = vset.pattern.permute.xlu0 1
        %2827 = vperm.xlu0 %2826, %v1090
        %v2828 = vpop.permute.xlu0 %2827
        %v2831 = vunpack.c.l.s4 839922192
        %v2832 = vunpack.c.0.s8 %v2831
        %v2833 = vperm.slane %v2828, %v2832
        %2834 = vset.pattern.permute.xlu0 1
        %2835 = vperm.xlu0 %2834, %v1091
        %v2836 = vpop.permute.xlu0 %2835
        %v2839 = vunpack.c.l.s4 839922192
        %v2840 = vunpack.c.0.s8 %v2839
        %v2841 = vperm.slane %v2836, %v2840
        %2842 = vset.pattern.permute.xlu0 1
        %2843 = vperm.xlu0 %2842, %v1092
        %v2844 = vpop.permute.xlu0 %2843
        %v2847 = vunpack.c.l.s4 839922192
        %v2848 = vunpack.c.0.s8 %v2847
        %v2849 = vperm.slane %v2844, %v2848
        %2850 = vset.pattern.permute.xlu0 1
        %2851 = vperm.xlu0 %2850, %v1093
        %v2852 = vpop.permute.xlu0 %2851
        %v2855 = vunpack.c.l.s4 839922192
        %v2856 = vunpack.c.0.s8 %v2855
        %v2857 = vperm.slane %v2852, %v2856
        %2858 = vset.pattern.permute.xlu0 1
        %2859 = vperm.xlu0 %2858, %v1094
        %v2860 = vpop.permute.xlu0 %2859
        %v2863 = vunpack.c.l.s4 839922192
        %v2864 = vunpack.c.0.s8 %v2863
        %v2865 = vperm.slane %v2860, %v2864
        %2866 = vset.pattern.permute.xlu0 1
        %2867 = vperm.xlu0 %2866, %v1095
        %v2868 = vpop.permute.xlu0 %2867
        %v2871 = vunpack.c.l.s4 839922192
        %v2872 = vunpack.c.0.s8 %v2871
        %v2873 = vperm.slane %v2868, %v2872
        %2874 = vset.pattern.permute.xlu0 1
        %2875 = vperm.xlu0 %2874, %v1096
        %v2876 = vpop.permute.xlu0 %2875
        %v2879 = vunpack.c.l.s4 839922192
        %v2880 = vunpack.c.0.s8 %v2879
        %v2881 = vperm.slane %v2876, %v2880
        %2882 = vset.pattern.permute.xlu0 1
        %2883 = vperm.xlu0 %2882, %v1097
        %v2884 = vpop.permute.xlu0 %2883
        %v2887 = vunpack.c.l.s4 839922192
        %v2888 = vunpack.c.0.s8 %v2887
        %v2889 = vperm.slane %v2884, %v2888
        %2890 = vset.pattern.permute.xlu0 1
        %2891 = vperm.xlu0 %2890, %v1098
        %v2892 = vpop.permute.xlu0 %2891
        %v2895 = vunpack.c.l.s4 839922192
        %v2896 = vunpack.c.0.s8 %v2895
        %v2897 = vperm.slane %v2892, %v2896
        %2898 = vset.pattern.permute.xlu0 1
        %2899 = vperm.xlu0 %2898, %v1099
        %v2900 = vpop.permute.xlu0 %2899
        %v2903 = vunpack.c.l.s4 839922192
        %v2904 = vunpack.c.0.s8 %v2903
        %v2905 = vperm.slane %v2900, %v2904
        %v2906 = vunpack.c.l.bf16 %v2689
        %v2907 = vunpack.c.l.bf16 %v2690
        %v2908 = vunpack.c.l.bf16 %v2691
        %v2909 = vunpack.c.l.bf16 %v2692
        %v2910 = vunpack.c.l.bf16 %v2693
        %v2911 = vunpack.c.l.bf16 %v2694
        %v2912 = vunpack.c.l.bf16 %v2695
        %v2913 = vunpack.c.l.bf16 %v2696
        %v2914 = vunpack.c.l.bf16 %v2697
        %v2915 = vunpack.c.l.bf16 %v2698
        %v2916 = vunpack.c.l.bf16 %v2699
        %v2917 = vunpack.c.l.bf16 %v2700
        %v2918 = vunpack.c.l.bf16 %v2701
        %v2919 = vunpack.c.l.bf16 %v2702
        %v2920 = vunpack.c.l.bf16 %v2703
        %v2921 = vunpack.c.l.bf16 %v2704
        %v2922 = vunpack.c.l.bf16 %v2705
        %v2923 = vunpack.c.l.bf16 %v2706
        %v2924 = vunpack.c.l.bf16 %v2707
        %v2925 = vunpack.c.l.bf16 %v2708
        %v2926 = vunpack.c.l.bf16 %v2709
        %v2927 = vunpack.c.l.bf16 %v2710
        %v2928 = vunpack.c.l.bf16 %v2711
        %v2929 = vunpack.c.l.bf16 %v2712
        %v2930 = vunpack.c.l.bf16 %v2713
        %v2931 = vunpack.c.l.bf16 %v2721
        %v2932 = vunpack.c.l.bf16 %v2729
        %v2933 = vunpack.c.l.bf16 %v2737
        %v2934 = vunpack.c.l.bf16 %v2745
        %v2935 = vunpack.c.l.bf16 %v2753
        %v2936 = vunpack.c.l.bf16 %v2761
        %v2937 = vunpack.c.l.bf16 %v2769
        %v2938 = vunpack.c.l.bf16 %v2777
        %v2939 = vunpack.c.l.bf16 %v2785
        %v2940 = vunpack.c.l.bf16 %v2793
        %v2941 = vunpack.c.l.bf16 %v2801
        %v2942 = vunpack.c.l.bf16 %v2809
        %v2943 = vunpack.c.l.bf16 %v2817
        %v2944 = vunpack.c.l.bf16 %v2825
        %v2945 = vunpack.c.l.bf16 %v2833
        %v2946 = vunpack.c.l.bf16 %v2841
        %v2947 = vunpack.c.l.bf16 %v2849
        %v2948 = vunpack.c.l.bf16 %v2857
        %v2949 = vunpack.c.l.bf16 %v2865
        %v2950 = vunpack.c.l.bf16 %v2873
        %v2951 = vunpack.c.l.bf16 %v2881
        %v2952 = vunpack.c.l.bf16 %v2889
        %v2953 = vunpack.c.l.bf16 %v2897
        %v2954 = vunpack.c.l.bf16 %v2905
        %vm2979 = vcmask 1040384
        %v2980 = vrot.slane %v2931, 7
        %v2981 = vrot.slane %v2932, 7
        %v2982 = vsel %vm2979, %v2980, %v2981
        %v2983 = vrot.slane %v2933, 7
        %v2984 = vsel %vm2979, %v2981, %v2983
        %v2985 = vrot.slane %v2934, 7
        %v2986 = vsel %vm2979, %v2983, %v2985
        %v2987 = vrot.slane %v2935, 7
        %v2988 = vsel %vm2979, %v2985, %v2987
        %v2989 = vrot.slane %v2936, 7
        %v2990 = vsel %vm2979, %v2987, %v2989
        %v2991 = vrot.slane %v2937, 7
        %v2992 = vsel %vm2979, %v2989, %v2991
        %v2993 = vrot.slane %v2938, 7
        %v2994 = vsel %vm2979, %v2991, %v2993
        %v2995 = vrot.slane %v2939, 7
        %v2996 = vsel %vm2979, %v2993, %v2995
        %v2997 = vrot.slane %v2940, 7
        %v2998 = vsel %vm2979, %v2995, %v2997
        %v2999 = vrot.slane %v2941, 7
        %v3000 = vsel %vm2979, %v2997, %v2999
        %v3001 = vrot.slane %v2942, 7
        %v3002 = vsel %vm2979, %v2999, %v3001
        %v3003 = vrot.slane %v2943, 7
        %v3004 = vsel %vm2979, %v3001, %v3003
        %v3005 = vrot.slane %v2944, 7
        %v3006 = vsel %vm2979, %v3003, %v3005
        %v3007 = vrot.slane %v2945, 7
        %v3008 = vsel %vm2979, %v3005, %v3007
        %v3009 = vrot.slane %v2946, 7
        %v3010 = vsel %vm2979, %v3007, %v3009
        %v3011 = vrot.slane %v2947, 7
        %v3012 = vsel %vm2979, %v3009, %v3011
        %v3013 = vrot.slane %v2948, 7
        %v3014 = vsel %vm2979, %v3011, %v3013
        %v3015 = vrot.slane %v2949, 7
        %v3016 = vsel %vm2979, %v3013, %v3015
        %v3017 = vrot.slane %v2950, 7
        %v3018 = vsel %vm2979, %v3015, %v3017
        %v3019 = vrot.slane %v2951, 7
        %v3020 = vsel %vm2979, %v3017, %v3019
        %v3021 = vrot.slane %v2952, 7
        %v3022 = vsel %vm2979, %v3019, %v3021
        %v3023 = vrot.slane %v2953, 7
        %v3024 = vsel %vm2979, %v3021, %v3023
        %v3025 = vrot.slane %v2954, 7
        %v3026 = vsel %vm2979, %v3023, %v3025
        %v3052 = vmul.f32 %v2906, %v2980
        %v3053 = vmul.f32 %v2907, %v2982
        %v3054 = vmul.f32 %v2908, %v2984
        %v3055 = vmul.f32 %v2909, %v2986
        %v3056 = vmul.f32 %v2910, %v2988
        %v3057 = vmul.f32 %v2911, %v2990
        %v3058 = vmul.f32 %v2912, %v2992
        %v3059 = vmul.f32 %v2913, %v2994
        %v3060 = vmul.f32 %v2914, %v2996
        %v3061 = vmul.f32 %v2915, %v2998
        %v3062 = vmul.f32 %v2916, %v3000
        %v3063 = vmul.f32 %v2917, %v3002
        %v3064 = vmul.f32 %v2918, %v3004
        %v3065 = vmul.f32 %v2919, %v3006
        %v3066 = vmul.f32 %v2920, %v3008
        %v3067 = vmul.f32 %v2921, %v3010
        %v3068 = vmul.f32 %v2922, %v3012
        %v3069 = vmul.f32 %v2923, %v3014
        %v3070 = vmul.f32 %v2924, %v3016
        %v3071 = vmul.f32 %v2925, %v3018
        %v3072 = vmul.f32 %v2926, %v3020
        %v3073 = vmul.f32 %v2927, %v3022
        %v3074 = vmul.f32 %v2928, %v3024
        %v3075 = vmul.f32 %v2929, %v3026
        %v3076 = vmul.f32 %v2930, %v3025
        %v3077 = vpack.c.bf16 %v3053, %v3052
        %v3078 = vpack.c.bf16 %v3055, %v3054
        %v3079 = vpack.c.bf16 %v3057, %v3056
        %v3080 = vpack.c.bf16 %v3059, %v3058
        %v3081 = vpack.c.bf16 %v3061, %v3060
        %v3082 = vpack.c.bf16 %v3063, %v3062
        %v3083 = vpack.c.bf16 %v3065, %v3064
        %v3084 = vpack.c.bf16 %v3067, %v3066
        %v3085 = vpack.c.bf16 %v3069, %v3068
        %v3086 = vpack.c.bf16 %v3071, %v3070
        %v3087 = vpack.c.bf16 %v3073, %v3072
        %v3088 = vpack.c.bf16 %v3075, %v3074
        %v3089 = vpack.c.bf16 %v3076, %v3076
        %v3090 = vld [vmem:[#allocation13 + $0x80] sm:$0xf]
        %v3091 = vld [vmem:[#allocation13 + $0x84] sm:$0xf]
        %v3092 = vld [vmem:[#allocation13 + $0x88] sm:$0xf]
        %v3093 = vld [vmem:[#allocation13 + $0x8c] sm:$0xf]
        %v3094 = vld [vmem:[#allocation13 + $0x90] sm:$0xf]
        %v3095 = vld [vmem:[#allocation13 + $0x94] sm:$0xf]
        %v3096 = vld [vmem:[#allocation13 + $0x98] sm:$0xf]
        %v3097 = vld [vmem:[#allocation13 + $0x9c] sm:$0xf]
        %v3098 = vld [vmem:[#allocation13 + $0xa0] sm:$0xf]
        %v3099 = vld [vmem:[#allocation13 + $0xa4] sm:$0xf]
        %v3100 = vld [vmem:[#allocation13 + $0xa8] sm:$0xf]
        %v3101 = vld [vmem:[#allocation13 + $0xac] sm:$0xf]
        %v3102 = vld [vmem:[#allocation13 + $0xb0] sm:$0xf]
        %v3103 = vld [vmem:[#allocation13 + $0xb4] sm:$0xf]
        %v3104 = vld [vmem:[#allocation13 + $0xb8] sm:$0xf]
        %v3105 = vld [vmem:[#allocation13 + $0xbc] sm:$0xf]
        %vm3106 = vsmask.f32 7424
        %v3108 = vshrl.u32 %v3077, 16
        %v3110 = vshll.u32 %v3077, 16
        %v3112 = vrot.slane %v3110, 1
        %v3113 = vor.u32 %v3108, %v3112
        %v3115 = vshll.u32 %v3078, 16
        %v3117 = vrot.slane %v3115, 1
        %v3118 = vsel %vm3106, %v3113, %v3117
        %v3119 = vshrl.u32 %v3078, 16
        %v3121 = vor.u32 %v3119, %v3117
        %v3123 = vshll.u32 %v3079, 16
        %v3125 = vrot.slane %v3123, 1
        %v3126 = vsel %vm3106, %v3121, %v3125
        %v3127 = vshrl.u32 %v3079, 16
        %v3129 = vor.u32 %v3127, %v3125
        %v3131 = vshll.u32 %v3080, 16
        %v3133 = vrot.slane %v3131, 1
        %v3134 = vsel %vm3106, %v3129, %v3133
        %v3135 = vshrl.u32 %v3080, 16
        %v3137 = vor.u32 %v3135, %v3133
        %v3139 = vshll.u32 %v3081, 16
        %v3141 = vrot.slane %v3139, 1
        %v3142 = vsel %vm3106, %v3137, %v3141
        %v3143 = vshrl.u32 %v3081, 16
        %v3145 = vor.u32 %v3143, %v3141
        %v3147 = vshll.u32 %v3082, 16
        %v3149 = vrot.slane %v3147, 1
        %v3150 = vsel %vm3106, %v3145, %v3149
        %v3151 = vshrl.u32 %v3082, 16
        %v3153 = vor.u32 %v3151, %v3149
        %v3155 = vshll.u32 %v3083, 16
        %v3157 = vrot.slane %v3155, 1
        %v3158 = vsel %vm3106, %v3153, %v3157
        %v3159 = vshrl.u32 %v3083, 16
        %v3161 = vor.u32 %v3159, %v3157
        %v3163 = vshll.u32 %v3084, 16
        %v3165 = vrot.slane %v3163, 1
        %v3166 = vsel %vm3106, %v3161, %v3165
        %v3167 = vshrl.u32 %v3084, 16
        %v3169 = vor.u32 %v3167, %v3165
        %v3171 = vshll.u32 %v3085, 16
        %v3173 = vrot.slane %v3171, 1
        %v3174 = vsel %vm3106, %v3169, %v3173
        %v3175 = vshrl.u32 %v3085, 16
        %v3177 = vor.u32 %v3175, %v3173
        %v3179 = vshll.u32 %v3086, 16
        %v3181 = vrot.slane %v3179, 1
        %v3182 = vsel %vm3106, %v3177, %v3181
        %v3183 = vshrl.u32 %v3086, 16
        %v3185 = vor.u32 %v3183, %v3181
        %v3187 = vshll.u32 %v3087, 16
        %v3189 = vrot.slane %v3187, 1
        %v3190 = vsel %vm3106, %v3185, %v3189
        %v3191 = vshrl.u32 %v3087, 16
        %v3193 = vor.u32 %v3191, %v3189
        %v3195 = vshll.u32 %v3088, 16
        %v3197 = vrot.slane %v3195, 1
        %v3198 = vsel %vm3106, %v3193, %v3197
        %v3199 = vshrl.u32 %v3088, 16
        %v3201 = vor.u32 %v3199, %v3197
        %v3203 = vshll.u32 %v3089, 16
        %v3205 = vrot.slane %v3203, 1
        %v3206 = vsel %vm3106, %v3201, %v3205
        %v3235 = vunpack.c.l.b16 %v3090
        %v3236 = vunpack.c.l.b16 %v3091
        %v3237 = vunpack.c.l.b16 %v3092
        %v3238 = vunpack.c.l.b16 %v3093
        %v3239 = vunpack.c.l.b16 %v3094
        %v3240 = vunpack.c.l.b16 %v3095
        %v3241 = vunpack.c.l.b16 %v3096
        %v3242 = vunpack.c.l.b16 %v3097
        %v3243 = vunpack.c.l.b16 %v3098
        %v3244 = vunpack.c.l.b16 %v3099
        %v3245 = vunpack.c.l.b16 %v3100
        %v3246 = vunpack.c.l.b16 %v3101
        %v3247 = vunpack.c.l.b16 %v3102
        %v3248 = vunpack.c.l.b16 %v3103
        %v3249 = vunpack.c.l.b16 %v3104
        %v3250 = vunpack.c.l.b16 %v3105
        %v3251 = vpack.c.b16 %v3236, %v3235
        %v3252 = vpack.c.b16 %v3238, %v3237
        %v3253 = vpack.c.b16 %v3240, %v3239
        %v3254 = vpack.c.b16 %v3242, %v3241
        %v3255 = vpack.c.b16 %v3244, %v3243
        %v3256 = vpack.c.b16 %v3246, %v3245
        %v3257 = vpack.c.b16 %v3248, %v3247
        %v3258 = vpack.c.b16 %v3250, %v3249
        %3267 = vmatpush.bf16.msra.mxu0 %v3258
        %3268 = vmatpush.bf16.msra.mxu0 %v3257
        %3269 = vmatpush.bf16.msra.mxu0 %v3256
        %3270 = vmatpush.bf16.msra.mxu0 %v3255
        %3271 = vmatpush.bf16.msra.mxu0 %v3254
        %3272 = vmatpush.bf16.msra.mxu0 %v3253
        %3273 = vmatpush.bf16.msra.mxu0 %v3252
        %3274 = vmatpush.bf16.msra.mxu0 %v3251
        %3275 = vmatmul.bf16.gmra.mxu0 %v3118
        %v3276 = vpop.f32.mrf.mxu0
        %v3277 = vadd.f32 0.0, %v3276
        %v3278 = vpop.f32.mrf.mxu0
        %v3279 = vadd.f32 0.0, %v3278
        %3280 = vmatmul.bf16.gmra.mxu0 %v3126
        %v3281 = vpop.f32.mrf.mxu0
        %v3282 = vadd.f32 0.0, %v3281
        %v3283 = vpop.f32.mrf.mxu0
        %v3284 = vadd.f32 0.0, %v3283
        %3285 = vmatmul.bf16.gmra.mxu0 %v3134
        %v3286 = vpop.f32.mrf.mxu0
        %v3287 = vadd.f32 0.0, %v3286
        %v3288 = vpop.f32.mrf.mxu0
        %v3289 = vadd.f32 0.0, %v3288
        %3290 = vmatmul.bf16.gmra.mxu0 %v3142
        %v3291 = vpop.f32.mrf.mxu0
        %v3292 = vadd.f32 0.0, %v3291
        %v3293 = vpop.f32.mrf.mxu0
        %v3294 = vadd.f32 0.0, %v3293
        %3295 = vmatmul.bf16.gmra.mxu0 %v3150
        %v3296 = vpop.f32.mrf.mxu0
        %v3297 = vadd.f32 0.0, %v3296
        %v3298 = vpop.f32.mrf.mxu0
        %v3299 = vadd.f32 0.0, %v3298
        %3300 = vmatmul.bf16.gmra.mxu0 %v3158
        %v3301 = vpop.f32.mrf.mxu0
        %v3302 = vadd.f32 0.0, %v3301
        %v3303 = vpop.f32.mrf.mxu0
        %v3304 = vadd.f32 0.0, %v3303
        %3305 = vmatmul.bf16.gmra.mxu0 %v3166
        %v3306 = vpop.f32.mrf.mxu0
        %v3307 = vadd.f32 0.0, %v3306
        %v3308 = vpop.f32.mrf.mxu0
        %v3309 = vadd.f32 0.0, %v3308
        %3310 = vmatmul.bf16.gmra.mxu0 %v3174
        %v3311 = vpop.f32.mrf.mxu0
        %v3312 = vadd.f32 0.0, %v3311
        %v3313 = vpop.f32.mrf.mxu0
        %v3314 = vadd.f32 0.0, %v3313
        %3315 = vmatmul.bf16.gmra.mxu0 %v3182
        %v3316 = vpop.f32.mrf.mxu0
        %v3317 = vadd.f32 0.0, %v3316
        %v3318 = vpop.f32.mrf.mxu0
        %v3319 = vadd.f32 0.0, %v3318
        %3320 = vmatmul.bf16.gmra.mxu0 %v3190
        %v3321 = vpop.f32.mrf.mxu0
        %v3322 = vadd.f32 0.0, %v3321
        %v3323 = vpop.f32.mrf.mxu0
        %v3324 = vadd.f32 0.0, %v3323
        %3325 = vmatmul.bf16.gmra.mxu0 %v3198
        %v3326 = vpop.f32.mrf.mxu0
        %v3327 = vadd.f32 0.0, %v3326
        %v3328 = vpop.f32.mrf.mxu0
        %v3329 = vadd.f32 0.0, %v3328
        %3330 = vmatmul.bf16.gmra.mxu0 %v3206
        %v3331 = vpop.f32.mrf.mxu0
        %v3332 = vadd.f32 0.0, %v3331
        %v3333 = vpop.f32.mrf.mxu0
        %v3334 = vadd.f32 0.0, %v3333
        %3335 = vdwg.mxu0
        %v3336 = vadd.f32 %v2630, %v3277
        %v3337 = vadd.f32 %v2632, %v3279
        %v3338 = vadd.f32 %v2635, %v3282
        %v3339 = vadd.f32 %v2637, %v3284
        %v3340 = vadd.f32 %v2640, %v3287
        %v3341 = vadd.f32 %v2642, %v3289
        %v3342 = vadd.f32 %v2645, %v3292
        %v3343 = vadd.f32 %v2647, %v3294
        %v3344 = vadd.f32 %v2650, %v3297
        %v3345 = vadd.f32 %v2652, %v3299
        %v3346 = vadd.f32 %v2655, %v3302
        %v3347 = vadd.f32 %v2657, %v3304
        %v3348 = vadd.f32 %v2660, %v3307
        %v3349 = vadd.f32 %v2662, %v3309
        %v3350 = vadd.f32 %v2665, %v3312
        %v3351 = vadd.f32 %v2667, %v3314
        %v3352 = vadd.f32 %v2670, %v3317
        %v3353 = vadd.f32 %v2672, %v3319
        %v3354 = vadd.f32 %v2675, %v3322
        %v3355 = vadd.f32 %v2677, %v3324
        %v3356 = vadd.f32 %v2680, %v3327
        %v3357 = vadd.f32 %v2682, %v3329
        %v3358 = vadd.f32 %v2685, %v3332
        %v3359 = vadd.f32 %v2687, %v3334
        %v3360 = vld [vmem:[%s8 + $0x2] sm:$0x1]
        %v3361 = vperm.slane %v3360, 0
        %v3362 = vadd.f32 %v3336, %v3361
        %v3363 = vadd.f32 %v3337, %v3361
        %v3364 = vadd.f32 %v3338, %v3361
        %v3365 = vadd.f32 %v3339, %v3361
        %v3366 = vadd.f32 %v3340, %v3361
        %v3367 = vadd.f32 %v3341, %v3361
        %v3368 = vadd.f32 %v3342, %v3361
        %v3369 = vadd.f32 %v3343, %v3361
        %v3370 = vadd.f32 %v3344, %v3361
        %v3371 = vadd.f32 %v3345, %v3361
        %v3372 = vadd.f32 %v3346, %v3361
        %v3373 = vadd.f32 %v3347, %v3361
        %v3374 = vadd.f32 %v3348, %v3361
        %v3375 = vadd.f32 %v3349, %v3361
        %v3376 = vadd.f32 %v3350, %v3361
        %v3377 = vadd.f32 %v3351, %v3361
        %v3378 = vadd.f32 %v3352, %v3361
        %v3379 = vadd.f32 %v3353, %v3361
        %v3380 = vadd.f32 %v3354, %v3361
        %v3381 = vadd.f32 %v3355, %v3361
        %v3382 = vadd.f32 %v3356, %v3361
        %v3383 = vadd.f32 %v3357, %v3361
        %v3384 = vadd.f32 %v3358, %v3361
        %v3385 = vadd.f32 %v3359, %v3361
        %v3386 = vmax.f32 %v3362, 0.0
        %v3387 = vmax.f32 %v3363, 0.0
        %v3388 = vmax.f32 %v3364, 0.0
        %v3389 = vmax.f32 %v3365, 0.0
        %v3390 = vmax.f32 %v3366, 0.0
        %v3391 = vmax.f32 %v3367, 0.0
        %v3392 = vmax.f32 %v3368, 0.0
        %v3393 = vmax.f32 %v3369, 0.0
        %v3394 = vmax.f32 %v3370, 0.0
        %v3395 = vmax.f32 %v3371, 0.0
        %v3396 = vmax.f32 %v3372, 0.0
        %v3397 = vmax.f32 %v3373, 0.0
        %v3398 = vmax.f32 %v3374, 0.0
        %v3399 = vmax.f32 %v3375, 0.0
        %v3400 = vmax.f32 %v3376, 0.0
        %v3401 = vmax.f32 %v3377, 0.0
        %v3402 = vmax.f32 %v3378, 0.0
        %v3403 = vmax.f32 %v3379, 0.0
        %v3404 = vmax.f32 %v3380, 0.0
        %v3405 = vmax.f32 %v3381, 0.0
        %v3406 = vmax.f32 %v3382, 0.0
        %v3407 = vmax.f32 %v3383, 0.0
        %v3408 = vmax.f32 %v3384, 0.0
        %v3409 = vmax.f32 %v3385, 0.0
        %v3410 = vpack.c.bf16 %v3386, %v3386
        %v3411 = vpack.c.bf16 %v3387, %v3387
        %v3412 = vpack.c.bf16 %v3388, %v3388
        %v3413 = vpack.c.bf16 %v3389, %v3389
        %v3414 = vpack.c.bf16 %v3390, %v3390
        %v3415 = vpack.c.bf16 %v3391, %v3391
        %v3416 = vpack.c.bf16 %v3392, %v3392
        %v3417 = vpack.c.bf16 %v3393, %v3393
        %v3418 = vpack.c.bf16 %v3394, %v3394
        %v3419 = vpack.c.bf16 %v3395, %v3395
        %v3420 = vpack.c.bf16 %v3396, %v3396
        %v3421 = vpack.c.bf16 %v3397, %v3397
        %v3422 = vpack.c.bf16 %v3398, %v3398
        %v3423 = vpack.c.bf16 %v3399, %v3399
        %v3424 = vpack.c.bf16 %v3400, %v3400
        %v3425 = vpack.c.bf16 %v3401, %v3401
        %v3426 = vpack.c.bf16 %v3402, %v3402
        %v3427 = vpack.c.bf16 %v3403, %v3403
        %v3428 = vpack.c.bf16 %v3404, %v3404
        %v3429 = vpack.c.bf16 %v3405, %v3405
        %v3430 = vpack.c.bf16 %v3406, %v3406
        %v3431 = vpack.c.bf16 %v3407, %v3407
        %v3432 = vpack.c.bf16 %v3408, %v3408
        %v3433 = vpack.c.bf16 %v3409, %v3409
        %3434 = vst [vmem:[#allocation4] sm:$0xf] %v3410
        %3435 = vst [vmem:[#allocation4 + $0x4] sm:$0xf] %v3411
        %3436 = vst [vmem:[#allocation4 + $0x8] sm:$0xf] %v3412
        %3437 = vst [vmem:[#allocation4 + $0xc] sm:$0xf] %v3413
        %3438 = vst [vmem:[#allocation4 + $0x10] sm:$0xf] %v3414
        %3439 = vst [vmem:[#allocation4 + $0x14] sm:$0xf] %v3415
        %3440 = vst [vmem:[#allocation4 + $0x18] sm:$0xf] %v3416
        %3441 = vst [vmem:[#allocation4 + $0x1c] sm:$0xf] %v3417
        %3442 = vst [vmem:[#allocation4 + $0x20] sm:$0xf] %v3418
        %3443 = vst [vmem:[#allocation4 + $0x24] sm:$0xf] %v3419
        %3444 = vst [vmem:[#allocation4 + $0x28] sm:$0xf] %v3420
        %3445 = vst [vmem:[#allocation4 + $0x2c] sm:$0xf] %v3421
        %3446 = vst [vmem:[#allocation4 + $0x30] sm:$0xf] %v3422
        %3447 = vst [vmem:[#allocation4 + $0x34] sm:$0xf] %v3423
        %3448 = vst [vmem:[#allocation4 + $0x38] sm:$0xf] %v3424
        %3449 = vst [vmem:[#allocation4 + $0x3c] sm:$0xf] %v3425
        %3450 = vst [vmem:[#allocation4 + $0x40] sm:$0xf] %v3426
        %3451 = vst [vmem:[#allocation4 + $0x44] sm:$0xf] %v3427
        %3452 = vst [vmem:[#allocation4 + $0x48] sm:$0xf] %v3428
        %3453 = vst [vmem:[#allocation4 + $0x4c] sm:$0xf] %v3429
        %3454 = vst [vmem:[#allocation4 + $0x50] sm:$0xf] %v3430
        %3455 = vst [vmem:[#allocation4 + $0x54] sm:$0xf] %v3431
        %3456 = vst [vmem:[#allocation4 + $0x58] sm:$0xf] %v3432
        %3457 = vst [vmem:[#allocation4 + $0x5c] sm:$0xf] %v3433
        // Predicated region
        $region97: #{tpu_custom_call.1} parent=59 // pred_check
          %p3458 = pneg %p1056
        $region98: #{tpu_custom_call.1} parent=59 // pred_check_branch
          %3460 = sbr.rel (%p3458) target = $region100
        $region99: #{tpu_custom_call.1} parent=59 // pred_region
          %3461 = vst [vmem:[#allocation4] sm:$0xf] 0
          %3462 = vst [vmem:[#allocation4 + $0x4] sm:$0xf] 0
          %3463 = vst [vmem:[#allocation4 + $0x8] sm:$0xf] 0
          %3464 = vst [vmem:[#allocation4 + $0xc] sm:$0xf] 0
        $region100: #{tpu_custom_call.1} parent=59 // pred_fallthru
          _
        // Predicated region
        $region101: #{tpu_custom_call.1} parent=59 // pred_check
          %p3465 = pneg %p1066
        $region102: #{tpu_custom_call.1} parent=59 // pred_check_branch
          %3467 = sbr.rel (%p3465) target = $region104
        $region103: #{tpu_custom_call.1} parent=59 // pred_region
          %3468 = vst [vmem:[#allocation4 + $0x50] sm:$0xf] 0
          %3469 = vst [vmem:[#allocation4 + $0x54] sm:$0xf] 0
          %3470 = vst [vmem:[#allocation4 + $0x58] sm:$0xf] 0
          %3471 = vst [vmem:[#allocation4 + $0x5c] sm:$0xf] 0
        $region104: #{tpu_custom_call.1} parent=59 // pred_fallthru
          _
        %v3472 = vld [vmem:[#allocation4] sm:$0xf]
        %v3473 = vld [vmem:[#allocation4 + $0x4] sm:$0xf]
        %v3474 = vld [vmem:[#allocation4 + $0x8] sm:$0xf]
        %v3475 = vld [vmem:[#allocation4 + $0xc] sm:$0xf]
        %v3476 = vld [vmem:[#allocation4 + $0x10] sm:$0xf]
        %v3477 = vld [vmem:[#allocation4 + $0x14] sm:$0xf]
        %v3478 = vld [vmem:[#allocation4 + $0x18] sm:$0xf]
        %v3479 = vld [vmem:[#allocation4 + $0x1c] sm:$0xf]
        %v3480 = vld [vmem:[#allocation4 + $0x20] sm:$0xf]
        %v3481 = vld [vmem:[#allocation4 + $0x24] sm:$0xf]
        %v3482 = vld [vmem:[#allocation4 + $0x28] sm:$0xf]
        %v3483 = vld [vmem:[#allocation4 + $0x2c] sm:$0xf]
        %v3484 = vld [vmem:[#allocation4 + $0x30] sm:$0xf]
        %v3485 = vld [vmem:[#allocation4 + $0x34] sm:$0xf]
        %v3486 = vld [vmem:[#allocation4 + $0x38] sm:$0xf]
        %v3487 = vld [vmem:[#allocation4 + $0x3c] sm:$0xf]
        %v3488 = vld [vmem:[#allocation14] sm:$0xf]
        %v3489 = vld [vmem:[#allocation14 + $0x4] sm:$0xf]
        %v3490 = vld [vmem:[#allocation14 + $0x8] sm:$0xf]
        %v3491 = vld [vmem:[#allocation14 + $0xc] sm:$0xf]
        %v3492 = vld [vmem:[#allocation14 + $0x10] sm:$0xf]
        %v3493 = vld [vmem:[#allocation14 + $0x14] sm:$0xf]
        %v3494 = vld [vmem:[#allocation14 + $0x18] sm:$0xf]
        %v3495 = vld [vmem:[#allocation14 + $0x1c] sm:$0xf]
        %v3496 = vld [vmem:[#allocation14 + $0x20] sm:$0xf]
        %v3497 = vld [vmem:[#allocation14 + $0x24] sm:$0xf]
        %v3498 = vld [vmem:[#allocation14 + $0x28] sm:$0xf]
        %v3499 = vld [vmem:[#allocation14 + $0x2c] sm:$0xf]
        %v3500 = vld [vmem:[#allocation14 + $0x30] sm:$0xf]
        %v3501 = vld [vmem:[#allocation14 + $0x34] sm:$0xf]
        %v3502 = vld [vmem:[#allocation14 + $0x38] sm:$0xf]
        %v3503 = vld [vmem:[#allocation14 + $0x3c] sm:$0xf]
        %v3504 = vld [vmem:[#allocation4 + $0x40] sm:$0xf]
        %v3505 = vld [vmem:[#allocation4 + $0x44] sm:$0xf]
        %v3506 = vld [vmem:[#allocation4 + $0x48] sm:$0xf]
        %v3507 = vld [vmem:[#allocation4 + $0x4c] sm:$0xf]
        %v3508 = vld [vmem:[#allocation14 + $0x40] sm:$0xf]
        %v3509 = vld [vmem:[#allocation14 + $0x44] sm:$0xf]
        %v3510 = vld [vmem:[#allocation14 + $0x48] sm:$0xf]
        %v3511 = vld [vmem:[#allocation14 + $0x4c] sm:$0xf]
        %v3512 = vld [vmem:[#allocation14 + $0x50] sm:$0xf]
        %v3513 = vld [vmem:[#allocation14 + $0x54] sm:$0xf]
        %v3514 = vld [vmem:[#allocation14 + $0x58] sm:$0xf]
        %v3515 = vld [vmem:[#allocation14 + $0x5c] sm:$0xf]
        %v3516 = vld [vmem:[#allocation14 + $0x60] sm:$0xf]
        %v3517 = vld [vmem:[#allocation14 + $0x64] sm:$0xf]
        %v3518 = vld [vmem:[#allocation14 + $0x68] sm:$0xf]
        %v3519 = vld [vmem:[#allocation14 + $0x6c] sm:$0xf]
        %v3520 = vld [vmem:[#allocation14 + $0x70] sm:$0xf]
        %v3521 = vld [vmem:[#allocation14 + $0x74] sm:$0xf]
        %v3522 = vld [vmem:[#allocation14 + $0x78] sm:$0xf]
        %v3523 = vld [vmem:[#allocation14 + $0x7c] sm:$0xf]
        %v3540 = vunpack.c.l.b16 %v3476
        %v3541 = vunpack.c.l.b16 %v3477
        %v3542 = vunpack.c.l.b16 %v3478
        %v3543 = vunpack.c.l.b16 %v3479
        %v3544 = vunpack.c.l.b16 %v3480
        %v3545 = vunpack.c.l.b16 %v3481
        %v3546 = vunpack.c.l.b16 %v3482
        %v3547 = vunpack.c.l.b16 %v3483
        %v3548 = vunpack.c.l.b16 %v3484
        %v3549 = vunpack.c.l.b16 %v3485
        %v3550 = vunpack.c.l.b16 %v3486
        %v3551 = vunpack.c.l.b16 %v3487
        %v3552 = vunpack.c.l.b16 %v3504
        %v3553 = vunpack.c.l.b16 %v3505
        %v3554 = vunpack.c.l.b16 %v3506
        %v3555 = vunpack.c.l.b16 %v3507
        %v3556 = vpack.c.b16 %v3541, %v3540
        %v3557 = vpack.c.b16 %v3543, %v3542
        %v3558 = vpack.c.b16 %v3545, %v3544
        %v3559 = vpack.c.b16 %v3547, %v3546
        %v3560 = vpack.c.b16 %v3549, %v3548
        %v3561 = vpack.c.b16 %v3551, %v3550
        %v3562 = vpack.c.b16 %v3553, %v3552
        %v3563 = vpack.c.b16 %v3555, %v3554
        %v3588 = vunpack.c.l.b16 %v3508
        %v3589 = vunpack.c.l.b16 %v3509
        %v3590 = vunpack.c.l.b16 %v3510
        %v3591 = vunpack.c.l.b16 %v3511
        %v3592 = vunpack.c.l.b16 %v3512
        %v3593 = vunpack.c.l.b16 %v3513
        %v3594 = vunpack.c.l.b16 %v3514
        %v3595 = vunpack.c.l.b16 %v3515
        %v3596 = vunpack.c.l.b16 %v3516
        %v3597 = vunpack.c.l.b16 %v3517
        %v3598 = vunpack.c.l.b16 %v3518
        %v3599 = vunpack.c.l.b16 %v3519
        %v3600 = vunpack.c.l.b16 %v3520
        %v3601 = vunpack.c.l.b16 %v3521
        %v3602 = vunpack.c.l.b16 %v3522
        %v3603 = vunpack.c.l.b16 %v3523
        %v3604 = vpack.c.b16 %v3589, %v3588
        %v3605 = vpack.c.b16 %v3591, %v3590
        %v3606 = vpack.c.b16 %v3593, %v3592
        %v3607 = vpack.c.b16 %v3595, %v3594
        %v3608 = vpack.c.b16 %v3597, %v3596
        %v3609 = vpack.c.b16 %v3599, %v3598
        %v3610 = vpack.c.b16 %v3601, %v3600
        %v3611 = vpack.c.b16 %v3603, %v3602
        %3620 = vmatpush.bf16.msra.mxu0 %v3611
        %3621 = vmatpush.bf16.msra.mxu0 %v3610
        %3622 = vmatpush.bf16.msra.mxu0 %v3609
        %3623 = vmatpush.bf16.msra.mxu0 %v3608
        %3624 = vmatpush.bf16.msra.mxu0 %v3607
        %3625 = vmatpush.bf16.msra.mxu0 %v3606
        %3626 = vmatpush.bf16.msra.mxu0 %v3605
        %3627 = vmatpush.bf16.msra.mxu0 %v3604
        %3628 = vmatmul.bf16.gmra.mxu0 %v3556
        %v3629 = vpop.f32.mrf.mxu0
        %v3630 = vadd.f32 0.0, %v3629
        %v3631 = vpop.f32.mrf.mxu0
        %v3632 = vadd.f32 0.0, %v3631
        %3633 = vmatmul.bf16.gmra.mxu0 %v3557
        %v3634 = vpop.f32.mrf.mxu0
        %v3635 = vadd.f32 0.0, %v3634
        %v3636 = vpop.f32.mrf.mxu0
        %v3637 = vadd.f32 0.0, %v3636
        %3638 = vmatmul.bf16.gmra.mxu0 %v3558
        %v3639 = vpop.f32.mrf.mxu0
        %v3640 = vadd.f32 0.0, %v3639
        %v3641 = vpop.f32.mrf.mxu0
        %v3642 = vadd.f32 0.0, %v3641
        %3643 = vmatmul.bf16.gmra.mxu0 %v3559
        %v3644 = vpop.f32.mrf.mxu0
        %v3645 = vadd.f32 0.0, %v3644
        %v3646 = vpop.f32.mrf.mxu0
        %v3647 = vadd.f32 0.0, %v3646
        %3648 = vmatmul.bf16.gmra.mxu0 %v3560
        %v3649 = vpop.f32.mrf.mxu0
        %v3650 = vadd.f32 0.0, %v3649
        %v3651 = vpop.f32.mrf.mxu0
        %v3652 = vadd.f32 0.0, %v3651
        %3653 = vmatmul.bf16.gmra.mxu0 %v3561
        %v3654 = vpop.f32.mrf.mxu0
        %v3655 = vadd.f32 0.0, %v3654
        %v3656 = vpop.f32.mrf.mxu0
        %v3657 = vadd.f32 0.0, %v3656
        %3658 = vmatmul.bf16.gmra.mxu0 %v3562
        %v3659 = vpop.f32.mrf.mxu0
        %v3660 = vadd.f32 0.0, %v3659
        %v3661 = vpop.f32.mrf.mxu0
        %v3662 = vadd.f32 0.0, %v3661
        %3663 = vmatmul.bf16.gmra.mxu0 %v3563
        %v3664 = vpop.f32.mrf.mxu0
        %v3665 = vadd.f32 0.0, %v3664
        %v3666 = vpop.f32.mrf.mxu0
        %v3667 = vadd.f32 0.0, %v3666
        %3668 = vdwg.mxu0
        %v3673 = vunpack.c.l.b16 %v3472
        %v3674 = vunpack.c.l.b16 %v3473
        %v3675 = vunpack.c.l.b16 %v3474
        %v3676 = vunpack.c.l.b16 %v3475
        %v3677 = vpack.c.b16 %v3674, %v3673
        %v3678 = vpack.c.b16 %v3676, %v3675
        %v3697 = vunpack.c.l.b16 %v3488
        %v3698 = vunpack.c.l.b16 %v3489
        %v3699 = vunpack.c.l.b16 %v3490
        %v3700 = vunpack.c.l.b16 %v3491
        %v3701 = vunpack.c.l.b16 %v3492
        %v3702 = vunpack.c.l.b16 %v3493
        %v3703 = vunpack.c.l.b16 %v3494
        %v3704 = vunpack.c.l.b16 %v3495
        %v3705 = vunpack.c.l.b16 %v3496
        %v3706 = vunpack.c.l.b16 %v3497
        %v3707 = vunpack.c.l.b16 %v3498
        %v3708 = vunpack.c.l.b16 %v3499
        %v3709 = vunpack.c.l.b16 %v3500
        %v3710 = vunpack.c.l.b16 %v3501
        %v3711 = vunpack.c.l.b16 %v3502
        %v3712 = vunpack.c.l.b16 %v3503
        %v3713 = vpack.c.b16 %v3698, %v3697
        %v3714 = vpack.c.b16 %v3700, %v3699
        %v3715 = vpack.c.b16 %v3702, %v3701
        %v3716 = vpack.c.b16 %v3704, %v3703
        %v3717 = vpack.c.b16 %v3706, %v3705
        %v3718 = vpack.c.b16 %v3708, %v3707
        %v3719 = vpack.c.b16 %v3710, %v3709
        %v3720 = vpack.c.b16 %v3712, %v3711
        %3729 = vmatpush.bf16.msra.mxu0 %v3720
        %3730 = vmatpush.bf16.msra.mxu0 %v3719
        %3731 = vmatpush.bf16.msra.mxu0 %v3718
        %3732 = vmatpush.bf16.msra.mxu0 %v3717
        %3733 = vmatpush.bf16.msra.mxu0 %v3716
        %3734 = vmatpush.bf16.msra.mxu0 %v3715
        %3735 = vmatpush.bf16.msra.mxu0 %v3714
        %3736 = vmatpush.bf16.msra.mxu0 %v3713
        %3737 = vmatmul.bf16.gmra.mxu0 %v3677
        %v3738 = vpop.f32.mrf.mxu0
        %v3739 = vadd.f32 %v3630, %v3738
        %v3740 = vpop.f32.mrf.mxu0
        %v3741 = vadd.f32 %v3632, %v3740
        %3742 = vmatmul.bf16.gmra.mxu0 %v3678
        %v3743 = vpop.f32.mrf.mxu0
        %v3744 = vadd.f32 %v3635, %v3743
        %v3745 = vpop.f32.mrf.mxu0
        %v3746 = vadd.f32 %v3637, %v3745
        %3747 = vmatmul.bf16.gmra.mxu0 %v3556
        %v3748 = vpop.f32.mrf.mxu0
        %v3749 = vadd.f32 %v3640, %v3748
        %v3750 = vpop.f32.mrf.mxu0
        %v3751 = vadd.f32 %v3642, %v3750
        %3752 = vmatmul.bf16.gmra.mxu0 %v3557
        %v3753 = vpop.f32.mrf.mxu0
        %v3754 = vadd.f32 %v3645, %v3753
        %v3755 = vpop.f32.mrf.mxu0
        %v3756 = vadd.f32 %v3647, %v3755
        %3757 = vmatmul.bf16.gmra.mxu0 %v3558
        %v3758 = vpop.f32.mrf.mxu0
        %v3759 = vadd.f32 %v3650, %v3758
        %v3760 = vpop.f32.mrf.mxu0
        %v3761 = vadd.f32 %v3652, %v3760
        %3762 = vmatmul.bf16.gmra.mxu0 %v3559
        %v3763 = vpop.f32.mrf.mxu0
        %v3764 = vadd.f32 %v3655, %v3763
        %v3765 = vpop.f32.mrf.mxu0
        %v3766 = vadd.f32 %v3657, %v3765
        %3767 = vmatmul.bf16.gmra.mxu0 %v3560
        %v3768 = vpop.f32.mrf.mxu0
        %v3769 = vadd.f32 %v3660, %v3768
        %v3770 = vpop.f32.mrf.mxu0
        %v3771 = vadd.f32 %v3662, %v3770
        %3772 = vmatmul.bf16.gmra.mxu0 %v3561
        %v3773 = vpop.f32.mrf.mxu0
        %v3774 = vadd.f32 %v3665, %v3773
        %v3775 = vpop.f32.mrf.mxu0
        %v3776 = vadd.f32 %v3667, %v3775
        %3777 = vdwg.mxu0
        %v3778 = vld [vmem:[#allocation4 + $0x20] sm:$0xf]
        %v3779 = vld [vmem:[#allocation4 + $0x24] sm:$0xf]
        %v3780 = vld [vmem:[#allocation4 + $0x28] sm:$0xf]
        %v3781 = vld [vmem:[#allocation4 + $0x2c] sm:$0xf]
        %v3782 = vld [vmem:[#allocation4 + $0x30] sm:$0xf]
        %v3783 = vld [vmem:[#allocation4 + $0x34] sm:$0xf]
        %v3784 = vld [vmem:[#allocation4 + $0x38] sm:$0xf]
        %v3785 = vld [vmem:[#allocation4 + $0x3c] sm:$0xf]
        %v3786 = vld [vmem:[#allocation4 + $0x40] sm:$0xf]
        %v3787 = vld [vmem:[#allocation4 + $0x44] sm:$0xf]
        %v3788 = vld [vmem:[#allocation4 + $0x48] sm:$0xf]
        %v3789 = vld [vmem:[#allocation4 + $0x4c] sm:$0xf]
        %v3790 = vld [vmem:[#allocation4 + $0x50] sm:$0xf]
        %v3791 = vld [vmem:[#allocation4 + $0x54] sm:$0xf]
        %v3792 = vld [vmem:[#allocation4 + $0x58] sm:$0xf]
        %v3793 = vld [vmem:[#allocation4 + $0x5c] sm:$0xf]
        %v3794 = vld [vmem:[#allocation14 + $0x80] sm:$0xf]
        %v3795 = vld [vmem:[#allocation14 + $0x84] sm:$0xf]
        %v3796 = vld [vmem:[#allocation14 + $0x88] sm:$0xf]
        %v3797 = vld [vmem:[#allocation14 + $0x8c] sm:$0xf]
        %v3798 = vld [vmem:[#allocation14 + $0x90] sm:$0xf]
        %v3799 = vld [vmem:[#allocation14 + $0x94] sm:$0xf]
        %v3800 = vld [vmem:[#allocation14 + $0x98] sm:$0xf]
        %v3801 = vld [vmem:[#allocation14 + $0x9c] sm:$0xf]
        %v3802 = vld [vmem:[#allocation14 + $0xa0] sm:$0xf]
        %v3803 = vld [vmem:[#allocation14 + $0xa4] sm:$0xf]
        %v3804 = vld [vmem:[#allocation14 + $0xa8] sm:$0xf]
        %v3805 = vld [vmem:[#allocation14 + $0xac] sm:$0xf]
        %v3806 = vld [vmem:[#allocation14 + $0xb0] sm:$0xf]
        %v3807 = vld [vmem:[#allocation14 + $0xb4] sm:$0xf]
        %v3808 = vld [vmem:[#allocation14 + $0xb8] sm:$0xf]
        %v3809 = vld [vmem:[#allocation14 + $0xbc] sm:$0xf]
        %v3826 = vunpack.c.l.b16 %v3778
        %v3827 = vunpack.c.l.b16 %v3779
        %v3828 = vunpack.c.l.b16 %v3780
        %v3829 = vunpack.c.l.b16 %v3781
        %v3830 = vunpack.c.l.b16 %v3782
        %v3831 = vunpack.c.l.b16 %v3783
        %v3832 = vunpack.c.l.b16 %v3784
        %v3833 = vunpack.c.l.b16 %v3785
        %v3834 = vunpack.c.l.b16 %v3786
        %v3835 = vunpack.c.l.b16 %v3787
        %v3836 = vunpack.c.l.b16 %v3788
        %v3837 = vunpack.c.l.b16 %v3789
        %v3838 = vunpack.c.l.b16 %v3790
        %v3839 = vunpack.c.l.b16 %v3791
        %v3840 = vunpack.c.l.b16 %v3792
        %v3841 = vunpack.c.l.b16 %v3793
        %v3842 = vpack.c.b16 %v3827, %v3826
        %v3843 = vpack.c.b16 %v3829, %v3828
        %v3844 = vpack.c.b16 %v3831, %v3830
        %v3845 = vpack.c.b16 %v3833, %v3832
        %v3846 = vpack.c.b16 %v3835, %v3834
        %v3847 = vpack.c.b16 %v3837, %v3836
        %v3848 = vpack.c.b16 %v3839, %v3838
        %v3849 = vpack.c.b16 %v3841, %v3840
        %v3874 = vunpack.c.l.b16 %v3794
        %v3875 = vunpack.c.l.b16 %v3795
        %v3876 = vunpack.c.l.b16 %v3796
        %v3877 = vunpack.c.l.b16 %v3797
        %v3878 = vunpack.c.l.b16 %v3798
        %v3879 = vunpack.c.l.b16 %v3799
        %v3880 = vunpack.c.l.b16 %v3800
        %v3881 = vunpack.c.l.b16 %v3801
        %v3882 = vunpack.c.l.b16 %v3802
        %v3883 = vunpack.c.l.b16 %v3803
        %v3884 = vunpack.c.l.b16 %v3804
        %v3885 = vunpack.c.l.b16 %v3805
        %v3886 = vunpack.c.l.b16 %v3806
        %v3887 = vunpack.c.l.b16 %v3807
        %v3888 = vunpack.c.l.b16 %v3808
        %v3889 = vunpack.c.l.b16 %v3809
        %v3890 = vpack.c.b16 %v3875, %v3874
        %v3891 = vpack.c.b16 %v3877, %v3876
        %v3892 = vpack.c.b16 %v3879, %v3878
        %v3893 = vpack.c.b16 %v3881, %v3880
        %v3894 = vpack.c.b16 %v3883, %v3882
        %v3895 = vpack.c.b16 %v3885, %v3884
        %v3896 = vpack.c.b16 %v3887, %v3886
        %v3897 = vpack.c.b16 %v3889, %v3888
        %3906 = vmatpush.bf16.msra.mxu0 %v3897
        %3907 = vmatpush.bf16.msra.mxu0 %v3896
        %3908 = vmatpush.bf16.msra.mxu0 %v3895
        %3909 = vmatpush.bf16.msra.mxu0 %v3894
        %3910 = vmatpush.bf16.msra.mxu0 %v3893
        %3911 = vmatpush.bf16.msra.mxu0 %v3892
        %3912 = vmatpush.bf16.msra.mxu0 %v3891
        %3913 = vmatpush.bf16.msra.mxu0 %v3890
        %3914 = vmatmul.bf16.gmra.mxu0 %v3842
        %v3915 = vpop.f32.mrf.mxu0
        %v3916 = vadd.f32 0.0, %v3915
        %v3917 = vpop.f32.mrf.mxu0
        %v3918 = vadd.f32 0.0, %v3917
        %3919 = vmatmul.bf16.gmra.mxu0 %v3843
        %v3920 = vpop.f32.mrf.mxu0
        %v3921 = vadd.f32 0.0, %v3920
        %v3922 = vpop.f32.mrf.mxu0
        %v3923 = vadd.f32 0.0, %v3922
        %3924 = vmatmul.bf16.gmra.mxu0 %v3844
        %v3925 = vpop.f32.mrf.mxu0
        %v3926 = vadd.f32 0.0, %v3925
        %v3927 = vpop.f32.mrf.mxu0
        %v3928 = vadd.f32 0.0, %v3927
        %3929 = vmatmul.bf16.gmra.mxu0 %v3845
        %v3930 = vpop.f32.mrf.mxu0
        %v3931 = vadd.f32 0.0, %v3930
        %v3932 = vpop.f32.mrf.mxu0
        %v3933 = vadd.f32 0.0, %v3932
        %3934 = vmatmul.bf16.gmra.mxu0 %v3846
        %v3935 = vpop.f32.mrf.mxu0
        %v3936 = vadd.f32 0.0, %v3935
        %v3937 = vpop.f32.mrf.mxu0
        %v3938 = vadd.f32 0.0, %v3937
        %3939 = vmatmul.bf16.gmra.mxu0 %v3847
        %v3940 = vpop.f32.mrf.mxu0
        %v3941 = vadd.f32 0.0, %v3940
        %v3942 = vpop.f32.mrf.mxu0
        %v3943 = vadd.f32 0.0, %v3942
        %3944 = vmatmul.bf16.gmra.mxu0 %v3848
        %v3945 = vpop.f32.mrf.mxu0
        %v3946 = vadd.f32 0.0, %v3945
        %v3947 = vpop.f32.mrf.mxu0
        %v3948 = vadd.f32 0.0, %v3947
        %3949 = vmatmul.bf16.gmra.mxu0 %v3849
        %v3950 = vpop.f32.mrf.mxu0
        %v3951 = vadd.f32 0.0, %v3950
        %v3952 = vpop.f32.mrf.mxu0
        %v3953 = vadd.f32 0.0, %v3952
        %3954 = vdwg.mxu0
        %v3955 = vadd.f32 %v3739, %v3916
        %v3956 = vadd.f32 %v3741, %v3918
        %v3957 = vadd.f32 %v3744, %v3921
        %v3958 = vadd.f32 %v3746, %v3923
        %v3959 = vadd.f32 %v3749, %v3926
        %v3960 = vadd.f32 %v3751, %v3928
        %v3961 = vadd.f32 %v3754, %v3931
        %v3962 = vadd.f32 %v3756, %v3933
        %v3963 = vadd.f32 %v3759, %v3936
        %v3964 = vadd.f32 %v3761, %v3938
        %v3965 = vadd.f32 %v3764, %v3941
        %v3966 = vadd.f32 %v3766, %v3943
        %v3967 = vadd.f32 %v3769, %v3946
        %v3968 = vadd.f32 %v3771, %v3948
        %v3969 = vadd.f32 %v3774, %v3951
        %v3970 = vadd.f32 %v3776, %v3953
        %v3971 = vld [vmem:[%s8 + $0x3] sm:$0x1]
        %v3972 = vperm.slane %v3971, 0
        %v3973 = vadd.f32 %v3955, %v3972
        %v3974 = vadd.f32 %v3956, %v3972
        %v3975 = vadd.f32 %v3957, %v3972
        %v3976 = vadd.f32 %v3958, %v3972
        %v3977 = vadd.f32 %v3959, %v3972
        %v3978 = vadd.f32 %v3960, %v3972
        %v3979 = vadd.f32 %v3961, %v3972
        %v3980 = vadd.f32 %v3962, %v3972
        %v3981 = vadd.f32 %v3963, %v3972
        %v3982 = vadd.f32 %v3964, %v3972
        %v3983 = vadd.f32 %v3965, %v3972
        %v3984 = vadd.f32 %v3966, %v3972
        %v3985 = vadd.f32 %v3967, %v3972
        %v3986 = vadd.f32 %v3968, %v3972
        %v3987 = vadd.f32 %v3969, %v3972
        %v3988 = vadd.f32 %v3970, %v3972
        %v3989 = vmax.f32 %v3973, 0.0
        %v3990 = vmax.f32 %v3974, 0.0
        %v3991 = vmax.f32 %v3975, 0.0
        %v3992 = vmax.f32 %v3976, 0.0
        %v3993 = vmax.f32 %v3977, 0.0
        %v3994 = vmax.f32 %v3978, 0.0
        %v3995 = vmax.f32 %v3979, 0.0
        %v3996 = vmax.f32 %v3980, 0.0
        %v3997 = vmax.f32 %v3981, 0.0
        %v3998 = vmax.f32 %v3982, 0.0
        %v3999 = vmax.f32 %v3983, 0.0
        %v4000 = vmax.f32 %v3984, 0.0
        %v4001 = vmax.f32 %v3985, 0.0
        %v4002 = vmax.f32 %v3986, 0.0
        %v4003 = vmax.f32 %v3987, 0.0
        %v4004 = vmax.f32 %v3988, 0.0
        %v4005 = vpack.c.bf16 %v3989, %v3989
        %v4006 = vpack.c.bf16 %v3990, %v3990
        %v4007 = vpack.c.bf16 %v3991, %v3991
        %v4008 = vpack.c.bf16 %v3992, %v3992
        %v4009 = vpack.c.bf16 %v3993, %v3993
        %v4010 = vpack.c.bf16 %v3994, %v3994
        %v4011 = vpack.c.bf16 %v3995, %v3995
        %v4012 = vpack.c.bf16 %v3996, %v3996
        %v4013 = vpack.c.bf16 %v3997, %v3997
        %v4014 = vpack.c.bf16 %v3998, %v3998
        %v4015 = vpack.c.bf16 %v3999, %v3999
        %v4016 = vpack.c.bf16 %v4000, %v4000
        %v4017 = vpack.c.bf16 %v4001, %v4001
        %v4018 = vpack.c.bf16 %v4002, %v4002
        %v4019 = vpack.c.bf16 %v4003, %v4003
        %v4020 = vpack.c.bf16 %v4004, %v4004
        %4021 = vst [vmem:[#allocation3 + $0x4] sm:$0xf] %v4005
        %4022 = vst [vmem:[#allocation3 + $0x8] sm:$0xf] %v4006
        %4023 = vst [vmem:[#allocation3 + $0xc] sm:$0xf] %v4007
        %4024 = vst [vmem:[#allocation3 + $0x10] sm:$0xf] %v4008
        %4025 = vst [vmem:[#allocation3 + $0x14] sm:$0xf] %v4009
        %4026 = vst [vmem:[#allocation3 + $0x18] sm:$0xf] %v4010
        %4027 = vst [vmem:[#allocation3 + $0x1c] sm:$0xf] %v4011
        %4028 = vst [vmem:[#allocation3 + $0x20] sm:$0xf] %v4012
        %4029 = vst [vmem:[#allocation3 + $0x24] sm:$0xf] %v4013
        %4030 = vst [vmem:[#allocation3 + $0x28] sm:$0xf] %v4014
        %4031 = vst [vmem:[#allocation3 + $0x2c] sm:$0xf] %v4015
        %4032 = vst [vmem:[#allocation3 + $0x30] sm:$0xf] %v4016
        %4033 = vst [vmem:[#allocation3 + $0x34] sm:$0xf] %v4017
        %4034 = vst [vmem:[#allocation3 + $0x38] sm:$0xf] %v4018
        %4035 = vst [vmem:[#allocation3 + $0x3c] sm:$0xf] %v4019
        %4036 = vst [vmem:[#allocation3 + $0x40] sm:$0xf] %v4020
        %v4037 = vld [vmem:[#allocation3] sm:$0x8]
        %v4038 = vld [vmem:[#allocation3 + $0x4] sm:$0xf]
        %v4039 = vld [vmem:[#allocation3 + $0x8] sm:$0xf]
        %v4040 = vld [vmem:[#allocation3 + $0xc] sm:$0xf]
        %v4041 = vld [vmem:[#allocation3 + $0x10] sm:$0xf]
        %v4042 = vld [vmem:[#allocation3 + $0x14] sm:$0xf]
        %v4043 = vld [vmem:[#allocation3 + $0x18] sm:$0xf]
        %v4044 = vld [vmem:[#allocation3 + $0x1c] sm:$0xf]
        %v4045 = vld [vmem:[#allocation3 + $0x20] sm:$0xf]
        %v4046 = vld [vmem:[#allocation3 + $0x24] sm:$0xf]
        %v4047 = vld [vmem:[#allocation3 + $0x28] sm:$0xf]
        %v4048 = vld [vmem:[#allocation3 + $0x2c] sm:$0xf]
        %v4049 = vld [vmem:[#allocation3 + $0x30] sm:$0xf]
        %v4050 = vld [vmem:[#allocation3 + $0x34] sm:$0xf]
        %v4051 = vld [vmem:[#allocation3 + $0x38] sm:$0xf]
        %v4052 = vld [vmem:[#allocation3 + $0x3c] sm:$0xf]
        %v4053 = vld [vmem:[#allocation3 + $0x40] sm:$0x7]
        %4054 = vset.pattern.permute.xlu0 2
        %4055 = vperm.xlu0 %4054, %v1080
        %v4056 = vpop.permute.xlu0 %4055
        %v4059 = vunpack.c.l.s4 839922192
        %v4060 = vunpack.c.0.s8 %v4059
        %v4061 = vperm.slane %v4056, %v4060
        %4062 = vset.pattern.permute.xlu0 2
        %4063 = vperm.xlu0 %4062, %v1081
        %v4064 = vpop.permute.xlu0 %4063
        %v4067 = vunpack.c.l.s4 839922192
        %v4068 = vunpack.c.0.s8 %v4067
        %v4069 = vperm.slane %v4064, %v4068
        %4070 = vset.pattern.permute.xlu0 2
        %4071 = vperm.xlu0 %4070, %v1082
        %v4072 = vpop.permute.xlu0 %4071
        %v4075 = vunpack.c.l.s4 839922192
        %v4076 = vunpack.c.0.s8 %v4075
        %v4077 = vperm.slane %v4072, %v4076
        %4078 = vset.pattern.permute.xlu0 2
        %4079 = vperm.xlu0 %4078, %v1083
        %v4080 = vpop.permute.xlu0 %4079
        %v4083 = vunpack.c.l.s4 839922192
        %v4084 = vunpack.c.0.s8 %v4083
        %v4085 = vperm.slane %v4080, %v4084
        %4086 = vset.pattern.permute.xlu0 2
        %4087 = vperm.xlu0 %4086, %v1084
        %v4088 = vpop.permute.xlu0 %4087
        %v4091 = vunpack.c.l.s4 839922192
        %v4092 = vunpack.c.0.s8 %v4091
        %v4093 = vperm.slane %v4088, %v4092
        %4094 = vset.pattern.permute.xlu0 2
        %4095 = vperm.xlu0 %4094, %v1085
        %v4096 = vpop.permute.xlu0 %4095
        %v4099 = vunpack.c.l.s4 839922192
        %v4100 = vunpack.c.0.s8 %v4099
        %v4101 = vperm.slane %v4096, %v4100
        %4102 = vset.pattern.permute.xlu0 2
        %4103 = vperm.xlu0 %4102, %v1086
        %v4104 = vpop.permute.xlu0 %4103
        %v4107 = vunpack.c.l.s4 839922192
        %v4108 = vunpack.c.0.s8 %v4107
        %v4109 = vperm.slane %v4104, %v4108
        %4110 = vset.pattern.permute.xlu0 2
        %4111 = vperm.xlu0 %4110, %v1087
        %v4112 = vpop.permute.xlu0 %4111
        %v4115 = vunpack.c.l.s4 839922192
        %v4116 = vunpack.c.0.s8 %v4115
        %v4117 = vperm.slane %v4112, %v4116
        %4118 = vset.pattern.permute.xlu0 2
        %4119 = vperm.xlu0 %4118, %v1088
        %v4120 = vpop.permute.xlu0 %4119
        %v4123 = vunpack.c.l.s4 839922192
        %v4124 = vunpack.c.0.s8 %v4123
        %v4125 = vperm.slane %v4120, %v4124
        %4126 = vset.pattern.permute.xlu0 2
        %4127 = vperm.xlu0 %4126, %v1089
        %v4128 = vpop.permute.xlu0 %4127
        %v4131 = vunpack.c.l.s4 839922192
        %v4132 = vunpack.c.0.s8 %v4131
        %v4133 = vperm.slane %v4128, %v4132
        %4134 = vset.pattern.permute.xlu0 2
        %4135 = vperm.xlu0 %4134, %v1090
        %v4136 = vpop.permute.xlu0 %4135
        %v4139 = vunpack.c.l.s4 839922192
        %v4140 = vunpack.c.0.s8 %v4139
        %v4141 = vperm.slane %v4136, %v4140
        %4142 = vset.pattern.permute.xlu0 2
        %4143 = vperm.xlu0 %4142, %v1091
        %v4144 = vpop.permute.xlu0 %4143
        %v4147 = vunpack.c.l.s4 839922192
        %v4148 = vunpack.c.0.s8 %v4147
        %v4149 = vperm.slane %v4144, %v4148
        %4150 = vset.pattern.permute.xlu0 2
        %4151 = vperm.xlu0 %4150, %v1092
        %v4152 = vpop.permute.xlu0 %4151
        %v4155 = vunpack.c.l.s4 839922192
        %v4156 = vunpack.c.0.s8 %v4155
        %v4157 = vperm.slane %v4152, %v4156
        %4158 = vset.pattern.permute.xlu0 2
        %4159 = vperm.xlu0 %4158, %v1093
        %v4160 = vpop.permute.xlu0 %4159
        %v4163 = vunpack.c.l.s4 839922192
        %v4164 = vunpack.c.0.s8 %v4163
        %v4165 = vperm.slane %v4160, %v4164
        %4166 = vset.pattern.permute.xlu0 2
        %4167 = vperm.xlu0 %4166, %v1094
        %v4168 = vpop.permute.xlu0 %4167
        %v4171 = vunpack.c.l.s4 839922192
        %v4172 = vunpack.c.0.s8 %v4171
        %v4173 = vperm.slane %v4168, %v4172
        %4174 = vset.pattern.permute.xlu0 2
        %4175 = vperm.xlu0 %4174, %v1095
        %v4176 = vpop.permute.xlu0 %4175
        %v4179 = vunpack.c.l.s4 839922192
        %v4180 = vunpack.c.0.s8 %v4179
        %v4181 = vperm.slane %v4176, %v4180
        %v4182 = vunpack.c.l.bf16 %v4037
        %v4183 = vunpack.c.l.bf16 %v4038
        %v4184 = vunpack.c.l.bf16 %v4039
        %v4185 = vunpack.c.l.bf16 %v4040
        %v4186 = vunpack.c.l.bf16 %v4041
        %v4187 = vunpack.c.l.bf16 %v4042
        %v4188 = vunpack.c.l.bf16 %v4043
        %v4189 = vunpack.c.l.bf16 %v4044
        %v4190 = vunpack.c.l.bf16 %v4045
        %v4191 = vunpack.c.l.bf16 %v4046
        %v4192 = vunpack.c.l.bf16 %v4047
        %v4193 = vunpack.c.l.bf16 %v4048
        %v4194 = vunpack.c.l.bf16 %v4049
        %v4195 = vunpack.c.l.bf16 %v4050
        %v4196 = vunpack.c.l.bf16 %v4051
        %v4197 = vunpack.c.l.bf16 %v4052
        %v4198 = vunpack.c.l.bf16 %v4053
        %v4199 = vunpack.c.l.bf16 %v4061
        %v4200 = vunpack.c.l.bf16 %v4069
        %v4201 = vunpack.c.l.bf16 %v4077
        %v4202 = vunpack.c.l.bf16 %v4085
        %v4203 = vunpack.c.l.bf16 %v4093
        %v4204 = vunpack.c.l.bf16 %v4101
        %v4205 = vunpack.c.l.bf16 %v4109
        %v4206 = vunpack.c.l.bf16 %v4117
        %v4207 = vunpack.c.l.bf16 %v4125
        %v4208 = vunpack.c.l.bf16 %v4133
        %v4209 = vunpack.c.l.bf16 %v4141
        %v4210 = vunpack.c.l.bf16 %v4149
        %v4211 = vunpack.c.l.bf16 %v4157
        %v4212 = vunpack.c.l.bf16 %v4165
        %v4213 = vunpack.c.l.bf16 %v4173
        %v4214 = vunpack.c.l.bf16 %v4181
        %vm4231 = vcmask 1045504
        %v4232 = vrot.slane %v4199, 2
        %v4233 = vrot.slane %v4200, 2
        %v4234 = vsel %vm4231, %v4232, %v4233
        %v4235 = vrot.slane %v4201, 2
        %v4236 = vsel %vm4231, %v4233, %v4235
        %v4237 = vrot.slane %v4202, 2
        %v4238 = vsel %vm4231, %v4235, %v4237
        %v4239 = vrot.slane %v4203, 2
        %v4240 = vsel %vm4231, %v4237, %v4239
        %v4241 = vrot.slane %v4204, 2
        %v4242 = vsel %vm4231, %v4239, %v4241
        %v4243 = vrot.slane %v4205, 2
        %v4244 = vsel %vm4231, %v4241, %v4243
        %v4245 = vrot.slane %v4206, 2
        %v4246 = vsel %vm4231, %v4243, %v4245
        %v4247 = vrot.slane %v4207, 2
        %v4248 = vsel %vm4231, %v4245, %v4247
        %v4249 = vrot.slane %v4208, 2
        %v4250 = vsel %vm4231, %v4247, %v4249
        %v4251 = vrot.slane %v4209, 2
        %v4252 = vsel %vm4231, %v4249, %v4251
        %v4253 = vrot.slane %v4210, 2
        %v4254 = vsel %vm4231, %v4251, %v4253
        %v4255 = vrot.slane %v4211, 2
        %v4256 = vsel %vm4231, %v4253, %v4255
        %v4257 = vrot.slane %v4212, 2
        %v4258 = vsel %vm4231, %v4255, %v4257
        %v4259 = vrot.slane %v4213, 2
        %v4260 = vsel %vm4231, %v4257, %v4259
        %v4261 = vrot.slane %v4214, 2
        %v4262 = vsel %vm4231, %v4259, %v4261
        %v4280 = vmul.f32 %v4182, %v4232
        %v4281 = vmul.f32 %v4183, %v4234
        %v4282 = vmul.f32 %v4184, %v4236
        %v4283 = vmul.f32 %v4185, %v4238
        %v4284 = vmul.f32 %v4186, %v4240
        %v4285 = vmul.f32 %v4187, %v4242
        %v4286 = vmul.f32 %v4188, %v4244
        %v4287 = vmul.f32 %v4189, %v4246
        %v4288 = vmul.f32 %v4190, %v4248
        %v4289 = vmul.f32 %v4191, %v4250
        %v4290 = vmul.f32 %v4192, %v4252
        %v4291 = vmul.f32 %v4193, %v4254
        %v4292 = vmul.f32 %v4194, %v4256
        %v4293 = vmul.f32 %v4195, %v4258
        %v4294 = vmul.f32 %v4196, %v4260
        %v4295 = vmul.f32 %v4197, %v4262
        %v4296 = vmul.f32 %v4198, %v4261
        %v4297 = vpack.c.bf16 %v4281, %v4280
        %v4298 = vpack.c.bf16 %v4283, %v4282
        %v4299 = vpack.c.bf16 %v4285, %v4284
        %v4300 = vpack.c.bf16 %v4287, %v4286
        %v4301 = vpack.c.bf16 %v4289, %v4288
        %v4302 = vpack.c.bf16 %v4291, %v4290
        %v4303 = vpack.c.bf16 %v4293, %v4292
        %v4304 = vpack.c.bf16 %v4295, %v4294
        %v4305 = vpack.c.bf16 %v4296, %v4296
        %v4306 = vld [vmem:[#allocation16] sm:$0xf]
        %v4307 = vld [vmem:[#allocation16 + $0x4] sm:$0xf]
        %v4308 = vld [vmem:[#allocation16 + $0x8] sm:$0xf]
        %v4309 = vld [vmem:[#allocation16 + $0xc] sm:$0xf]
        %v4310 = vld [vmem:[#allocation16 + $0x10] sm:$0xf]
        %v4311 = vld [vmem:[#allocation16 + $0x14] sm:$0xf]
        %v4312 = vld [vmem:[#allocation16 + $0x18] sm:$0xf]
        %v4313 = vld [vmem:[#allocation16 + $0x1c] sm:$0xf]
        %v4314 = vld [vmem:[#allocation16 + $0x20] sm:$0xf]
        %v4315 = vld [vmem:[#allocation16 + $0x24] sm:$0xf]
        %v4316 = vld [vmem:[#allocation16 + $0x28] sm:$0xf]
        %v4317 = vld [vmem:[#allocation16 + $0x2c] sm:$0xf]
        %v4318 = vld [vmem:[#allocation16 + $0x30] sm:$0xf]
        %v4319 = vld [vmem:[#allocation16 + $0x34] sm:$0xf]
        %v4320 = vld [vmem:[#allocation16 + $0x38] sm:$0xf]
        %v4321 = vld [vmem:[#allocation16 + $0x3c] sm:$0xf]
        %v4322 = vld [vmem:[#allocation3 + $0x40] sm:$0xf]
        %v4323 = vld [vmem:[#allocation16 + $0x40] sm:$0xf]
        %v4324 = vld [vmem:[#allocation16 + $0x44] sm:$0xf]
        %v4325 = vld [vmem:[#allocation16 + $0x48] sm:$0xf]
        %v4326 = vld [vmem:[#allocation16 + $0x4c] sm:$0xf]
        %v4327 = vld [vmem:[#allocation16 + $0x50] sm:$0xf]
        %v4328 = vld [vmem:[#allocation16 + $0x54] sm:$0xf]
        %v4329 = vld [vmem:[#allocation16 + $0x58] sm:$0xf]
        %v4330 = vld [vmem:[#allocation16 + $0x5c] sm:$0xf]
        %v4331 = vld [vmem:[#allocation16 + $0x60] sm:$0xf]
        %v4332 = vld [vmem:[#allocation16 + $0x64] sm:$0xf]
        %v4333 = vld [vmem:[#allocation16 + $0x68] sm:$0xf]
        %v4334 = vld [vmem:[#allocation16 + $0x6c] sm:$0xf]
        %v4335 = vld [vmem:[#allocation16 + $0x70] sm:$0xf]
        %v4336 = vld [vmem:[#allocation16 + $0x74] sm:$0xf]
        %v4337 = vld [vmem:[#allocation16 + $0x78] sm:$0xf]
        %v4338 = vld [vmem:[#allocation16 + $0x7c] sm:$0xf]
        %v4355 = vunpack.c.l.b16 %v4038
        %v4356 = vunpack.c.l.b16 %v4039
        %v4357 = vunpack.c.l.b16 %v4040
        %v4358 = vunpack.c.l.b16 %v4041
        %v4359 = vunpack.c.l.b16 %v4042
        %v4360 = vunpack.c.l.b16 %v4043
        %v4361 = vunpack.c.l.b16 %v4044
        %v4362 = vunpack.c.l.b16 %v4045
        %v4363 = vunpack.c.l.b16 %v4046
        %v4364 = vunpack.c.l.b16 %v4047
        %v4365 = vunpack.c.l.b16 %v4048
        %v4366 = vunpack.c.l.b16 %v4049
        %v4367 = vunpack.c.l.b16 %v4050
        %v4368 = vunpack.c.l.b16 %v4051
        %v4369 = vunpack.c.l.b16 %v4052
        %v4370 = vunpack.c.l.b16 %v4322
        %v4371 = vpack.c.b16 %v4356, %v4355
        %v4372 = vpack.c.b16 %v4358, %v4357
        %v4373 = vpack.c.b16 %v4360, %v4359
        %v4374 = vpack.c.b16 %v4362, %v4361
        %v4375 = vpack.c.b16 %v4364, %v4363
        %v4376 = vpack.c.b16 %v4366, %v4365
        %v4377 = vpack.c.b16 %v4368, %v4367
        %v4378 = vpack.c.b16 %v4370, %v4369
        %v4403 = vunpack.c.l.b16 %v4323
        %v4404 = vunpack.c.l.b16 %v4324
        %v4405 = vunpack.c.l.b16 %v4325
        %v4406 = vunpack.c.l.b16 %v4326
        %v4407 = vunpack.c.l.b16 %v4327
        %v4408 = vunpack.c.l.b16 %v4328
        %v4409 = vunpack.c.l.b16 %v4329
        %v4410 = vunpack.c.l.b16 %v4330
        %v4411 = vunpack.c.l.b16 %v4331
        %v4412 = vunpack.c.l.b16 %v4332
        %v4413 = vunpack.c.l.b16 %v4333
        %v4414 = vunpack.c.l.b16 %v4334
        %v4415 = vunpack.c.l.b16 %v4335
        %v4416 = vunpack.c.l.b16 %v4336
        %v4417 = vunpack.c.l.b16 %v4337
        %v4418 = vunpack.c.l.b16 %v4338
        %v4419 = vpack.c.b16 %v4404, %v4403
        %v4420 = vpack.c.b16 %v4406, %v4405
        %v4421 = vpack.c.b16 %v4408, %v4407
        %v4422 = vpack.c.b16 %v4410, %v4409
        %v4423 = vpack.c.b16 %v4412, %v4411
        %v4424 = vpack.c.b16 %v4414, %v4413
        %v4425 = vpack.c.b16 %v4416, %v4415
        %v4426 = vpack.c.b16 %v4418, %v4417
        %4435 = vmatpush.bf16.msra.mxu0 %v4426
        %4436 = vmatpush.bf16.msra.mxu0 %v4425
        %4437 = vmatpush.bf16.msra.mxu0 %v4424
        %4438 = vmatpush.bf16.msra.mxu0 %v4423
        %4439 = vmatpush.bf16.msra.mxu0 %v4422
        %4440 = vmatpush.bf16.msra.mxu0 %v4421
        %4441 = vmatpush.bf16.msra.mxu0 %v4420
        %4442 = vmatpush.bf16.msra.mxu0 %v4419
        %4443 = vmatmul.bf16.gmra.mxu0 %v4371
        %v4444 = vpop.f32.mrf.mxu0
        %v4445 = vadd.f32 0.0, %v4444
        %v4446 = vpop.f32.mrf.mxu0
        %v4447 = vadd.f32 0.0, %v4446
        %4448 = vmatmul.bf16.gmra.mxu0 %v4372
        %v4449 = vpop.f32.mrf.mxu0
        %v4450 = vadd.f32 0.0, %v4449
        %v4451 = vpop.f32.mrf.mxu0
        %v4452 = vadd.f32 0.0, %v4451
        %4453 = vmatmul.bf16.gmra.mxu0 %v4373
        %v4454 = vpop.f32.mrf.mxu0
        %v4455 = vadd.f32 0.0, %v4454
        %v4456 = vpop.f32.mrf.mxu0
        %v4457 = vadd.f32 0.0, %v4456
        %4458 = vmatmul.bf16.gmra.mxu0 %v4374
        %v4459 = vpop.f32.mrf.mxu0
        %v4460 = vadd.f32 0.0, %v4459
        %v4461 = vpop.f32.mrf.mxu0
        %v4462 = vadd.f32 0.0, %v4461
        %4463 = vmatmul.bf16.gmra.mxu0 %v4375
        %v4464 = vpop.f32.mrf.mxu0
        %v4465 = vadd.f32 0.0, %v4464
        %v4466 = vpop.f32.mrf.mxu0
        %v4467 = vadd.f32 0.0, %v4466
        %4468 = vmatmul.bf16.gmra.mxu0 %v4376
        %v4469 = vpop.f32.mrf.mxu0
        %v4470 = vadd.f32 0.0, %v4469
        %v4471 = vpop.f32.mrf.mxu0
        %v4472 = vadd.f32 0.0, %v4471
        %4473 = vmatmul.bf16.gmra.mxu0 %v4377
        %v4474 = vpop.f32.mrf.mxu0
        %v4475 = vadd.f32 0.0, %v4474
        %v4476 = vpop.f32.mrf.mxu0
        %v4477 = vadd.f32 0.0, %v4476
        %4478 = vmatmul.bf16.gmra.mxu0 %v4378
        %v4479 = vpop.f32.mrf.mxu0
        %v4480 = vadd.f32 0.0, %v4479
        %v4481 = vpop.f32.mrf.mxu0
        %v4482 = vadd.f32 0.0, %v4481
        %4483 = vdwg.mxu0
        %vm4493 = vcmask 1044480
        %v4494 = vrot.slane %v4297, 3
        %v4495 = vrot.slane %v4298, 3
        %v4496 = vsel %vm4493, %v4494, %v4495
        %v4497 = vrot.slane %v4299, 3
        %v4498 = vsel %vm4493, %v4495, %v4497
        %v4499 = vrot.slane %v4300, 3
        %v4500 = vsel %vm4493, %v4497, %v4499
        %v4501 = vrot.slane %v4301, 3
        %v4502 = vsel %vm4493, %v4499, %v4501
        %v4503 = vrot.slane %v4302, 3
        %v4504 = vsel %vm4493, %v4501, %v4503
        %v4505 = vrot.slane %v4303, 3
        %v4506 = vsel %vm4493, %v4503, %v4505
        %v4507 = vrot.slane %v4304, 3
        %v4508 = vsel %vm4493, %v4505, %v4507
        %v4509 = vrot.slane %v4305, 3
        %v4510 = vsel %vm4493, %v4507, %v4509
        %v4535 = vunpack.c.l.b16 %v4306
        %v4536 = vunpack.c.l.b16 %v4307
        %v4537 = vunpack.c.l.b16 %v4308
        %v4538 = vunpack.c.l.b16 %v4309
        %v4539 = vunpack.c.l.b16 %v4310
        %v4540 = vunpack.c.l.b16 %v4311
        %v4541 = vunpack.c.l.b16 %v4312
        %v4542 = vunpack.c.l.b16 %v4313
        %v4543 = vunpack.c.l.b16 %v4314
        %v4544 = vunpack.c.l.b16 %v4315
        %v4545 = vunpack.c.l.b16 %v4316
        %v4546 = vunpack.c.l.b16 %v4317
        %v4547 = vunpack.c.l.b16 %v4318
        %v4548 = vunpack.c.l.b16 %v4319
        %v4549 = vunpack.c.l.b16 %v4320
        %v4550 = vunpack.c.l.b16 %v4321
        %v4551 = vpack.c.b16 %v4536, %v4535
        %v4552 = vpack.c.b16 %v4538, %v4537
        %v4553 = vpack.c.b16 %v4540, %v4539
        %v4554 = vpack.c.b16 %v4542, %v4541
        %v4555 = vpack.c.b16 %v4544, %v4543
        %v4556 = vpack.c.b16 %v4546, %v4545
        %v4557 = vpack.c.b16 %v4548, %v4547
        %v4558 = vpack.c.b16 %v4550, %v4549
        %4567 = vmatpush.bf16.msra.mxu0 %v4558
        %4568 = vmatpush.bf16.msra.mxu0 %v4557
        %4569 = vmatpush.bf16.msra.mxu0 %v4556
        %4570 = vmatpush.bf16.msra.mxu0 %v4555
        %4571 = vmatpush.bf16.msra.mxu0 %v4554
        %4572 = vmatpush.bf16.msra.mxu0 %v4553
        %4573 = vmatpush.bf16.msra.mxu0 %v4552
        %4574 = vmatpush.bf16.msra.mxu0 %v4551
        %4575 = vmatmul.bf16.gmra.mxu0 %v4496
        %v4576 = vpop.f32.mrf.mxu0
        %v4577 = vadd.f32 %v4445, %v4576
        %v4578 = vpop.f32.mrf.mxu0
        %v4579 = vadd.f32 %v4447, %v4578
        %4580 = vmatmul.bf16.gmra.mxu0 %v4498
        %v4581 = vpop.f32.mrf.mxu0
        %v4582 = vadd.f32 %v4450, %v4581
        %v4583 = vpop.f32.mrf.mxu0
        %v4584 = vadd.f32 %v4452, %v4583
        %4585 = vmatmul.bf16.gmra.mxu0 %v4500
        %v4586 = vpop.f32.mrf.mxu0
        %v4587 = vadd.f32 %v4455, %v4586
        %v4588 = vpop.f32.mrf.mxu0
        %v4589 = vadd.f32 %v4457, %v4588
        %4590 = vmatmul.bf16.gmra.mxu0 %v4502
        %v4591 = vpop.f32.mrf.mxu0
        %v4592 = vadd.f32 %v4460, %v4591
        %v4593 = vpop.f32.mrf.mxu0
        %v4594 = vadd.f32 %v4462, %v4593
        %4595 = vmatmul.bf16.gmra.mxu0 %v4504
        %v4596 = vpop.f32.mrf.mxu0
        %v4597 = vadd.f32 %v4465, %v4596
        %v4598 = vpop.f32.mrf.mxu0
        %v4599 = vadd.f32 %v4467, %v4598
        %4600 = vmatmul.bf16.gmra.mxu0 %v4506
        %v4601 = vpop.f32.mrf.mxu0
        %v4602 = vadd.f32 %v4470, %v4601
        %v4603 = vpop.f32.mrf.mxu0
        %v4604 = vadd.f32 %v4472, %v4603
        %4605 = vmatmul.bf16.gmra.mxu0 %v4508
        %v4606 = vpop.f32.mrf.mxu0
        %v4607 = vadd.f32 %v4475, %v4606
        %v4608 = vpop.f32.mrf.mxu0
        %v4609 = vadd.f32 %v4477, %v4608
        %4610 = vmatmul.bf16.gmra.mxu0 %v4510
        %v4611 = vpop.f32.mrf.mxu0
        %v4612 = vadd.f32 %v4480, %v4611
        %v4613 = vpop.f32.mrf.mxu0
        %v4614 = vadd.f32 %v4482, %v4613
        %4615 = vdwg.mxu0
        %v4616 = vld [vmem:[#allocation3 + $0x4] sm:$0xe]
        %v4617 = vld [vmem:[#allocation3 + $0x8] sm:$0xf]
        %v4618 = vld [vmem:[#allocation3 + $0xc] sm:$0xf]
        %v4619 = vld [vmem:[#allocation3 + $0x10] sm:$0xf]
        %v4620 = vld [vmem:[#allocation3 + $0x14] sm:$0xf]
        %v4621 = vld [vmem:[#allocation3 + $0x18] sm:$0xf]
        %v4622 = vld [vmem:[#allocation3 + $0x1c] sm:$0xf]
        %v4623 = vld [vmem:[#allocation3 + $0x20] sm:$0xf]
        %v4624 = vld [vmem:[#allocation3 + $0x24] sm:$0xf]
        %v4625 = vld [vmem:[#allocation3 + $0x28] sm:$0xf]
        %v4626 = vld [vmem:[#allocation3 + $0x2c] sm:$0xf]
        %v4627 = vld [vmem:[#allocation3 + $0x30] sm:$0xf]
        %v4628 = vld [vmem:[#allocation3 + $0x34] sm:$0xf]
        %v4629 = vld [vmem:[#allocation3 + $0x38] sm:$0xf]
        %v4630 = vld [vmem:[#allocation3 + $0x3c] sm:$0xf]
        %v4631 = vld [vmem:[#allocation3 + $0x40] sm:$0xf]
        %v4632 = vld [vmem:[#allocation3 + $0x44] sm:$0x1]
        %4633 = vset.pattern.permute.xlu0 3
        %4634 = vperm.xlu0 %4633, %v1080
        %v4635 = vpop.permute.xlu0 %4634
        %v4638 = vunpack.c.l.s4 839922192
        %v4639 = vunpack.c.0.s8 %v4638
        %v4640 = vperm.slane %v4635, %v4639
        %4641 = vset.pattern.permute.xlu0 3
        %4642 = vperm.xlu0 %4641, %v1081
        %v4643 = vpop.permute.xlu0 %4642
        %v4646 = vunpack.c.l.s4 839922192
        %v4647 = vunpack.c.0.s8 %v4646
        %v4648 = vperm.slane %v4643, %v4647
        %4649 = vset.pattern.permute.xlu0 3
        %4650 = vperm.xlu0 %4649, %v1082
        %v4651 = vpop.permute.xlu0 %4650
        %v4654 = vunpack.c.l.s4 839922192
        %v4655 = vunpack.c.0.s8 %v4654
        %v4656 = vperm.slane %v4651, %v4655
        %4657 = vset.pattern.permute.xlu0 3
        %4658 = vperm.xlu0 %4657, %v1083
        %v4659 = vpop.permute.xlu0 %4658
        %v4662 = vunpack.c.l.s4 839922192
        %v4663 = vunpack.c.0.s8 %v4662
        %v4664 = vperm.slane %v4659, %v4663
        %4665 = vset.pattern.permute.xlu0 3
        %4666 = vperm.xlu0 %4665, %v1084
        %v4667 = vpop.permute.xlu0 %4666
        %v4670 = vunpack.c.l.s4 839922192
        %v4671 = vunpack.c.0.s8 %v4670
        %v4672 = vperm.slane %v4667, %v4671
        %4673 = vset.pattern.permute.xlu0 3
        %4674 = vperm.xlu0 %4673, %v1085
        %v4675 = vpop.permute.xlu0 %4674
        %v4678 = vunpack.c.l.s4 839922192
        %v4679 = vunpack.c.0.s8 %v4678
        %v4680 = vperm.slane %v4675, %v4679
        %4681 = vset.pattern.permute.xlu0 3
        %4682 = vperm.xlu0 %4681, %v1086
        %v4683 = vpop.permute.xlu0 %4682
        %v4686 = vunpack.c.l.s4 839922192
        %v4687 = vunpack.c.0.s8 %v4686
        %v4688 = vperm.slane %v4683, %v4687
        %4689 = vset.pattern.permute.xlu0 3
        %4690 = vperm.xlu0 %4689, %v1087
        %v4691 = vpop.permute.xlu0 %4690
        %v4694 = vunpack.c.l.s4 839922192
        %v4695 = vunpack.c.0.s8 %v4694
        %v4696 = vperm.slane %v4691, %v4695
        %4697 = vset.pattern.permute.xlu0 3
        %4698 = vperm.xlu0 %4697, %v1088
        %v4699 = vpop.permute.xlu0 %4698
        %v4702 = vunpack.c.l.s4 839922192
        %v4703 = vunpack.c.0.s8 %v4702
        %v4704 = vperm.slane %v4699, %v4703
        %4705 = vset.pattern.permute.xlu0 3
        %4706 = vperm.xlu0 %4705, %v1089
        %v4707 = vpop.permute.xlu0 %4706
        %v4710 = vunpack.c.l.s4 839922192
        %v4711 = vunpack.c.0.s8 %v4710
        %v4712 = vperm.slane %v4707, %v4711
        %4713 = vset.pattern.permute.xlu0 3
        %4714 = vperm.xlu0 %4713, %v1090
        %v4715 = vpop.permute.xlu0 %4714
        %v4718 = vunpack.c.l.s4 839922192
        %v4719 = vunpack.c.0.s8 %v4718
        %v4720 = vperm.slane %v4715, %v4719
        %4721 = vset.pattern.permute.xlu0 3
        %4722 = vperm.xlu0 %4721, %v1091
        %v4723 = vpop.permute.xlu0 %4722
        %v4726 = vunpack.c.l.s4 839922192
        %v4727 = vunpack.c.0.s8 %v4726
        %v4728 = vperm.slane %v4723, %v4727
        %4729 = vset.pattern.permute.xlu0 3
        %4730 = vperm.xlu0 %4729, %v1092
        %v4731 = vpop.permute.xlu0 %4730
        %v4734 = vunpack.c.l.s4 839922192
        %v4735 = vunpack.c.0.s8 %v4734
        %v4736 = vperm.slane %v4731, %v4735
        %4737 = vset.pattern.permute.xlu0 3
        %4738 = vperm.xlu0 %4737, %v1093
        %v4739 = vpop.permute.xlu0 %4738
        %v4742 = vunpack.c.l.s4 839922192
        %v4743 = vunpack.c.0.s8 %v4742
        %v4744 = vperm.slane %v4739, %v4743
        %4745 = vset.pattern.permute.xlu0 3
        %4746 = vperm.xlu0 %4745, %v1094
        %v4747 = vpop.permute.xlu0 %4746
        %v4750 = vunpack.c.l.s4 839922192
        %v4751 = vunpack.c.0.s8 %v4750
        %v4752 = vperm.slane %v4747, %v4751
        %4753 = vset.pattern.permute.xlu0 3
        %4754 = vperm.xlu0 %4753, %v1095
        %v4755 = vpop.permute.xlu0 %4754
        %v4758 = vunpack.c.l.s4 839922192
        %v4759 = vunpack.c.0.s8 %v4758
        %v4760 = vperm.slane %v4755, %v4759
        %v4761 = vunpack.c.l.bf16 %v4616
        %v4762 = vunpack.c.l.bf16 %v4617
        %v4763 = vunpack.c.l.bf16 %v4618
        %v4764 = vunpack.c.l.bf16 %v4619
        %v4765 = vunpack.c.l.bf16 %v4620
        %v4766 = vunpack.c.l.bf16 %v4621
        %v4767 = vunpack.c.l.bf16 %v4622
        %v4768 = vunpack.c.l.bf16 %v4623
        %v4769 = vunpack.c.l.bf16 %v4624
        %v4770 = vunpack.c.l.bf16 %v4625
        %v4771 = vunpack.c.l.bf16 %v4626
        %v4772 = vunpack.c.l.bf16 %v4627
        %v4773 = vunpack.c.l.bf16 %v4628
        %v4774 = vunpack.c.l.bf16 %v4629
        %v4775 = vunpack.c.l.bf16 %v4630
        %v4776 = vunpack.c.l.bf16 %v4631
        %v4777 = vunpack.c.l.bf16 %v4632
        %v4778 = vunpack.c.l.bf16 %v4640
        %v4779 = vunpack.c.l.bf16 %v4648
        %v4780 = vunpack.c.l.bf16 %v4656
        %v4781 = vunpack.c.l.bf16 %v4664
        %v4782 = vunpack.c.l.bf16 %v4672
        %v4783 = vunpack.c.l.bf16 %v4680
        %v4784 = vunpack.c.l.bf16 %v4688
        %v4785 = vunpack.c.l.bf16 %v4696
        %v4786 = vunpack.c.l.bf16 %v4704
        %v4787 = vunpack.c.l.bf16 %v4712
        %v4788 = vunpack.c.l.bf16 %v4720
        %v4789 = vunpack.c.l.bf16 %v4728
        %v4790 = vunpack.c.l.bf16 %v4736
        %v4791 = vunpack.c.l.bf16 %v4744
        %v4792 = vunpack.c.l.bf16 %v4752
        %v4793 = vunpack.c.l.bf16 %v4760
        %vm4810 = vcmask 1041408
        %v4811 = vrot.slane %v4778, 6
        %v4812 = vrot.slane %v4779, 6
        %v4813 = vsel %vm4810, %v4811, %v4812
        %v4814 = vrot.slane %v4780, 6
        %v4815 = vsel %vm4810, %v4812, %v4814
        %v4816 = vrot.slane %v4781, 6
        %v4817 = vsel %vm4810, %v4814, %v4816
        %v4818 = vrot.slane %v4782, 6
        %v4819 = vsel %vm4810, %v4816, %v4818
        %v4820 = vrot.slane %v4783, 6
        %v4821 = vsel %vm4810, %v4818, %v4820
        %v4822 = vrot.slane %v4784, 6
        %v4823 = vsel %vm4810, %v4820, %v4822
        %v4824 = vrot.slane %v4785, 6
        %v4825 = vsel %vm4810, %v4822, %v4824
        %v4826 = vrot.slane %v4786, 6
        %v4827 = vsel %vm4810, %v4824, %v4826
        %v4828 = vrot.slane %v4787, 6
        %v4829 = vsel %vm4810, %v4826, %v4828
        %v4830 = vrot.slane %v4788, 6
        %v4831 = vsel %vm4810, %v4828, %v4830
        %v4832 = vrot.slane %v4789, 6
        %v4833 = vsel %vm4810, %v4830, %v4832
        %v4834 = vrot.slane %v4790, 6
        %v4835 = vsel %vm4810, %v4832, %v4834
        %v4836 = vrot.slane %v4791, 6
        %v4837 = vsel %vm4810, %v4834, %v4836
        %v4838 = vrot.slane %v4792, 6
        %v4839 = vsel %vm4810, %v4836, %v4838
        %v4840 = vrot.slane %v4793, 6
        %v4841 = vsel %vm4810, %v4838, %v4840
        %v4859 = vmul.f32 %v4761, %v4811
        %v4860 = vmul.f32 %v4762, %v4813
        %v4861 = vmul.f32 %v4763, %v4815
        %v4862 = vmul.f32 %v4764, %v4817
        %v4863 = vmul.f32 %v4765, %v4819
        %v4864 = vmul.f32 %v4766, %v4821
        %v4865 = vmul.f32 %v4767, %v4823
        %v4866 = vmul.f32 %v4768, %v4825
        %v4867 = vmul.f32 %v4769, %v4827
        %v4868 = vmul.f32 %v4770, %v4829
        %v4869 = vmul.f32 %v4771, %v4831
        %v4870 = vmul.f32 %v4772, %v4833
        %v4871 = vmul.f32 %v4773, %v4835
        %v4872 = vmul.f32 %v4774, %v4837
        %v4873 = vmul.f32 %v4775, %v4839
        %v4874 = vmul.f32 %v4776, %v4841
        %v4875 = vmul.f32 %v4777, %v4840
        %v4876 = vpack.c.bf16 %v4860, %v4859
        %v4877 = vpack.c.bf16 %v4862, %v4861
        %v4878 = vpack.c.bf16 %v4864, %v4863
        %v4879 = vpack.c.bf16 %v4866, %v4865
        %v4880 = vpack.c.bf16 %v4868, %v4867
        %v4881 = vpack.c.bf16 %v4870, %v4869
        %v4882 = vpack.c.bf16 %v4872, %v4871
        %v4883 = vpack.c.bf16 %v4874, %v4873
        %v4884 = vpack.c.bf16 %v4875, %v4875
        %v4885 = vld [vmem:[#allocation16 + $0x80] sm:$0xf]
        %v4886 = vld [vmem:[#allocation16 + $0x84] sm:$0xf]
        %v4887 = vld [vmem:[#allocation16 + $0x88] sm:$0xf]
        %v4888 = vld [vmem:[#allocation16 + $0x8c] sm:$0xf]
        %v4889 = vld [vmem:[#allocation16 + $0x90] sm:$0xf]
        %v4890 = vld [vmem:[#allocation16 + $0x94] sm:$0xf]
        %v4891 = vld [vmem:[#allocation16 + $0x98] sm:$0xf]
        %v4892 = vld [vmem:[#allocation16 + $0x9c] sm:$0xf]
        %v4893 = vld [vmem:[#allocation16 + $0xa0] sm:$0xf]
        %v4894 = vld [vmem:[#allocation16 + $0xa4] sm:$0xf]
        %v4895 = vld [vmem:[#allocation16 + $0xa8] sm:$0xf]
        %v4896 = vld [vmem:[#allocation16 + $0xac] sm:$0xf]
        %v4897 = vld [vmem:[#allocation16 + $0xb0] sm:$0xf]
        %v4898 = vld [vmem:[#allocation16 + $0xb4] sm:$0xf]
        %v4899 = vld [vmem:[#allocation16 + $0xb8] sm:$0xf]
        %v4900 = vld [vmem:[#allocation16 + $0xbc] sm:$0xf]
        %vm4910 = vcmask 1046528
        %v4911 = vrot.slane %v4876, 1
        %v4912 = vrot.slane %v4877, 1
        %v4913 = vsel %vm4910, %v4911, %v4912
        %v4914 = vrot.slane %v4878, 1
        %v4915 = vsel %vm4910, %v4912, %v4914
        %v4916 = vrot.slane %v4879, 1
        %v4917 = vsel %vm4910, %v4914, %v4916
        %v4918 = vrot.slane %v4880, 1
        %v4919 = vsel %vm4910, %v4916, %v4918
        %v4920 = vrot.slane %v4881, 1
        %v4921 = vsel %vm4910, %v4918, %v4920
        %v4922 = vrot.slane %v4882, 1
        %v4923 = vsel %vm4910, %v4920, %v4922
        %v4924 = vrot.slane %v4883, 1
        %v4925 = vsel %vm4910, %v4922, %v4924
        %v4926 = vrot.slane %v4884, 1
        %v4927 = vsel %vm4910, %v4924, %v4926
        %v4952 = vunpack.c.l.b16 %v4885
        %v4953 = vunpack.c.l.b16 %v4886
        %v4954 = vunpack.c.l.b16 %v4887
        %v4955 = vunpack.c.l.b16 %v4888
        %v4956 = vunpack.c.l.b16 %v4889
        %v4957 = vunpack.c.l.b16 %v4890
        %v4958 = vunpack.c.l.b16 %v4891
        %v4959 = vunpack.c.l.b16 %v4892
        %v4960 = vunpack.c.l.b16 %v4893
        %v4961 = vunpack.c.l.b16 %v4894
        %v4962 = vunpack.c.l.b16 %v4895
        %v4963 = vunpack.c.l.b16 %v4896
        %v4964 = vunpack.c.l.b16 %v4897
        %v4965 = vunpack.c.l.b16 %v4898
        %v4966 = vunpack.c.l.b16 %v4899
        %v4967 = vunpack.c.l.b16 %v4900
        %v4968 = vpack.c.b16 %v4953, %v4952
        %v4969 = vpack.c.b16 %v4955, %v4954
        %v4970 = vpack.c.b16 %v4957, %v4956
        %v4971 = vpack.c.b16 %v4959, %v4958
        %v4972 = vpack.c.b16 %v4961, %v4960
        %v4973 = vpack.c.b16 %v4963, %v4962
        %v4974 = vpack.c.b16 %v4965, %v4964
        %v4975 = vpack.c.b16 %v4967, %v4966
        %4984 = vmatpush.bf16.msra.mxu0 %v4975
        %4985 = vmatpush.bf16.msra.mxu0 %v4974
        %4986 = vmatpush.bf16.msra.mxu0 %v4973
        %4987 = vmatpush.bf16.msra.mxu0 %v4972
        %4988 = vmatpush.bf16.msra.mxu0 %v4971
        %4989 = vmatpush.bf16.msra.mxu0 %v4970
        %4990 = vmatpush.bf16.msra.mxu0 %v4969
        %4991 = vmatpush.bf16.msra.mxu0 %v4968
        %4992 = vmatmul.bf16.gmra.mxu0 %v4913
        %v4993 = vpop.f32.mrf.mxu0
        %v4994 = vadd.f32 0.0, %v4993
        %v4995 = vpop.f32.mrf.mxu0
        %v4996 = vadd.f32 0.0, %v4995
        %4997 = vmatmul.bf16.gmra.mxu0 %v4915
        %v4998 = vpop.f32.mrf.mxu0
        %v4999 = vadd.f32 0.0, %v4998
        %v5000 = vpop.f32.mrf.mxu0
        %v5001 = vadd.f32 0.0, %v5000
        %5002 = vmatmul.bf16.gmra.mxu0 %v4917
        %v5003 = vpop.f32.mrf.mxu0
        %v5004 = vadd.f32 0.0, %v5003
        %v5005 = vpop.f32.mrf.mxu0
        %v5006 = vadd.f32 0.0, %v5005
        %5007 = vmatmul.bf16.gmra.mxu0 %v4919
        %v5008 = vpop.f32.mrf.mxu0
        %v5009 = vadd.f32 0.0, %v5008
        %v5010 = vpop.f32.mrf.mxu0
        %v5011 = vadd.f32 0.0, %v5010
        %5012 = vmatmul.bf16.gmra.mxu0 %v4921
        %v5013 = vpop.f32.mrf.mxu0
        %v5014 = vadd.f32 0.0, %v5013
        %v5015 = vpop.f32.mrf.mxu0
        %v5016 = vadd.f32 0.0, %v5015
        %5017 = vmatmul.bf16.gmra.mxu0 %v4923
        %v5018 = vpop.f32.mrf.mxu0
        %v5019 = vadd.f32 0.0, %v5018
        %v5020 = vpop.f32.mrf.mxu0
        %v5021 = vadd.f32 0.0, %v5020
        %5022 = vmatmul.bf16.gmra.mxu0 %v4925
        %v5023 = vpop.f32.mrf.mxu0
        %v5024 = vadd.f32 0.0, %v5023
        %v5025 = vpop.f32.mrf.mxu0
        %v5026 = vadd.f32 0.0, %v5025
        %5027 = vmatmul.bf16.gmra.mxu0 %v4927
        %v5028 = vpop.f32.mrf.mxu0
        %v5029 = vadd.f32 0.0, %v5028
        %v5030 = vpop.f32.mrf.mxu0
        %v5031 = vadd.f32 0.0, %v5030
        %5032 = vdwg.mxu0
        %v5033 = vadd.f32 %v4577, %v4994
        %v5034 = vadd.f32 %v4579, %v4996
        %v5035 = vadd.f32 %v4582, %v4999
        %v5036 = vadd.f32 %v4584, %v5001
        %v5037 = vadd.f32 %v4587, %v5004
        %v5038 = vadd.f32 %v4589, %v5006
        %v5039 = vadd.f32 %v4592, %v5009
        %v5040 = vadd.f32 %v4594, %v5011
        %v5041 = vadd.f32 %v4597, %v5014
        %v5042 = vadd.f32 %v4599, %v5016
        %v5043 = vadd.f32 %v4602, %v5019
        %v5044 = vadd.f32 %v4604, %v5021
        %v5045 = vadd.f32 %v4607, %v5024
        %v5046 = vadd.f32 %v4609, %v5026
        %v5047 = vadd.f32 %v4612, %v5029
        %v5048 = vadd.f32 %v4614, %v5031
        %v5049 = vld [vmem:[%s8 + $0x4] sm:$0x1]
        %v5050 = vperm.slane %v5049, 0
        %v5051 = vadd.f32 %v5033, %v5050
        %v5052 = vadd.f32 %v5034, %v5050
        %v5053 = vadd.f32 %v5035, %v5050
        %v5054 = vadd.f32 %v5036, %v5050
        %v5055 = vadd.f32 %v5037, %v5050
        %v5056 = vadd.f32 %v5038, %v5050
        %v5057 = vadd.f32 %v5039, %v5050
        %v5058 = vadd.f32 %v5040, %v5050
        %v5059 = vadd.f32 %v5041, %v5050
        %v5060 = vadd.f32 %v5042, %v5050
        %v5061 = vadd.f32 %v5043, %v5050
        %v5062 = vadd.f32 %v5044, %v5050
        %v5063 = vadd.f32 %v5045, %v5050
        %v5064 = vadd.f32 %v5046, %v5050
        %v5065 = vadd.f32 %v5047, %v5050
        %v5066 = vadd.f32 %v5048, %v5050
        %v5067 = vmax.f32 %v5051, 0.0
        %v5068 = vmax.f32 %v5052, 0.0
        %v5069 = vmax.f32 %v5053, 0.0
        %v5070 = vmax.f32 %v5054, 0.0
        %v5071 = vmax.f32 %v5055, 0.0
        %v5072 = vmax.f32 %v5056, 0.0
        %v5073 = vmax.f32 %v5057, 0.0
        %v5074 = vmax.f32 %v5058, 0.0
        %v5075 = vmax.f32 %v5059, 0.0
        %v5076 = vmax.f32 %v5060, 0.0
        %v5077 = vmax.f32 %v5061, 0.0
        %v5078 = vmax.f32 %v5062, 0.0
        %v5079 = vmax.f32 %v5063, 0.0
        %v5080 = vmax.f32 %v5064, 0.0
        %v5081 = vmax.f32 %v5065, 0.0
        %v5082 = vmax.f32 %v5066, 0.0
        %v5083 = vpack.c.bf16 %v5067, %v5067
        %v5084 = vpack.c.bf16 %v5068, %v5068
        %v5085 = vpack.c.bf16 %v5069, %v5069
        %v5086 = vpack.c.bf16 %v5070, %v5070
        %v5087 = vpack.c.bf16 %v5071, %v5071
        %v5088 = vpack.c.bf16 %v5072, %v5072
        %v5089 = vpack.c.bf16 %v5073, %v5073
        %v5090 = vpack.c.bf16 %v5074, %v5074
        %v5091 = vpack.c.bf16 %v5075, %v5075
        %v5092 = vpack.c.bf16 %v5076, %v5076
        %v5093 = vpack.c.bf16 %v5077, %v5077
        %v5094 = vpack.c.bf16 %v5078, %v5078
        %v5095 = vpack.c.bf16 %v5079, %v5079
        %v5096 = vpack.c.bf16 %v5080, %v5080
        %v5097 = vpack.c.bf16 %v5081, %v5081
        %v5098 = vpack.c.bf16 %v5082, %v5082
        %5099 = vst [vmem:[%s550] sm:$0xf] %v5083
        %5100 = vst [vmem:[%s550 + $0x4] sm:$0xf] %v5084
        %5101 = vst [vmem:[%s550 + $0x8] sm:$0xf] %v5085
        %5102 = vst [vmem:[%s550 + $0xc] sm:$0xf] %v5086
        %5103 = vst [vmem:[%s550 + $0x10] sm:$0xf] %v5087
        %5104 = vst [vmem:[%s550 + $0x14] sm:$0xf] %v5088
        %5105 = vst [vmem:[%s550 + $0x18] sm:$0xf] %v5089
        %5106 = vst [vmem:[%s550 + $0x1c] sm:$0xf] %v5090
        %5107 = vst [vmem:[%s550 + $0x20] sm:$0xf] %v5091
        %5108 = vst [vmem:[%s550 + $0x24] sm:$0xf] %v5092
        %5109 = vst [vmem:[%s550 + $0x28] sm:$0xf] %v5093
        %5110 = vst [vmem:[%s550 + $0x2c] sm:$0xf] %v5094
        %5111 = vst [vmem:[%s550 + $0x30] sm:$0xf] %v5095
        %5112 = vst [vmem:[%s550 + $0x34] sm:$0xf] %v5096
        %5113 = vst [vmem:[%s550 + $0x38] sm:$0xf] %v5097
        %5114 = vst [vmem:[%s550 + $0x3c] sm:$0xf] %v5098
        %s5115 = sand.u32 %s285, 1
        %s5116 = scalar_lea.sflag [#allocation7], %s5115
        %s5117 = sand.u32 %s285, 1
        %s5118 = smul.addr %s5117, 64
        %s5119 = scalar_lea.vmem [#allocation17], %s5118
        // Predicated region
        $region105: #{tpu_custom_call.1} parent=59 // pred_check
          %p5120 = pneg %p295
        $region106: #{tpu_custom_call.1} parent=59 // pred_check_branch
          %5122 = sbr.rel (%p5120) target = $region108
        $region107: #{tpu_custom_call.1} parent=59 // pred_region
          %s5123 = smul.u32 16, %s37
          %5125 = vsyncadd %s5116, 0
          %s5126 = smul.addr %s36, 32
          %s5127 = sadd.s32 %s5123, %s5126
          %s5128 = smul.addr %s5127, 4
          %s5129 = scalar_lea.hbm %s10, %s5128
          %s5130 = sshll.u32 %s5119, 4
          %s5131 = int_to_ptr.vmem [resolvable:$true] %s5130
          %s5132 = sshll.u32 %s5129, 4
          %s5133 = int_to_ptr.hbm [resolvable:$true] %s5132
          %5138 = dma.vmem_to_hbm [thread:$0]  %s5131, 1024, %s5133, %s5116, 64, 64, 4
        $region108: #{tpu_custom_call.1} parent=59 // pred_fallthru
          _
      $region60: #{tpu_custom_call.1} parent=5 // pred_fallthru
        _
      %p5139 = scmp.le.s32.totalorder 2, %s27
      // Predicated region
      $region109: #{tpu_custom_call.1} parent=5 // pred_check
        %p5140 = pneg %p5139
      $region110: #{tpu_custom_call.1} parent=5 // pred_check_branch
        %5142 = sbr.rel (%p5140) target = $region112
      $region111: #{tpu_custom_call.1} parent=5 // pred_region
        %s5143 = ssub.s32 %s27, 2
        // Predicated region
        $region113: #{tpu_custom_call.1} parent=111 // pred_check
          %p5144 = pneg %p301
        $region114: #{tpu_custom_call.1} parent=111 // pred_check_branch
          %5146 = sbr.rel (%p5144) target = $region116
        $region115: #{tpu_custom_call.1} parent=111 // pred_region
          %s5147 = sand.u32 %s286, 1
          %s5148 = scalar_lea.sflag [#allocation7], %s5147
          %s5149 = sand.u32 %s286, 1
          %s5150 = smul.addr %s5149, 64
          %s5151 = scalar_lea.vmem [#allocation17], %s5150
          %5153 = dma.done %s5148, 1024
        $region116: #{tpu_custom_call.1} parent=111 // pred_fallthru
          _
      $region112: #{tpu_custom_call.1} parent=5 // pred_fallthru
        _
    $region6: #{tpu_custom_call.1} parent=1 // loop_footer
      %s31 = sadd.s32 1, %s27
    $region7: #{tpu_custom_call.1} parent=1 // loop_footer_branch
      %26 = sbr.rel target = $region3
    $region8: #{tpu_custom_call.1} parent=1 // loop_exit
      _
    %5154 = vsyncpa [#allocation6], 1
    %s5155 = scalar_lea.sflag [#allocation6], 1
    %5156 = vsyncpa %s5155, 1
    %5157 = vsyncpa [#allocation9], 1
    %s5158 = scalar_lea.sflag [#allocation9], 1
    %5159 = vsyncpa %s5158, 1
    %5160 = vsyncpa [#allocation12], 1
    %5161 = vsyncpa [#allocation15], 1
    %5162 = vsyncpa [#allocation7], 1
    %s5163 = scalar_lea.sflag [#allocation7], 1
    %5164 = vsyncpa %s5163, 1

</llo_original>
